<compile_context>
chip_gen: v6e
topology: v6e:2x2x1
jax: 0.10.0
libtpu: 0.0.40
codegen_flags: <defaults>
</compile_context>

<pallas_src>
import jax
import jax.numpy as jnp
from jax.experimental import pallas as pl
from jax.experimental.pallas import tpu as pltpu


# ----------------------------------------------------------------------------
# Pallas kernels
# ----------------------------------------------------------------------------
def _conv_pool_kernel(x00_ref, x01_ref, x10_ref, x11_ref, w_ref, b_ref, o_ref):
    # x??: (tm, Kp) bf16 im2col patches for the 4 positions of each 2x2 pool
    # window; w: (Kp, 128) bf16; b: (1, 128) f32; o: (tm, 128) f32.
    w = w_ref[...]
    y00 = jnp.dot(x00_ref[...], w, preferred_element_type=jnp.float32)
    y01 = jnp.dot(x01_ref[...], w, preferred_element_type=jnp.float32)
    y10 = jnp.dot(x10_ref[...], w, preferred_element_type=jnp.float32)
    y11 = jnp.dot(x11_ref[...], w, preferred_element_type=jnp.float32)
    # max(conv + b) == max(conv) + b  (bias identical across the pool window)
    o_ref[...] = jnp.maximum(jnp.maximum(y00, y01),
                             jnp.maximum(y10, y11)) + b_ref[...]


def _mlp_kernel(x_ref, w1_ref, b1_ref, w2_ref, b2_ref, o_ref):
    # Fused flatten-tail: (B,1024) @ (1024,128) + b1 -> (B,128) @ (128,128) + b2
    h = jnp.dot(x_ref[...], w1_ref[...],
                preferred_element_type=jnp.float32) + b1_ref[...]
    o_ref[...] = jnp.dot(h.astype(jnp.bfloat16), w2_ref[...],
                         preferred_element_type=jnp.float32) + b2_ref[...]


# ----------------------------------------------------------------------------
# Glue / wrappers
# ----------------------------------------------------------------------------
def _pick_tm(M):
    """Largest row-tile <= 256 that divides M, is a multiple of 8, and leaves
    at least 2 grid steps (feeds both v7x TensorCores).  Falls back to M."""
    if M % 16 != 0:
        return M
    tm = min(256, M // 2)
    tm -= tm % 8
    while tm > 8 and M % tm != 0:
        tm -= 8
    return tm if (tm >= 8 and M % tm == 0) else M


def _im2col_pool(x):
    """x: NHWC (B, H, W, C) f32.  Returns 4 bf16 arrays of shape (B*Ho*Wo, Kp),
    one per 2x2-pool position (di, dj), K ordered (ki*5+kj)*C + c and
    zero-padded to a multiple of 128."""
    B, H, W, C = x.shape
    Ho, Wo = H // 2, W // 2
    K = 25 * C
    Kp = ((K + 127) // 128) * 128
    xp = jnp.pad(x, ((0, 0), (2, 2), (2, 2), (0, 0)))
    outs = []
    for di in range(2):
        for dj in range(2):
            cols = []
            for ki in range(5):
                for kj in range(5):
                    r0 = di + ki
                    c0 = dj + kj
                    cols.append(xp[:, r0:r0 + 2 * Ho - 1:2,
                                   c0:c0 + 2 * Wo - 1:2, :])
            p = jnp.concatenate(cols, axis=-1)          # (B, Ho, Wo, 25*C)
            p = p.reshape(B * Ho * Wo, K)
            if Kp != K:
                p = jnp.pad(p, ((0, 0), (0, Kp - K)))
            outs.append(p.astype(jnp.bfloat16))
    return outs, Kp


def conv5x5_pool(x_nhwc, w, b):
    """Fused nn.Conv2d(k=5, padding=2) + nn.MaxPool2d(2).  NHWC in, NHWC out."""
    B, H, W, C = x_nhwc.shape
    O = w.shape[0]
    Ho, Wo = H // 2, W // 2
    M = B * Ho * Wo
    Np = 128                                            # lane-dense output
    patches, Kp = _im2col_pool(x_nhwc)                  # 4 x (M, Kp) bf16
    # PyTorch weight (O, C, 5, 5) -> K-major (ki, kj, c) x O, padded.
    wm = w.transpose(2, 3, 1, 0).reshape(25 * C, O)
    wm = jnp.pad(wm, ((0, Kp - 25 * C), (0, Np - O))).astype(jnp.bfloat16)
    bm = jnp.pad(b.astype(jnp.float32).reshape(1, O), ((0, 0), (0, Np - O)))

    tm = _pick_tm(M)
    grid = (M // tm,)
    out = pl.pallas_call(
        _conv_pool_kernel,
        out_shape=jax.ShapeDtypeStruct((M, Np), jnp.float32),
        grid=grid,
        in_specs=[pl.BlockSpec((tm, Kp), lambda i: (i, 0))] * 4 + [
            pl.BlockSpec((Kp, Np), lambda i: (0, 0)),
            pl.BlockSpec((1, Np), lambda i: (0, 0)),
        ],
        out_specs=pl.BlockSpec((tm, Np), lambda i: (i, 0)),
        compiler_params=pltpu.CompilerParams(
            dimension_semantics=("parallel",)),
    )(*patches, wm, bm)
    return out.reshape(B, Ho, Wo, Np)[..., :O]          # drop zero pad channels


def mlp_head(feat, w1, b1, w2, b2):
    """Fused linear1 + linear2 on (B, 1024) features (PyTorch flatten order)."""
    B, K = feat.shape
    Hd = w1.shape[1]                                    # 64
    O = w2.shape[1]                                     # 10
    Hp = 128
    Op = 128
    w1p = jnp.pad(w1, ((0, 0), (0, Hp - Hd))).astype(jnp.bfloat16)
    b1p = jnp.pad(b1.astype(jnp.float32).reshape(1, Hd), ((0, 0), (0, Hp - Hd)))
    w2p = jnp.pad(w2, ((0, Hp - Hd), (0, Op - O))).astype(jnp.bfloat16)
    b2p = jnp.pad(b2.astype(jnp.float32).reshape(1, O), ((0, 0), (0, Op - O)))
    out = pl.pallas_call(
        _mlp_kernel,
        out_shape=jax.ShapeDtypeStruct((B, Op), jnp.float32),
    )(feat.astype(jnp.bfloat16), w1p, b1p, w2p, b2p)
    return out[:, :O]


# ----------------------------------------------------------------------------
# Model (forward pass of pytorch_study/pj_cifar10.py :: CIFAR10 — no ReLU in
# the reference Sequential, so none here either).
# ----------------------------------------------------------------------------
def init_params(key):
    def conv_init(key, o, c, k):
        k1, k2 = jax.random.split(key)
        bound = 1.0 / jnp.sqrt(c * k * k)
        w = jax.random.uniform(k1, (o, c, k, k), jnp.float32, -bound, bound)
        b = jax.random.uniform(k2, (o,), jnp.float32, -bound, bound)
        return w, b

    def linear_init(key, i, o):
        k1, k2 = jax.random.split(key)
        bound = 1.0 / jnp.sqrt(i)
        w = jax.random.uniform(k1, (i, o), jnp.float32, -bound, bound)
        b = jax.random.uniform(k2, (o,), jnp.float32, -bound, bound)
        return w, b

    keys = jax.random.split(key, 5)
    p = {}
    p["w1"], p["b1"] = conv_init(keys[0], 32, 3, 5)
    p["w2"], p["b2"] = conv_init(keys[1], 32, 32, 5)
    p["w3"], p["b3"] = conv_init(keys[2], 64, 32, 5)
    p["wl1"], p["bl1"] = linear_init(keys[3], 1024, 64)
    p["wl2"], p["bl2"] = linear_init(keys[4], 64, 10)
    return p


def cifar10_forward(x_nchw, p):
    x = x_nchw.transpose(0, 2, 3, 1)                    # NCHW -> NHWC (once)
    x = conv5x5_pool(x, p["w1"], p["b1"])               # (B, 16, 16, 32)
    x = conv5x5_pool(x, p["w2"], p["b2"])               # (B,  8,  8, 32)
    x = conv5x5_pool(x, p["w3"], p["b3"])               # (B,  4,  4, 64)
    B = x.shape[0]
    # nn.Flatten() on NCHW orders features as (C, H, W); tiny transpose here.
    feat = x.transpose(0, 3, 1, 2).reshape(B, -1)       # (B, 1024)
    return mlp_head(feat, p["wl1"], p["bl1"], p["wl2"], p["bl2"])  # (B, 10)


if __name__ == "__main__":
    key = jax.random.PRNGKey(0)
    kx, kp = jax.random.split(key)
    # Input must be 3x32x32 so flatten yields 64*4*4 = 1024 features for
    # nn.Linear(1024, 64); batch kept small.
    x = jax.random.normal(kx, (2, 3, 32, 32), jnp.float32)
    params = init_params(kp)

    fwd = jax.jit(cifar10_forward)
    out = jax.block_until_ready(fwd(x, params))
    assert out.shape == (2, 10), out.shape
    assert out.dtype == jnp.float32
    assert bool(jnp.all(jnp.isfinite(out)))
    print("KERNEL_OK")
</pallas_src>

<mosaic_0001>
module attributes {stable_mosaic.version = 11 : i64} {
  func.func @_conv_pool_kernel(%arg0: i32, %arg1: memref<256x128xbf16, #tpu.memory_space<vmem>>, %arg2: memref<256x128xbf16, #tpu.memory_space<vmem>>, %arg3: memref<256x128xbf16, #tpu.memory_space<vmem>>, %arg4: memref<256x128xbf16, #tpu.memory_space<vmem>>, %arg5: memref<128x128xbf16, #tpu.memory_space<vmem>>, %arg6: memref<1x128xf32, #tpu.memory_space<vmem>>, %arg7: memref<256x128xf32, #tpu.memory_space<vmem>>) attributes {dimension_semantics = [#tpu.dimension_semantics<parallel>], iteration_bounds = array<i64: 2>, scalar_prefetch = 0 : i64, scratch_operands = 0 : i64, tpu.core_type = #tpu.core_type<tc>, window_params = [{transform_indices = @transform_0, window_bounds = array<i64: 256, 128>}, {transform_indices = @transform_1, window_bounds = array<i64: 256, 128>}, {transform_indices = @transform_2, window_bounds = array<i64: 256, 128>}, {transform_indices = @transform_3, window_bounds = array<i64: 256, 128>}, {pipeline_mode = #tpu.pipeline_mode<synchronous>, transform_indices = @transform_4, window_bounds = array<i64: 128, 128>}, {pipeline_mode = #tpu.pipeline_mode<synchronous>, transform_indices = @transform_5, window_bounds = array<i64: 1, 128>}, {transform_indices = @transform_6, window_bounds = array<i64: 256, 128>}]} {
    %c0 = arith.constant 0 : index
    %c0_0 = arith.constant 0 : index
    %0 = vector.load %arg5[%c0, %c0_0] : memref<128x128xbf16, #tpu.memory_space<vmem>>, vector<128x128xbf16>
    %c0_1 = arith.constant 0 : index
    %c0_2 = arith.constant 0 : index
    %1 = vector.load %arg1[%c0_1, %c0_2] : memref<256x128xbf16, #tpu.memory_space<vmem>>, vector<256x128xbf16>
    %cst = arith.constant dense<0.000000e+00> : vector<256x128xf32>
    %2 = tpu.matmul %1, %0, %cst {dimension_numbers = #tpu.dot_dimension_numbers<[1], [0], [0], [1], [0, 0, 1, 1], [], []>} : vector<256x128xbf16>, vector<128x128xbf16>, vector<256x128xf32> -> vector<256x128xf32>
    %c0_3 = arith.constant 0 : index
    %c0_4 = arith.constant 0 : index
    %3 = vector.load %arg2[%c0_3, %c0_4] : memref<256x128xbf16, #tpu.memory_space<vmem>>, vector<256x128xbf16>
    %cst_5 = arith.constant dense<0.000000e+00> : vector<256x128xf32>
    %4 = tpu.matmul %3, %0, %cst_5 {dimension_numbers = #tpu.dot_dimension_numbers<[1], [0], [0], [1], [0, 0, 1, 1], [], []>} : vector<256x128xbf16>, vector<128x128xbf16>, vector<256x128xf32> -> vector<256x128xf32>
    %c0_6 = arith.constant 0 : index
    %c0_7 = arith.constant 0 : index
    %5 = vector.load %arg3[%c0_6, %c0_7] : memref<256x128xbf16, #tpu.memory_space<vmem>>, vector<256x128xbf16>
    %cst_8 = arith.constant dense<0.000000e+00> : vector<256x128xf32>
    %6 = tpu.matmul %5, %0, %cst_8 {dimension_numbers = #tpu.dot_dimension_numbers<[1], [0], [0], [1], [0, 0, 1, 1], [], []>} : vector<256x128xbf16>, vector<128x128xbf16>, vector<256x128xf32> -> vector<256x128xf32>
    %c0_9 = arith.constant 0 : index
    %c0_10 = arith.constant 0 : index
    %7 = vector.load %arg4[%c0_9, %c0_10] : memref<256x128xbf16, #tpu.memory_space<vmem>>, vector<256x128xbf16>
    %cst_11 = arith.constant dense<0.000000e+00> : vector<256x128xf32>
    %8 = tpu.matmul %7, %0, %cst_11 {dimension_numbers = #tpu.dot_dimension_numbers<[1], [0], [0], [1], [0, 0, 1, 1], [], []>} : vector<256x128xbf16>, vector<128x128xbf16>, vector<256x128xf32> -> vector<256x128xf32>
    %9 = arith.maximumf %2, %4 : vector<256x128xf32>
    %10 = arith.maximumf %6, %8 : vector<256x128xf32>
    %11 = arith.maximumf %9, %10 : vector<256x128xf32>
    %c0_12 = arith.constant 0 : index
    %c0_13 = arith.constant 0 : index
    %12 = vector.load %arg6[%c0_12, %c0_13] : memref<1x128xf32, #tpu.memory_space<vmem>>, vector<1x128xf32>
    %13 = vector.broadcast %12 : vector<1x128xf32> to vector<256x128xf32>
    %14 = arith.addf %11, %13 : vector<256x128xf32>
    %c0_14 = arith.constant 0 : index
    %c0_15 = arith.constant 0 : index
    %15 = vector.load %arg7[%c0_14, %c0_15] : memref<256x128xf32, #tpu.memory_space<vmem>>, vector<256x128xf32>
    tpu.vector_store %arg7[%c0_14, %c0_15], %14 {strides = array<i32>} : memref<256x128xf32, #tpu.memory_space<vmem>>, vector<256x128xf32>,
    return
  }
  func.func @transform_0(%arg0: i32) -> (i32, i32) {
    %c0_i32 = arith.constant 0 : i32
    %c0_i32_0 = arith.constant 0 : i32
    return %arg0, %c0_i32 : i32, i32
  }
  func.func @transform_1(%arg0: i32) -> (i32, i32) {
    %c0_i32 = arith.constant 0 : i32
    %c0_i32_0 = arith.constant 0 : i32
    return %arg0, %c0_i32 : i32, i32
  }
  func.func @transform_2(%arg0: i32) -> (i32, i32) {
    %c0_i32 = arith.constant 0 : i32
    %c0_i32_0 = arith.constant 0 : i32
    return %arg0, %c0_i32 : i32, i32
  }
  func.func @transform_3(%arg0: i32) -> (i32, i32) {
    %c0_i32 = arith.constant 0 : i32
    %c0_i32_0 = arith.constant 0 : i32
    return %arg0, %c0_i32 : i32, i32
  }
  func.func @transform_4(%arg0: i32) -> (i32, i32) {
    %c0_i32 = arith.constant 0 : i32
    %c0_i32_0 = arith.constant 0 : i32
    %c0_i32_1 = arith.constant 0 : i32
    return %c0_i32, %c0_i32_0 : i32, i32
  }
  func.func @transform_5(%arg0: i32) -> (i32, i32) {
    %c0_i32 = arith.constant 0 : i32
    %c0_i32_0 = arith.constant 0 : i32
    %c0_i32_1 = arith.constant 0 : i32
    return %c0_i32, %c0_i32_0 : i32, i32
  }
  func.func @transform_6(%arg0: i32) -> (i32, i32) {
    %c0_i32 = arith.constant 0 : i32
    %c0_i32_0 = arith.constant 0 : i32
    return %arg0, %c0_i32 : i32, i32
  }
}

module attributes {stable_mosaic.version = 11 : i64} {
  func.func @_conv_pool_kernel(%arg0: i32, %arg1: memref<64x896xbf16, #tpu.memory_space<vmem>>, %arg2: memref<64x896xbf16, #tpu.memory_space<vmem>>, %arg3: memref<64x896xbf16, #tpu.memory_space<vmem>>, %arg4: memref<64x896xbf16, #tpu.memory_space<vmem>>, %arg5: memref<896x128xbf16, #tpu.memory_space<vmem>>, %arg6: memref<1x128xf32, #tpu.memory_space<vmem>>, %arg7: memref<64x128xf32, #tpu.memory_space<vmem>>) attributes {dimension_semantics = [#tpu.dimension_semantics<parallel>], iteration_bounds = array<i64: 2>, scalar_prefetch = 0 : i64, scratch_operands = 0 : i64, tpu.core_type = #tpu.core_type<tc>, window_params = [{transform_indices = @transform_0, window_bounds = array<i64: 64, 896>}, {transform_indices = @transform_1, window_bounds = array<i64: 64, 896>}, {transform_indices = @transform_2, window_bounds = array<i64: 64, 896>}, {transform_indices = @transform_3, window_bounds = array<i64: 64, 896>}, {pipeline_mode = #tpu.pipeline_mode<synchronous>, transform_indices = @transform_4, window_bounds = array<i64: 896, 128>}, {pipeline_mode = #tpu.pipeline_mode<synchronous>, transform_indices = @transform_5, window_bounds = array<i64: 1, 128>}, {transform_indices = @transform_6, window_bounds = array<i64: 64, 128>}]} {
    %c0 = arith.constant 0 : index
    %c0_0 = arith.constant 0 : index
    %0 = vector.load %arg5[%c0, %c0_0] : memref<896x128xbf16, #tpu.memory_space<vmem>>, vector<896x128xbf16>
    %c0_1 = arith.constant 0 : index
    %c0_2 = arith.constant 0 : index
    %1 = vector.load %arg1[%c0_1, %c0_2] : memref<64x896xbf16, #tpu.memory_space<vmem>>, vector<64x896xbf16>
    %cst = arith.constant dense<0.000000e+00> : vector<64x128xf32>
    %2 = tpu.matmul %1, %0, %cst {dimension_numbers = #tpu.dot_dimension_numbers<[1], [0], [0], [1], [0, 0, 1, 1], [], []>} : vector<64x896xbf16>, vector<896x128xbf16>, vector<64x128xf32> -> vector<64x128xf32>
    %c0_3 = arith.constant 0 : index
    %c0_4 = arith.constant 0 : index
    %3 = vector.load %arg2[%c0_3, %c0_4] : memref<64x896xbf16, #tpu.memory_space<vmem>>, vector<64x896xbf16>
    %cst_5 = arith.constant dense<0.000000e+00> : vector<64x128xf32>
    %4 = tpu.matmul %3, %0, %cst_5 {dimension_numbers = #tpu.dot_dimension_numbers<[1], [0], [0], [1], [0, 0, 1, 1], [], []>} : vector<64x896xbf16>, vector<896x128xbf16>, vector<64x128xf32> -> vector<64x128xf32>
    %c0_6 = arith.constant 0 : index
    %c0_7 = arith.constant 0 : index
    %5 = vector.load %arg3[%c0_6, %c0_7] : memref<64x896xbf16, #tpu.memory_space<vmem>>, vector<64x896xbf16>
    %cst_8 = arith.constant dense<0.000000e+00> : vector<64x128xf32>
    %6 = tpu.matmul %5, %0, %cst_8 {dimension_numbers = #tpu.dot_dimension_numbers<[1], [0], [0], [1], [0, 0, 1, 1], [], []>} : vector<64x896xbf16>, vector<896x128xbf16>, vector<64x128xf32> -> vector<64x128xf32>
    %c0_9 = arith.constant 0 : index
    %c0_10 = arith.constant 0 : index
    %7 = vector.load %arg4[%c0_9, %c0_10] : memref<64x896xbf16, #tpu.memory_space<vmem>>, vector<64x896xbf16>
    %cst_11 = arith.constant dense<0.000000e+00> : vector<64x128xf32>
    %8 = tpu.matmul %7, %0, %cst_11 {dimension_numbers = #tpu.dot_dimension_numbers<[1], [0], [0], [1], [0, 0, 1, 1], [], []>} : vector<64x896xbf16>, vector<896x128xbf16>, vector<64x128xf32> -> vector<64x128xf32>
    %9 = arith.maximumf %2, %4 : vector<64x128xf32>
    %10 = arith.maximumf %6, %8 : vector<64x128xf32>
    %11 = arith.maximumf %9, %10 : vector<64x128xf32>
    %c0_12 = arith.constant 0 : index
    %c0_13 = arith.constant 0 : index
    %12 = vector.load %arg6[%c0_12, %c0_13] : memref<1x128xf32, #tpu.memory_space<vmem>>, vector<1x128xf32>
    %13 = vector.broadcast %12 : vector<1x128xf32> to vector<64x128xf32>
    %14 = arith.addf %11, %13 : vector<64x128xf32>
    %c0_14 = arith.constant 0 : index
    %c0_15 = arith.constant 0 : index
    %15 = vector.load %arg7[%c0_14, %c0_15] : memref<64x128xf32, #tpu.memory_space<vmem>>, vector<64x128xf32>
    tpu.vector_store %arg7[%c0_14, %c0_15], %14 {strides = array<i32>} : memref<64x128xf32, #tpu.memory_space<vmem>>, vector<64x128xf32>,
    return
  }
  func.func @transform_0(%arg0: i32) -> (i32, i32) {
    %c0_i32 = arith.constant 0 : i32
    %c0_i32_0 = arith.constant 0 : i32
    return %arg0, %c0_i32 : i32, i32
  }
  func.func @transform_1(%arg0: i32) -> (i32, i32) {
    %c0_i32 = arith.constant 0 : i32
    %c0_i32_0 = arith.constant 0 : i32
    return %arg0, %c0_i32 : i32, i32
  }
  func.func @transform_2(%arg0: i32) -> (i32, i32) {
    %c0_i32 = arith.constant 0 : i32
    %c0_i32_0 = arith.constant 0 : i32
    return %arg0, %c0_i32 : i32, i32
  }
  func.func @transform_3(%arg0: i32) -> (i32, i32) {
    %c0_i32 = arith.constant 0 : i32
    %c0_i32_0 = arith.constant 0 : i32
    return %arg0, %c0_i32 : i32, i32
  }
  func.func @transform_4(%arg0: i32) -> (i32, i32) {
    %c0_i32 = arith.constant 0 : i32
    %c0_i32_0 = arith.constant 0 : i32
    %c0_i32_1 = arith.constant 0 : i32
    return %c0_i32, %c0_i32_0 : i32, i32
  }
  func.func @transform_5(%arg0: i32) -> (i32, i32) {
    %c0_i32 = arith.constant 0 : i32
    %c0_i32_0 = arith.constant 0 : i32
    %c0_i32_1 = arith.constant 0 : i32
    return %c0_i32, %c0_i32_0 : i32, i32
  }
  func.func @transform_6(%arg0: i32) -> (i32, i32) {
    %c0_i32 = arith.constant 0 : i32
    %c0_i32_0 = arith.constant 0 : i32
    return %arg0, %c0_i32 : i32, i32
  }
}

module attributes {stable_mosaic.version = 11 : i64} {
  func.func @_conv_pool_kernel(%arg0: i32, %arg1: memref<16x896xbf16, #tpu.memory_space<vmem>>, %arg2: memref<16x896xbf16, #tpu.memory_space<vmem>>, %arg3: memref<16x896xbf16, #tpu.memory_space<vmem>>, %arg4: memref<16x896xbf16, #tpu.memory_space<vmem>>, %arg5: memref<896x128xbf16, #tpu.memory_space<vmem>>, %arg6: memref<1x128xf32, #tpu.memory_space<vmem>>, %arg7: memref<16x128xf32, #tpu.memory_space<vmem>>) attributes {dimension_semantics = [#tpu.dimension_semantics<parallel>], iteration_bounds = array<i64: 2>, scalar_prefetch = 0 : i64, scratch_operands = 0 : i64, tpu.core_type = #tpu.core_type<tc>, window_params = [{transform_indices = @transform_0, window_bounds = array<i64: 16, 896>}, {transform_indices = @transform_1, window_bounds = array<i64: 16, 896>}, {transform_indices = @transform_2, window_bounds = array<i64: 16, 896>}, {transform_indices = @transform_3, window_bounds = array<i64: 16, 896>}, {pipeline_mode = #tpu.pipeline_mode<synchronous>, transform_indices = @transform_4, window_bounds = array<i64: 896, 128>}, {pipeline_mode = #tpu.pipeline_mode<synchronous>, transform_indices = @transform_5, window_bounds = array<i64: 1, 128>}, {transform_indices = @transform_6, window_bounds = array<i64: 16, 128>}]} {
    %c0 = arith.constant 0 : index
    %c0_0 = arith.constant 0 : index
    %0 = vector.load %arg5[%c0, %c0_0] : memref<896x128xbf16, #tpu.memory_space<vmem>>, vector<896x128xbf16>
    %c0_1 = arith.constant 0 : index
    %c0_2 = arith.constant 0 : index
    %1 = vector.load %arg1[%c0_1, %c0_2] : memref<16x896xbf16, #tpu.memory_space<vmem>>, vector<16x896xbf16>
    %cst = arith.constant dense<0.000000e+00> : vector<16x128xf32>
    %2 = tpu.matmul %1, %0, %cst {dimension_numbers = #tpu.dot_dimension_numbers<[1], [0], [0], [1], [0, 0, 1, 1], [], []>} : vector<16x896xbf16>, vector<896x128xbf16>, vector<16x128xf32> -> vector<16x128xf32>
    %c0_3 = arith.constant 0 : index
    %c0_4 = arith.constant 0 : index
    %3 = vector.load %arg2[%c0_3, %c0_4] : memref<16x896xbf16, #tpu.memory_space<vmem>>, vector<16x896xbf16>
    %cst_5 = arith.constant dense<0.000000e+00> : vector<16x128xf32>
    %4 = tpu.matmul %3, %0, %cst_5 {dimension_numbers = #tpu.dot_dimension_numbers<[1], [0], [0], [1], [0, 0, 1, 1], [], []>} : vector<16x896xbf16>, vector<896x128xbf16>, vector<16x128xf32> -> vector<16x128xf32>
    %c0_6 = arith.constant 0 : index
    %c0_7 = arith.constant 0 : index
    %5 = vector.load %arg3[%c0_6, %c0_7] : memref<16x896xbf16, #tpu.memory_space<vmem>>, vector<16x896xbf16>
    %cst_8 = arith.constant dense<0.000000e+00> : vector<16x128xf32>
    %6 = tpu.matmul %5, %0, %cst_8 {dimension_numbers = #tpu.dot_dimension_numbers<[1], [0], [0], [1], [0, 0, 1, 1], [], []>} : vector<16x896xbf16>, vector<896x128xbf16>, vector<16x128xf32> -> vector<16x128xf32>
    %c0_9 = arith.constant 0 : index
    %c0_10 = arith.constant 0 : index
    %7 = vector.load %arg4[%c0_9, %c0_10] : memref<16x896xbf16, #tpu.memory_space<vmem>>, vector<16x896xbf16>
    %cst_11 = arith.constant dense<0.000000e+00> : vector<16x128xf32>
    %8 = tpu.matmul %7, %0, %cst_11 {dimension_numbers = #tpu.dot_dimension_numbers<[1], [0], [0], [1], [0, 0, 1, 1], [], []>} : vector<16x896xbf16>, vector<896x128xbf16>, vector<16x128xf32> -> vector<16x128xf32>
    %9 = arith.maximumf %2, %4 : vector<16x128xf32>
    %10 = arith.maximumf %6, %8 : vector<16x128xf32>
    %11 = arith.maximumf %9, %10 : vector<16x128xf32>
    %c0_12 = arith.constant 0 : index
    %c0_13 = arith.constant 0 : index
    %12 = vector.load %arg6[%c0_12, %c0_13] : memref<1x128xf32, #tpu.memory_space<vmem>>, vector<1x128xf32>
    %13 = vector.broadcast %12 : vector<1x128xf32> to vector<16x128xf32>
    %14 = arith.addf %11, %13 : vector<16x128xf32>
    %c0_14 = arith.constant 0 : index
    %c0_15 = arith.constant 0 : index
    %15 = vector.load %arg7[%c0_14, %c0_15] : memref<16x128xf32, #tpu.memory_space<vmem>>, vector<16x128xf32>
    tpu.vector_store %arg7[%c0_14, %c0_15], %14 {strides = array<i32>} : memref<16x128xf32, #tpu.memory_space<vmem>>, vector<16x128xf32>,
    return
  }
  func.func @transform_0(%arg0: i32) -> (i32, i32) {
    %c0_i32 = arith.constant 0 : i32
    %c0_i32_0 = arith.constant 0 : i32
    return %arg0, %c0_i32 : i32, i32
  }
  func.func @transform_1(%arg0: i32) -> (i32, i32) {
    %c0_i32 = arith.constant 0 : i32
    %c0_i32_0 = arith.constant 0 : i32
    return %arg0, %c0_i32 : i32, i32
  }
  func.func @transform_2(%arg0: i32) -> (i32, i32) {
    %c0_i32 = arith.constant 0 : i32
    %c0_i32_0 = arith.constant 0 : i32
    return %arg0, %c0_i32 : i32, i32
  }
  func.func @transform_3(%arg0: i32) -> (i32, i32) {
    %c0_i32 = arith.constant 0 : i32
    %c0_i32_0 = arith.constant 0 : i32
    return %arg0, %c0_i32 : i32, i32
  }
  func.func @transform_4(%arg0: i32) -> (i32, i32) {
    %c0_i32 = arith.constant 0 : i32
    %c0_i32_0 = arith.constant 0 : i32
    %c0_i32_1 = arith.constant 0 : i32
    return %c0_i32, %c0_i32_0 : i32, i32
  }
  func.func @transform_5(%arg0: i32) -> (i32, i32) {
    %c0_i32 = arith.constant 0 : i32
    %c0_i32_0 = arith.constant 0 : i32
    %c0_i32_1 = arith.constant 0 : i32
    return %c0_i32, %c0_i32_0 : i32, i32
  }
  func.func @transform_6(%arg0: i32) -> (i32, i32) {
    %c0_i32 = arith.constant 0 : i32
    %c0_i32_0 = arith.constant 0 : i32
    return %arg0, %c0_i32 : i32, i32
  }
}

module attributes {stable_mosaic.version = 11 : i64} {
  func.func @_mlp_kernel(%arg0: memref<2x1024xbf16, #tpu.memory_space<vmem>>, %arg1: memref<1024x128xbf16, #tpu.memory_space<vmem>>, %arg2: memref<1x128xf32, #tpu.memory_space<vmem>>, %arg3: memref<128x128xbf16, #tpu.memory_space<vmem>>, %arg4: memref<1x128xf32, #tpu.memory_space<vmem>>, %arg5: memref<2x128xf32, #tpu.memory_space<vmem>>) attributes {dimension_semantics = [], scalar_prefetch = 0 : i64, scratch_operands = 0 : i64, tpu.core_type = #tpu.core_type<tc>} {
    %c0 = arith.constant 0 : index
    %c0_0 = arith.constant 0 : index
    %0 = vector.load %arg0[%c0, %c0_0] : memref<2x1024xbf16, #tpu.memory_space<vmem>>, vector<2x1024xbf16>
    %c0_1 = arith.constant 0 : index
    %c0_2 = arith.constant 0 : index
    %1 = vector.load %arg1[%c0_1, %c0_2] : memref<1024x128xbf16, #tpu.memory_space<vmem>>, vector<1024x128xbf16>
    %cst = arith.constant dense<0.000000e+00> : vector<2x128xf32>
    %2 = tpu.matmul %0, %1, %cst {dimension_numbers = #tpu.dot_dimension_numbers<[1], [0], [0], [1], [0, 0, 1, 1], [], []>} : vector<2x1024xbf16>, vector<1024x128xbf16>, vector<2x128xf32> -> vector<2x128xf32>
    %c0_3 = arith.constant 0 : index
    %c0_4 = arith.constant 0 : index
    %3 = vector.load %arg2[%c0_3, %c0_4] : memref<1x128xf32, #tpu.memory_space<vmem>>, vector<1x128xf32>
    %4 = vector.broadcast %3 : vector<1x128xf32> to vector<2x128xf32>
    %5 = arith.addf %2, %4 : vector<2x128xf32>
    %6 = arith.truncf %5 : vector<2x128xf32> to vector<2x128xbf16>
    %c0_5 = arith.constant 0 : index
    %c0_6 = arith.constant 0 : index
    %7 = vector.load %arg3[%c0_5, %c0_6] : memref<128x128xbf16, #tpu.memory_space<vmem>>, vector<128x128xbf16>
    %cst_7 = arith.constant dense<0.000000e+00> : vector<2x128xf32>
    %8 = tpu.matmul %6, %7, %cst_7 {dimension_numbers = #tpu.dot_dimension_numbers<[1], [0], [0], [1], [0, 0, 1, 1], [], []>} : vector<2x128xbf16>, vector<128x128xbf16>, vector<2x128xf32> -> vector<2x128xf32>
    %c0_8 = arith.constant 0 : index
    %c0_9 = arith.constant 0 : index
    %9 = vector.load %arg4[%c0_8, %c0_9] : memref<1x128xf32, #tpu.memory_space<vmem>>, vector<1x128xf32>
    %10 = vector.broadcast %9 : vector<1x128xf32> to vector<2x128xf32>
    %11 = arith.addf %8, %10 : vector<2x128xf32>
    %c0_10 = arith.constant 0 : index
    %c0_11 = arith.constant 0 : index
    %12 = vector.load %arg5[%c0_10, %c0_11] : memref<2x128xf32, #tpu.memory_space<vmem>>, vector<2x128xf32>
    tpu.vector_store %arg5[%c0_10, %c0_11], %11 {strides = array<i32>} : memref<2x128xf32, #tpu.memory_space<vmem>>, vector<2x128xf32>,
    return
  }
}

</mosaic_0001>

<llo_original>
// kernel: cifar10_forward.4
$region0: #{cifar10_forward.4}
  #allocation0 [shape = 'u32[]', space=smem, size = 0x4, offset = 0x4, fixed_abs, tag = 'smem constant byte address 0x4 - core index']
  #allocation1 [shape = 'u32[144,128]{1,0:T(1,128)}', space=vmem, size = 0x12000, scoped, tag = 'internal scratch']
  %s0 = inlined_call_operand.vmem [shape: bf16[512,128], index: 0, kind: input, shape index: {}]
  %s1 = inlined_call_operand.vmem [shape: bf16[512,128], index: 1, kind: input, shape index: {}]
  %s2 = inlined_call_operand.vmem [shape: bf16[512,128], index: 2, kind: input, shape index: {}]
  %s3 = inlined_call_operand.vmem [shape: bf16[512,128], index: 3, kind: input, shape index: {}]
  %s4 = inlined_call_operand.vmem [shape: bf16[128,128], index: 4, kind: input, shape index: {}]
  %s5 = inlined_call_operand.vmem [shape: f32[1,128], index: 5, kind: input, shape index: {}]
  %s6 = inlined_call_operand.vmem [shape: f32[512,128], index: 6, kind: output, shape index: {}]
  %s7 = sld [smem:[#allocation0]]
  $region57: #{cifar10_forward.4} parent=0
    _
  %s9 = ssub.s32 1, %s7
  %s10 = scalar_select 0, %s9, %s7
  loop: start=0, step=1, limit=4
  $region2: #{cifar10_forward.4} parent=0 // loop_pre_header
    _
  $region3: #{cifar10_forward.4} parent=0 // loop_header
    %s12 = sphi 0, %s16
    %p13 = scmp.ge.s32.totalorder %s12, 4
    %s22 = sphi 0, %s24
    %s25 = sphi 0, %s22
    %s26 = sphi 0, %s25
    %s42 = sphi 0, %s26
    %s48 = sphi 0, %s50
    %s51 = sphi 0, %s48
    %s52 = sphi 0, %s51
    %s68 = sphi 0, %s52
    %s74 = sphi 0, %s76
    %s77 = sphi 0, %s74
    %s78 = sphi 0, %s77
    %s94 = sphi 0, %s78
    %s100 = sphi 0, %s102
    %s103 = sphi 0, %s100
    %s104 = sphi 0, %s103
    %s120 = sphi 0, %s104
    %s124 = sphi 0, %s124
    %s126 = sphi 0, %s124
    %s127 = sphi 0, %s126
    %s141 = sphi 0, %s127
    %s145 = sphi 0, %s145
    %s147 = sphi 0, %s145
    %s148 = sphi 0, %s147
    %s162 = sphi 0, %s148
    %s168 = sphi 0, %s170
    %s171 = sphi 0, %s168
    %s172 = sphi 0, %s171
    %s188 = sphi 0, %s172
  $region4: #{cifar10_forward.4} parent=0 // loop_header_branch
    %15 = sbr.rel (%p13) target = $region8
  $region5: #{cifar10_forward.4} parent=0 // loop_body
    %s17 = ssub.s32 %s12, 1
    %s18 = ssub.s32 %s12, 2
    %s19 = sadd.s32 %s12, 1
    %s20 = ssub.s32 %s12, %s19
    %p21 = scmp.eq.s32.totalorder %s20, 0
    %s23 = sadd.s32 %s22, 1
    %s24 = scalar_select %p21, %s22, %s23
    %p27 = pneg %p21
    %p28 = scmp.eq.s32.totalorder %s12, 1
    %p29 = por %p27, %p28
    %p30 = scmp.ne.s32.totalorder %s22, %s25
    %p31 = scmp.eq.s32.totalorder %s12, 0
    %p32 = por %p30, %p31
    %p33 = scmp.ne.s32.totalorder %s22, %s25
    %p34 = scmp.eq.s32.totalorder %s17, 1
    %p35 = por %p33, %p34
    %p36 = scmp.ne.s32.totalorder %s25, %s26
    %p37 = scmp.eq.s32.totalorder %s17, 0
    %p38 = por %p36, %p37
    %p39 = scmp.ne.s32.totalorder %s25, %s26
    %p40 = scmp.eq.s32.totalorder %s18, 1
    %p41 = por %p39, %p40
    %p43 = scmp.ne.s32.totalorder %s26, %s42
    %p44 = scmp.eq.s32.totalorder %s18, 0
    %p45 = por %p43, %p44
    %s46 = ssub.s32 %s12, %s19
    %p47 = scmp.eq.s32.totalorder %s46, 0
    %s49 = sadd.s32 %s48, 1
    %s50 = scalar_select %p47, %s48, %s49
    %p53 = pneg %p47
    %p54 = scmp.eq.s32.totalorder %s12, 1
    %p55 = por %p53, %p54
    %p56 = scmp.ne.s32.totalorder %s48, %s51
    %p57 = scmp.eq.s32.totalorder %s12, 0
    %p58 = por %p56, %p57
    %p59 = scmp.ne.s32.totalorder %s48, %s51
    %p60 = scmp.eq.s32.totalorder %s17, 1
    %p61 = por %p59, %p60
    %p62 = scmp.ne.s32.totalorder %s51, %s52
    %p63 = scmp.eq.s32.totalorder %s17, 0
    %p64 = por %p62, %p63
    %p65 = scmp.ne.s32.totalorder %s51, %s52
    %p66 = scmp.eq.s32.totalorder %s18, 1
    %p67 = por %p65, %p66
    %p69 = scmp.ne.s32.totalorder %s52, %s68
    %p70 = scmp.eq.s32.totalorder %s18, 0
    %p71 = por %p69, %p70
    %s72 = ssub.s32 %s12, %s19
    %p73 = scmp.eq.s32.totalorder %s72, 0
    %s75 = sadd.s32 %s74, 1
    %s76 = scalar_select %p73, %s74, %s75
    %p79 = pneg %p73
    %p80 = scmp.eq.s32.totalorder %s12, 1
    %p81 = por %p79, %p80
    %p82 = scmp.ne.s32.totalorder %s74, %s77
    %p83 = scmp.eq.s32.totalorder %s12, 0
    %p84 = por %p82, %p83
    %p85 = scmp.ne.s32.totalorder %s74, %s77
    %p86 = scmp.eq.s32.totalorder %s17, 1
    %p87 = por %p85, %p86
    %p88 = scmp.ne.s32.totalorder %s77, %s78
    %p89 = scmp.eq.s32.totalorder %s17, 0
    %p90 = por %p88, %p89
    %p91 = scmp.ne.s32.totalorder %s77, %s78
    %p92 = scmp.eq.s32.totalorder %s18, 1
    %p93 = por %p91, %p92
    %p95 = scmp.ne.s32.totalorder %s78, %s94
    %p96 = scmp.eq.s32.totalorder %s18, 0
    %p97 = por %p95, %p96
    %s98 = ssub.s32 %s12, %s19
    %p99 = scmp.eq.s32.totalorder %s98, 0
    %s101 = sadd.s32 %s100, 1
    %s102 = scalar_select %p99, %s100, %s101
    %p105 = pneg %p99
    %p106 = scmp.eq.s32.totalorder %s12, 1
    %p107 = por %p105, %p106
    %p108 = scmp.ne.s32.totalorder %s100, %s103
    %p109 = scmp.eq.s32.totalorder %s12, 0
    %p110 = por %p108, %p109
    %p111 = scmp.ne.s32.totalorder %s100, %s103
    %p112 = scmp.eq.s32.totalorder %s17, 1
    %p113 = por %p111, %p112
    %p114 = scmp.ne.s32.totalorder %s103, %s104
    %p115 = scmp.eq.s32.totalorder %s17, 0
    %p116 = por %p114, %p115
    %p117 = scmp.ne.s32.totalorder %s103, %s104
    %p118 = scmp.eq.s32.totalorder %s18, 1
    %p119 = por %p117, %p118
    %p121 = scmp.ne.s32.totalorder %s104, %s120
    %p122 = scmp.eq.s32.totalorder %s18, 0
    %p123 = por %p121, %p122
    %s125 = sadd.s32 %s124, 1
    %p128 = scmp.eq.s32.totalorder %s12, 1
    %p129 = scmp.ne.s32.totalorder %s124, %s126
    %p130 = scmp.eq.s32.totalorder %s12, 0
    %p131 = por %p129, %p130
    %p132 = scmp.ne.s32.totalorder %s124, %s126
    %p133 = scmp.eq.s32.totalorder %s17, 1
    %p134 = por %p132, %p133
    %p135 = scmp.ne.s32.totalorder %s126, %s127
    %p136 = scmp.eq.s32.totalorder %s17, 0
    %p137 = por %p135, %p136
    %p138 = scmp.ne.s32.totalorder %s126, %s127
    %p139 = scmp.eq.s32.totalorder %s18, 1
    %p140 = por %p138, %p139
    %p142 = scmp.ne.s32.totalorder %s127, %s141
    %p143 = scmp.eq.s32.totalorder %s18, 0
    %p144 = por %p142, %p143
    %s146 = sadd.s32 %s145, 1
    %p149 = scmp.eq.s32.totalorder %s12, 1
    %p150 = scmp.ne.s32.totalorder %s145, %s147
    %p151 = scmp.eq.s32.totalorder %s12, 0
    %p152 = por %p150, %p151
    %p153 = scmp.ne.s32.totalorder %s145, %s147
    %p154 = scmp.eq.s32.totalorder %s17, 1
    %p155 = por %p153, %p154
    %p156 = scmp.ne.s32.totalorder %s147, %s148
    %p157 = scmp.eq.s32.totalorder %s17, 0
    %p158 = por %p156, %p157
    %p159 = scmp.ne.s32.totalorder %s147, %s148
    %p160 = scmp.eq.s32.totalorder %s18, 1
    %p161 = por %p159, %p160
    %p163 = scmp.ne.s32.totalorder %s148, %s162
    %p164 = scmp.eq.s32.totalorder %s18, 0
    %p165 = por %p163, %p164
    %s166 = ssub.s32 %s12, %s19
    %p167 = scmp.eq.s32.totalorder %s166, 0
    %s169 = sadd.s32 %s168, 1
    %s170 = scalar_select %p167, %s168, %s169
    %p173 = pneg %p167
    %p174 = scmp.eq.s32.totalorder %s12, 1
    %p175 = por %p173, %p174
    %p176 = scmp.ne.s32.totalorder %s168, %s171
    %p177 = scmp.eq.s32.totalorder %s12, 0
    %p178 = por %p176, %p177
    %p179 = scmp.ne.s32.totalorder %s168, %s171
    %p180 = scmp.eq.s32.totalorder %s17, 1
    %p181 = por %p179, %p180
    %p182 = scmp.ne.s32.totalorder %s171, %s172
    %p183 = scmp.eq.s32.totalorder %s17, 0
    %p184 = por %p182, %p183
    %p185 = scmp.ne.s32.totalorder %s171, %s172
    %p186 = scmp.eq.s32.totalorder %s18, 1
    %p187 = por %p185, %p186
    %p189 = scmp.ne.s32.totalorder %s172, %s188
    %p190 = scmp.eq.s32.totalorder %s18, 0
    %p191 = por %p189, %p190
    %p192 = scmp.le.s32.totalorder 1, %s12
    %p193 = scmp.lt.s32.totalorder %s12, 3
    %p194 = pnand %p192, %p193
    %p195 = pneg %p194
    // Predicated region
    $region9: #{cifar10_forward.4} parent=5 // pred_check
      _
    $region10: #{cifar10_forward.4} parent=5 // pred_check_branch
      %197 = sbr.rel (%p194) target = $region12
    $region11: #{cifar10_forward.4} parent=5 // pred_region
      %s198 = ssub.s32 %s12, 1
      // Predicated region
      $region13: #{cifar10_forward.4} parent=11 // pred_check
        %p199 = pneg %p137
      $region14: #{cifar10_forward.4} parent=11 // pred_check_branch
        %201 = sbr.rel (%p199) target = $region16
      $region15: #{cifar10_forward.4} parent=11 // pred_region
        _
      $region16: #{cifar10_forward.4} parent=11 // pred_fallthru
        _
      // Predicated region
      $region17: #{cifar10_forward.4} parent=11 // pred_check
        %p202 = pneg %p158
      $region18: #{cifar10_forward.4} parent=11 // pred_check_branch
        %204 = sbr.rel (%p202) target = $region20
      $region19: #{cifar10_forward.4} parent=11 // pred_region
        _
      $region20: #{cifar10_forward.4} parent=11 // pred_fallthru
        _
    $region12: #{cifar10_forward.4} parent=5 // pred_fallthru
      _
    %p205 = scmp.lt.s32.totalorder %s12, 2
    // Predicated region
    $region21: #{cifar10_forward.4} parent=5 // pred_check
      %p206 = pneg %p205
    $region22: #{cifar10_forward.4} parent=5 // pred_check_branch
      %208 = sbr.rel (%p206) target = $region24
    $region23: #{cifar10_forward.4} parent=5 // pred_region
      // Predicated region
      $region25: #{cifar10_forward.4} parent=23 // pred_check
        %p209 = pneg %p32
      $region26: #{cifar10_forward.4} parent=23 // pred_check_branch
        %211 = sbr.rel (%p209) target = $region28
      $region27: #{cifar10_forward.4} parent=23 // pred_region
        %s212 = smul.u32 32, %s12
        %p213 = scmp.lt.s32.totalorder %s212, 63
        %s214 = scalar_select %p213, %s212, 63
        %s215 = smul.addr %s214, 4
        %s216 = scalar_lea.vmem %s0, %s215
        %s217 = smul.u32 32, %s12
      $region28: #{cifar10_forward.4} parent=23 // pred_fallthru
        _
      // Predicated region
      $region29: #{cifar10_forward.4} parent=23 // pred_check
        %p218 = pneg %p58
      $region30: #{cifar10_forward.4} parent=23 // pred_check_branch
        %220 = sbr.rel (%p218) target = $region32
      $region31: #{cifar10_forward.4} parent=23 // pred_region
        %s221 = smul.u32 32, %s12
        %p222 = scmp.lt.s32.totalorder %s221, 63
        %s223 = scalar_select %p222, %s221, 63
        %s224 = smul.addr %s223, 4
        %s225 = scalar_lea.vmem %s1, %s224
        %s226 = smul.u32 32, %s12
      $region32: #{cifar10_forward.4} parent=23 // pred_fallthru
        _
      // Predicated region
      $region33: #{cifar10_forward.4} parent=23 // pred_check
        %p227 = pneg %p84
      $region34: #{cifar10_forward.4} parent=23 // pred_check_branch
        %229 = sbr.rel (%p227) target = $region36
      $region35: #{cifar10_forward.4} parent=23 // pred_region
        %s230 = smul.u32 32, %s12
        %p231 = scmp.lt.s32.totalorder %s230, 63
        %s232 = scalar_select %p231, %s230, 63
        %s233 = smul.addr %s232, 4
        %s234 = scalar_lea.vmem %s2, %s233
        %s235 = smul.u32 32, %s12
      $region36: #{cifar10_forward.4} parent=23 // pred_fallthru
        _
      // Predicated region
      $region37: #{cifar10_forward.4} parent=23 // pred_check
        %p236 = pneg %p110
      $region38: #{cifar10_forward.4} parent=23 // pred_check_branch
        %238 = sbr.rel (%p236) target = $region40
      $region39: #{cifar10_forward.4} parent=23 // pred_region
        %s239 = smul.u32 32, %s12
        %p240 = scmp.lt.s32.totalorder %s239, 63
        %s241 = scalar_select %p240, %s239, 63
        %s242 = smul.addr %s241, 4
        %s243 = scalar_lea.vmem %s3, %s242
        %s244 = smul.u32 32, %s12
      $region40: #{cifar10_forward.4} parent=23 // pred_fallthru
        _
    $region24: #{cifar10_forward.4} parent=5 // pred_fallthru
      _
    %p245 = scmp.le.s32.totalorder 1, %s12
    %p246 = scmp.lt.s32.totalorder %s12, 3
    %p247 = pnand %p245, %p246
    %p248 = pneg %p247
    // Predicated region
    $region41: #{cifar10_forward.4} parent=5 // pred_check
      _
    $region42: #{cifar10_forward.4} parent=5 // pred_check_branch
      %250 = sbr.rel (%p247) target = $region44
    $region43: #{cifar10_forward.4} parent=5 // pred_region
      %s251 = ssub.s32 %s12, 1
      %s252 = smul.u32 32, %s17
      %p253 = scmp.lt.s32.totalorder %s252, 63
      %s254 = scalar_select %p253, %s252, 63
      %s255 = smul.addr %s254, 4
      %s256 = scalar_lea.vmem %s0, %s255
      %p257 = pneg %p38
      %p258 = pneg %p35
      %s259 = smul.u32 32, %s17
      %p260 = scmp.lt.s32.totalorder %s259, 63
      %s261 = scalar_select %p260, %s259, 63
      %s262 = smul.addr %s261, 4
      %s263 = scalar_lea.vmem %s1, %s262
      %p264 = pneg %p64
      %p265 = pneg %p61
      %s266 = smul.u32 32, %s17
      %p267 = scmp.lt.s32.totalorder %s266, 63
      %s268 = scalar_select %p267, %s266, 63
      %s269 = smul.addr %s268, 4
      %s270 = scalar_lea.vmem %s2, %s269
      %p271 = pneg %p90
      %p272 = pneg %p87
      %s273 = smul.u32 32, %s17
      %p274 = scmp.lt.s32.totalorder %s273, 63
      %s275 = scalar_select %p274, %s273, 63
      %s276 = smul.addr %s275, 4
      %s277 = scalar_lea.vmem %s3, %s276
      %p278 = pneg %p116
      %p279 = pneg %p113
      %p280 = pneg %p137
      %p281 = pneg %p134
      %p282 = pneg %p158
      %p283 = pneg %p155
      %p284 = pneg %p184
      %p285 = pneg %p181
      %s286 = smul.u32 32, %s17
      %p287 = scmp.lt.s32.totalorder %s286, 63
      %s288 = scalar_select %p287, %s286, 63
      %s289 = smul.addr %s288, 8
      %s290 = scalar_lea.vmem %s6, %s289
      %s291 = smul.u32 32, %s17
      %p292 = scmp.lt.s32.totalorder %s291, 63
      %s293 = scalar_select %p292, %s291, 63
      %s294 = smul.addr %s293, 4
      %s295 = scalar_lea.vmem %s0, %s294
      %s296 = smul.u32 32, %s17
      %s297 = smul.u32 32, %s17
      %p298 = scmp.lt.s32.totalorder %s297, 63
      %s299 = scalar_select %p298, %s297, 63
      %s300 = smul.addr %s299, 4
      %s301 = scalar_lea.vmem %s1, %s300
      %s302 = smul.u32 32, %s17
      %s303 = smul.u32 32, %s17
      %p304 = scmp.lt.s32.totalorder %s303, 63
      %s305 = scalar_select %p304, %s303, 63
      %s306 = smul.addr %s305, 4
      %s307 = scalar_lea.vmem %s2, %s306
      %s308 = smul.u32 32, %s17
      %s309 = smul.u32 32, %s17
      %p310 = scmp.lt.s32.totalorder %s309, 63
      %s311 = scalar_select %p310, %s309, 63
      %s312 = smul.addr %s311, 4
      %s313 = scalar_lea.vmem %s3, %s312
      %s314 = smul.u32 32, %s17
      %s315 = smul.u32 32, %s17
      %p316 = scmp.lt.s32.totalorder %s315, 63
      %s317 = scalar_select %p316, %s315, 63
      %s318 = smul.addr %s317, 8
      %s319 = scalar_lea.vmem %s6, %s318
      %s320 = smul.u32 32, %s17
      %v322 = vld [vmem:[%s4] sm:$0xf]
      %v323 = vld [vmem:[%s4 + $0x4] sm:$0xf]
      %v324 = vld [vmem:[%s4 + $0x8] sm:$0xf]
      %v325 = vld [vmem:[%s4 + $0xc] sm:$0xf]
      %v326 = vld [vmem:[%s4 + $0x10] sm:$0xf]
      %v327 = vld [vmem:[%s4 + $0x14] sm:$0xf]
      %v328 = vld [vmem:[%s4 + $0x18] sm:$0xf]
      %v329 = vld [vmem:[%s4 + $0x1c] sm:$0xf]
      %v330 = vld [vmem:[%s4 + $0x20] sm:$0xf]
      %v331 = vld [vmem:[%s4 + $0x24] sm:$0xf]
      %v332 = vld [vmem:[%s4 + $0x28] sm:$0xf]
      %v333 = vld [vmem:[%s4 + $0x2c] sm:$0xf]
      %v334 = vld [vmem:[%s4 + $0x30] sm:$0xf]
      %v335 = vld [vmem:[%s4 + $0x34] sm:$0xf]
      %v336 = vld [vmem:[%s4 + $0x38] sm:$0xf]
      %v337 = vld [vmem:[%s4 + $0x3c] sm:$0xf]
      %v338 = vld [vmem:[%s295] sm:$0xf]
      %v339 = vld [vmem:[%s295 + $0x4] sm:$0xf]
      %v340 = vld [vmem:[%s295 + $0x8] sm:$0xf]
      %v341 = vld [vmem:[%s295 + $0xc] sm:$0xf]
      %v342 = vld [vmem:[%s295 + $0x10] sm:$0xf]
      %v343 = vld [vmem:[%s295 + $0x14] sm:$0xf]
      %v344 = vld [vmem:[%s295 + $0x18] sm:$0xf]
      %v345 = vld [vmem:[%s295 + $0x1c] sm:$0xf]
      %v346 = vld [vmem:[%s295 + $0x20] sm:$0xf]
      %v347 = vld [vmem:[%s295 + $0x24] sm:$0xf]
      %v348 = vld [vmem:[%s295 + $0x28] sm:$0xf]
      %v349 = vld [vmem:[%s295 + $0x2c] sm:$0xf]
      %v350 = vld [vmem:[%s295 + $0x30] sm:$0xf]
      %v351 = vld [vmem:[%s295 + $0x34] sm:$0xf]
      %v352 = vld [vmem:[%s295 + $0x38] sm:$0xf]
      %v353 = vld [vmem:[%s295 + $0x3c] sm:$0xf]
      %v354 = vld [vmem:[%s295 + $0x40] sm:$0xf]
      %v355 = vld [vmem:[%s295 + $0x44] sm:$0xf]
      %v356 = vld [vmem:[%s295 + $0x48] sm:$0xf]
      %v357 = vld [vmem:[%s295 + $0x4c] sm:$0xf]
      %v358 = vld [vmem:[%s295 + $0x50] sm:$0xf]
      %v359 = vld [vmem:[%s295 + $0x54] sm:$0xf]
      %v360 = vld [vmem:[%s295 + $0x58] sm:$0xf]
      %v361 = vld [vmem:[%s295 + $0x5c] sm:$0xf]
      %v362 = vld [vmem:[%s295 + $0x60] sm:$0xf]
      %v363 = vld [vmem:[%s295 + $0x64] sm:$0xf]
      %v364 = vld [vmem:[%s295 + $0x68] sm:$0xf]
      %v365 = vld [vmem:[%s295 + $0x6c] sm:$0xf]
      %v366 = vld [vmem:[%s295 + $0x70] sm:$0xf]
      %v367 = vld [vmem:[%s295 + $0x74] sm:$0xf]
      %v368 = vld [vmem:[%s295 + $0x78] sm:$0xf]
      %v369 = vld [vmem:[%s295 + $0x7c] sm:$0xf]
      %v402 = vunpack.c.l.b16 %v338
      %v403 = vunpack.c.l.b16 %v339
      %v404 = vunpack.c.l.b16 %v340
      %v405 = vunpack.c.l.b16 %v341
      %v406 = vunpack.c.l.b16 %v342
      %v407 = vunpack.c.l.b16 %v343
      %v408 = vunpack.c.l.b16 %v344
      %v409 = vunpack.c.l.b16 %v345
      %v410 = vunpack.c.l.b16 %v346
      %v411 = vunpack.c.l.b16 %v347
      %v412 = vunpack.c.l.b16 %v348
      %v413 = vunpack.c.l.b16 %v349
      %v414 = vunpack.c.l.b16 %v350
      %v415 = vunpack.c.l.b16 %v351
      %v416 = vunpack.c.l.b16 %v352
      %v417 = vunpack.c.l.b16 %v353
      %v418 = vunpack.c.l.b16 %v354
      %v419 = vunpack.c.l.b16 %v355
      %v420 = vunpack.c.l.b16 %v356
      %v421 = vunpack.c.l.b16 %v357
      %v422 = vunpack.c.l.b16 %v358
      %v423 = vunpack.c.l.b16 %v359
      %v424 = vunpack.c.l.b16 %v360
      %v425 = vunpack.c.l.b16 %v361
      %v426 = vunpack.c.l.b16 %v362
      %v427 = vunpack.c.l.b16 %v363
      %v428 = vunpack.c.l.b16 %v364
      %v429 = vunpack.c.l.b16 %v365
      %v430 = vunpack.c.l.b16 %v366
      %v431 = vunpack.c.l.b16 %v367
      %v432 = vunpack.c.l.b16 %v368
      %v433 = vunpack.c.l.b16 %v369
      %v434 = vpack.c.b16 %v403, %v402
      %v435 = vpack.c.b16 %v405, %v404
      %v436 = vpack.c.b16 %v407, %v406
      %v437 = vpack.c.b16 %v409, %v408
      %v438 = vpack.c.b16 %v411, %v410
      %v439 = vpack.c.b16 %v413, %v412
      %v440 = vpack.c.b16 %v415, %v414
      %v441 = vpack.c.b16 %v417, %v416
      %v442 = vpack.c.b16 %v419, %v418
      %v443 = vpack.c.b16 %v421, %v420
      %v444 = vpack.c.b16 %v423, %v422
      %v445 = vpack.c.b16 %v425, %v424
      %v446 = vpack.c.b16 %v427, %v426
      %v447 = vpack.c.b16 %v429, %v428
      %v448 = vpack.c.b16 %v431, %v430
      %v449 = vpack.c.b16 %v433, %v432
      %v482 = vunpack.c.l.b16 %v322
      %v483 = vunpack.c.l.b16 %v323
      %v484 = vunpack.c.l.b16 %v324
      %v485 = vunpack.c.l.b16 %v325
      %v486 = vunpack.c.l.b16 %v326
      %v487 = vunpack.c.l.b16 %v327
      %v488 = vunpack.c.l.b16 %v328
      %v489 = vunpack.c.l.b16 %v329
      %v490 = vunpack.c.l.b16 %v330
      %v491 = vunpack.c.l.b16 %v331
      %v492 = vunpack.c.l.b16 %v332
      %v493 = vunpack.c.l.b16 %v333
      %v494 = vunpack.c.l.b16 %v334
      %v495 = vunpack.c.l.b16 %v335
      %v496 = vunpack.c.l.b16 %v336
      %v497 = vunpack.c.l.b16 %v337
      %v498 = vpack.c.b16 %v483, %v482
      %v499 = vpack.c.b16 %v485, %v484
      %v500 = vpack.c.b16 %v487, %v486
      %v501 = vpack.c.b16 %v489, %v488
      %v502 = vpack.c.b16 %v491, %v490
      %v503 = vpack.c.b16 %v493, %v492
      %v504 = vpack.c.b16 %v495, %v494
      %v505 = vpack.c.b16 %v497, %v496
      %514 = vmatprep.subr.bf16.mxu0 0
      %515 = vmatpush1.bf16.msra.mxu0 %v505
      %516 = vmatprep.subr.bf16.mxu0 0
      %517 = vmatpush1.bf16.msra.mxu0 %v504
      %518 = vmatprep.subr.bf16.mxu0 0
      %519 = vmatpush1.bf16.msra.mxu0 %v503
      %520 = vmatprep.subr.bf16.mxu0 0
      %521 = vmatpush1.bf16.msra.mxu0 %v502
      %522 = vmatprep.subr.bf16.mxu0 0
      %523 = vmatpush1.bf16.msra.mxu0 %v501
      %524 = vmatprep.subr.bf16.mxu0 0
      %525 = vmatpush1.bf16.msra.mxu0 %v500
      %526 = vmatprep.subr.bf16.mxu0 0
      %527 = vmatpush1.bf16.msra.mxu0 %v499
      %528 = vmatprep.subr.bf16.mxu0 0
      %529 = vmatpush1.bf16.msra.mxu0 %v498
      %530 = vmatprep.subr.bf16.mxu0 0
      %531 = vmatpush2.bf16.msra.mxu0 0
      %532 = vmatprep.subr.bf16.mxu0 0
      %533 = vmatpush2.bf16.msra.mxu0 0
      %534 = vmatprep.subr.bf16.mxu0 0
      %535 = vmatpush2.bf16.msra.mxu0 0
      %536 = vmatprep.subr.bf16.mxu0 0
      %537 = vmatpush2.bf16.msra.mxu0 0
      %538 = vmatprep.subr.bf16.mxu0 0
      %539 = vmatpush2.bf16.msra.mxu0 0
      %540 = vmatprep.subr.bf16.mxu0 0
      %541 = vmatpush2.bf16.msra.mxu0 0
      %542 = vmatprep.subr.bf16.mxu0 0
      %543 = vmatpush2.bf16.msra.mxu0 0
      %544 = vmatprep.subr.bf16.mxu0 0
      %545 = vmatpush2.bf16.msra.mxu0 0
      %546 = vmatprep.mubr.bf16.mxu0 0
      %547 = vmatmul.mubr.bf16.gmra.mxu0 %v434
      %v548 = vpop.f32.mrf.mxu0
      %v549 = vadd.f32 0.0, %v548
      %v550 = vpop.f32.mrf.mxu0
      %v551 = vpop.f32.mrf.mxu0
      %v552 = vadd.f32 0.0, %v551
      %v553 = vpop.f32.mrf.mxu0
      %554 = vmatprep.mubr.bf16.mxu0 0
      %555 = vmatmul.mubr.bf16.gmra.mxu0 %v435
      %v556 = vpop.f32.mrf.mxu0
      %v557 = vadd.f32 0.0, %v556
      %v558 = vpop.f32.mrf.mxu0
      %v559 = vpop.f32.mrf.mxu0
      %v560 = vadd.f32 0.0, %v559
      %v561 = vpop.f32.mrf.mxu0
      %562 = vmatprep.mubr.bf16.mxu0 0
      %563 = vmatmul.mubr.bf16.gmra.mxu0 %v436
      %v564 = vpop.f32.mrf.mxu0
      %v565 = vadd.f32 0.0, %v564
      %v566 = vpop.f32.mrf.mxu0
      %v567 = vpop.f32.mrf.mxu0
      %v568 = vadd.f32 0.0, %v567
      %v569 = vpop.f32.mrf.mxu0
      %570 = vmatprep.mubr.bf16.mxu0 0
      %571 = vmatmul.mubr.bf16.gmra.mxu0 %v437
      %v572 = vpop.f32.mrf.mxu0
      %v573 = vadd.f32 0.0, %v572
      %v574 = vpop.f32.mrf.mxu0
      %v575 = vpop.f32.mrf.mxu0
      %v576 = vadd.f32 0.0, %v575
      %v577 = vpop.f32.mrf.mxu0
      %578 = vmatprep.mubr.bf16.mxu0 0
      %579 = vmatmul.mubr.bf16.gmra.mxu0 %v438
      %v580 = vpop.f32.mrf.mxu0
      %v581 = vadd.f32 0.0, %v580
      %v582 = vpop.f32.mrf.mxu0
      %v583 = vpop.f32.mrf.mxu0
      %v584 = vadd.f32 0.0, %v583
      %v585 = vpop.f32.mrf.mxu0
      %586 = vmatprep.mubr.bf16.mxu0 0
      %587 = vmatmul.mubr.bf16.gmra.mxu0 %v439
      %v588 = vpop.f32.mrf.mxu0
      %v589 = vadd.f32 0.0, %v588
      %v590 = vpop.f32.mrf.mxu0
      %v591 = vpop.f32.mrf.mxu0
      %v592 = vadd.f32 0.0, %v591
      %v593 = vpop.f32.mrf.mxu0
      %594 = vmatprep.mubr.bf16.mxu0 0
      %595 = vmatmul.mubr.bf16.gmra.mxu0 %v440
      %v596 = vpop.f32.mrf.mxu0
      %v597 = vadd.f32 0.0, %v596
      %v598 = vpop.f32.mrf.mxu0
      %v599 = vpop.f32.mrf.mxu0
      %v600 = vadd.f32 0.0, %v599
      %v601 = vpop.f32.mrf.mxu0
      %602 = vmatprep.mubr.bf16.mxu0 0
      %603 = vmatmul.mubr.bf16.gmra.mxu0 %v441
      %v604 = vpop.f32.mrf.mxu0
      %v605 = vadd.f32 0.0, %v604
      %v606 = vpop.f32.mrf.mxu0
      %v607 = vpop.f32.mrf.mxu0
      %v608 = vadd.f32 0.0, %v607
      %v609 = vpop.f32.mrf.mxu0
      %610 = vmatprep.mubr.bf16.mxu0 0
      %611 = vmatmul.mubr.bf16.gmra.mxu0 %v442
      %v612 = vpop.f32.mrf.mxu0
      %v613 = vadd.f32 0.0, %v612
      %v614 = vpop.f32.mrf.mxu0
      %v615 = vpop.f32.mrf.mxu0
      %v616 = vadd.f32 0.0, %v615
      %v617 = vpop.f32.mrf.mxu0
      %618 = vmatprep.mubr.bf16.mxu0 0
      %619 = vmatmul.mubr.bf16.gmra.mxu0 %v443
      %v620 = vpop.f32.mrf.mxu0
      %v621 = vadd.f32 0.0, %v620
      %v622 = vpop.f32.mrf.mxu0
      %v623 = vpop.f32.mrf.mxu0
      %v624 = vadd.f32 0.0, %v623
      %v625 = vpop.f32.mrf.mxu0
      %626 = vmatprep.mubr.bf16.mxu0 0
      %627 = vmatmul.mubr.bf16.gmra.mxu0 %v444
      %v628 = vpop.f32.mrf.mxu0
      %v629 = vadd.f32 0.0, %v628
      %v630 = vpop.f32.mrf.mxu0
      %v631 = vpop.f32.mrf.mxu0
      %v632 = vadd.f32 0.0, %v631
      %v633 = vpop.f32.mrf.mxu0
      %634 = vmatprep.mubr.bf16.mxu0 0
      %635 = vmatmul.mubr.bf16.gmra.mxu0 %v445
      %v636 = vpop.f32.mrf.mxu0
      %v637 = vadd.f32 0.0, %v636
      %v638 = vpop.f32.mrf.mxu0
      %v639 = vpop.f32.mrf.mxu0
      %v640 = vadd.f32 0.0, %v639
      %v641 = vpop.f32.mrf.mxu0
      %642 = vmatprep.mubr.bf16.mxu0 0
      %643 = vmatmul.mubr.bf16.gmra.mxu0 %v446
      %v644 = vpop.f32.mrf.mxu0
      %v645 = vadd.f32 0.0, %v644
      %v646 = vpop.f32.mrf.mxu0
      %v647 = vpop.f32.mrf.mxu0
      %v648 = vadd.f32 0.0, %v647
      %v649 = vpop.f32.mrf.mxu0
      %650 = vmatprep.mubr.bf16.mxu0 0
      %651 = vmatmul.mubr.bf16.gmra.mxu0 %v447
      %v652 = vpop.f32.mrf.mxu0
      %v653 = vadd.f32 0.0, %v652
      %v654 = vpop.f32.mrf.mxu0
      %v655 = vpop.f32.mrf.mxu0
      %v656 = vadd.f32 0.0, %v655
      %v657 = vpop.f32.mrf.mxu0
      %658 = vmatprep.mubr.bf16.mxu0 0
      %659 = vmatmul.mubr.bf16.gmra.mxu0 %v448
      %v660 = vpop.f32.mrf.mxu0
      %v661 = vadd.f32 0.0, %v660
      %v662 = vpop.f32.mrf.mxu0
      %v663 = vpop.f32.mrf.mxu0
      %v664 = vadd.f32 0.0, %v663
      %v665 = vpop.f32.mrf.mxu0
      %666 = vmatprep.mubr.bf16.mxu0 0
      %667 = vmatmul.mubr.bf16.gmra.mxu0 %v449
      %v668 = vpop.f32.mrf.mxu0
      %v669 = vadd.f32 0.0, %v668
      %v670 = vpop.f32.mrf.mxu0
      %v671 = vpop.f32.mrf.mxu0
      %v672 = vadd.f32 0.0, %v671
      %v673 = vpop.f32.mrf.mxu0
      %674 = vdwg.mxu0
      %v675 = vld [vmem:[%s301] sm:$0xf]
      %v676 = vld [vmem:[%s301 + $0x4] sm:$0xf]
      %v677 = vld [vmem:[%s301 + $0x8] sm:$0xf]
      %v678 = vld [vmem:[%s301 + $0xc] sm:$0xf]
      %v679 = vld [vmem:[%s301 + $0x10] sm:$0xf]
      %v680 = vld [vmem:[%s301 + $0x14] sm:$0xf]
      %v681 = vld [vmem:[%s301 + $0x18] sm:$0xf]
      %v682 = vld [vmem:[%s301 + $0x1c] sm:$0xf]
      %v683 = vld [vmem:[%s301 + $0x20] sm:$0xf]
      %v684 = vld [vmem:[%s301 + $0x24] sm:$0xf]
      %v685 = vld [vmem:[%s301 + $0x28] sm:$0xf]
      %v686 = vld [vmem:[%s301 + $0x2c] sm:$0xf]
      %v687 = vld [vmem:[%s301 + $0x30] sm:$0xf]
      %v688 = vld [vmem:[%s301 + $0x34] sm:$0xf]
      %v689 = vld [vmem:[%s301 + $0x38] sm:$0xf]
      %v690 = vld [vmem:[%s301 + $0x3c] sm:$0xf]
      %v691 = vld [vmem:[%s301 + $0x40] sm:$0xf]
      %v692 = vld [vmem:[%s301 + $0x44] sm:$0xf]
      %v693 = vld [vmem:[%s301 + $0x48] sm:$0xf]
      %v694 = vld [vmem:[%s301 + $0x4c] sm:$0xf]
      %v695 = vld [vmem:[%s301 + $0x50] sm:$0xf]
      %v696 = vld [vmem:[%s301 + $0x54] sm:$0xf]
      %v697 = vld [vmem:[%s301 + $0x58] sm:$0xf]
      %v698 = vld [vmem:[%s301 + $0x5c] sm:$0xf]
      %v699 = vld [vmem:[%s301 + $0x60] sm:$0xf]
      %v700 = vld [vmem:[%s301 + $0x64] sm:$0xf]
      %v701 = vld [vmem:[%s301 + $0x68] sm:$0xf]
      %v702 = vld [vmem:[%s301 + $0x6c] sm:$0xf]
      %v703 = vld [vmem:[%s301 + $0x70] sm:$0xf]
      %v704 = vld [vmem:[%s301 + $0x74] sm:$0xf]
      %v705 = vld [vmem:[%s301 + $0x78] sm:$0xf]
      %v706 = vld [vmem:[%s301 + $0x7c] sm:$0xf]
      %v739 = vunpack.c.l.b16 %v675
      %v740 = vunpack.c.l.b16 %v676
      %v741 = vunpack.c.l.b16 %v677
      %v742 = vunpack.c.l.b16 %v678
      %v743 = vunpack.c.l.b16 %v679
      %v744 = vunpack.c.l.b16 %v680
      %v745 = vunpack.c.l.b16 %v681
      %v746 = vunpack.c.l.b16 %v682
      %v747 = vunpack.c.l.b16 %v683
      %v748 = vunpack.c.l.b16 %v684
      %v749 = vunpack.c.l.b16 %v685
      %v750 = vunpack.c.l.b16 %v686
      %v751 = vunpack.c.l.b16 %v687
      %v752 = vunpack.c.l.b16 %v688
      %v753 = vunpack.c.l.b16 %v689
      %v754 = vunpack.c.l.b16 %v690
      %v755 = vunpack.c.l.b16 %v691
      %v756 = vunpack.c.l.b16 %v692
      %v757 = vunpack.c.l.b16 %v693
      %v758 = vunpack.c.l.b16 %v694
      %v759 = vunpack.c.l.b16 %v695
      %v760 = vunpack.c.l.b16 %v696
      %v761 = vunpack.c.l.b16 %v697
      %v762 = vunpack.c.l.b16 %v698
      %v763 = vunpack.c.l.b16 %v699
      %v764 = vunpack.c.l.b16 %v700
      %v765 = vunpack.c.l.b16 %v701
      %v766 = vunpack.c.l.b16 %v702
      %v767 = vunpack.c.l.b16 %v703
      %v768 = vunpack.c.l.b16 %v704
      %v769 = vunpack.c.l.b16 %v705
      %v770 = vunpack.c.l.b16 %v706
      %v771 = vpack.c.b16 %v740, %v739
      %v772 = vpack.c.b16 %v742, %v741
      %v773 = vpack.c.b16 %v744, %v743
      %v774 = vpack.c.b16 %v746, %v745
      %v775 = vpack.c.b16 %v748, %v747
      %v776 = vpack.c.b16 %v750, %v749
      %v777 = vpack.c.b16 %v752, %v751
      %v778 = vpack.c.b16 %v754, %v753
      %v779 = vpack.c.b16 %v756, %v755
      %v780 = vpack.c.b16 %v758, %v757
      %v781 = vpack.c.b16 %v760, %v759
      %v782 = vpack.c.b16 %v762, %v761
      %v783 = vpack.c.b16 %v764, %v763
      %v784 = vpack.c.b16 %v766, %v765
      %v785 = vpack.c.b16 %v768, %v767
      %v786 = vpack.c.b16 %v770, %v769
      %803 = vmatprep.subr.bf16.mxu0 0
      %804 = vmatpush1.bf16.msra.mxu0 %v505
      %805 = vmatprep.subr.bf16.mxu0 0
      %806 = vmatpush1.bf16.msra.mxu0 %v504
      %807 = vmatprep.subr.bf16.mxu0 0
      %808 = vmatpush1.bf16.msra.mxu0 %v503
      %809 = vmatprep.subr.bf16.mxu0 0
      %810 = vmatpush1.bf16.msra.mxu0 %v502
      %811 = vmatprep.subr.bf16.mxu0 0
      %812 = vmatpush1.bf16.msra.mxu0 %v501
      %813 = vmatprep.subr.bf16.mxu0 0
      %814 = vmatpush1.bf16.msra.mxu0 %v500
      %815 = vmatprep.subr.bf16.mxu0 0
      %816 = vmatpush1.bf16.msra.mxu0 %v499
      %817 = vmatprep.subr.bf16.mxu0 0
      %818 = vmatpush1.bf16.msra.mxu0 %v498
      %819 = vmatprep.subr.bf16.mxu0 0
      %820 = vmatpush2.bf16.msra.mxu0 0
      %821 = vmatprep.subr.bf16.mxu0 0
      %822 = vmatpush2.bf16.msra.mxu0 0
      %823 = vmatprep.subr.bf16.mxu0 0
      %824 = vmatpush2.bf16.msra.mxu0 0
      %825 = vmatprep.subr.bf16.mxu0 0
      %826 = vmatpush2.bf16.msra.mxu0 0
      %827 = vmatprep.subr.bf16.mxu0 0
      %828 = vmatpush2.bf16.msra.mxu0 0
      %829 = vmatprep.subr.bf16.mxu0 0
      %830 = vmatpush2.bf16.msra.mxu0 0
      %831 = vmatprep.subr.bf16.mxu0 0
      %832 = vmatpush2.bf16.msra.mxu0 0
      %833 = vmatprep.subr.bf16.mxu0 0
      %834 = vmatpush2.bf16.msra.mxu0 0
      %835 = vmatprep.mubr.bf16.mxu0 0
      %836 = vmatmul.mubr.bf16.gmra.mxu0 %v771
      %v837 = vpop.f32.mrf.mxu0
      %v838 = vadd.f32 0.0, %v837
      %v839 = vpop.f32.mrf.mxu0
      %v840 = vpop.f32.mrf.mxu0
      %v841 = vadd.f32 0.0, %v840
      %v842 = vpop.f32.mrf.mxu0
      %843 = vmatprep.mubr.bf16.mxu0 0
      %844 = vmatmul.mubr.bf16.gmra.mxu0 %v772
      %v845 = vpop.f32.mrf.mxu0
      %v846 = vadd.f32 0.0, %v845
      %v847 = vpop.f32.mrf.mxu0
      %v848 = vpop.f32.mrf.mxu0
      %v849 = vadd.f32 0.0, %v848
      %v850 = vpop.f32.mrf.mxu0
      %851 = vmatprep.mubr.bf16.mxu0 0
      %852 = vmatmul.mubr.bf16.gmra.mxu0 %v773
      %v853 = vpop.f32.mrf.mxu0
      %v854 = vadd.f32 0.0, %v853
      %v855 = vpop.f32.mrf.mxu0
      %v856 = vpop.f32.mrf.mxu0
      %v857 = vadd.f32 0.0, %v856
      %v858 = vpop.f32.mrf.mxu0
      %859 = vmatprep.mubr.bf16.mxu0 0
      %860 = vmatmul.mubr.bf16.gmra.mxu0 %v774
      %v861 = vpop.f32.mrf.mxu0
      %v862 = vadd.f32 0.0, %v861
      %v863 = vpop.f32.mrf.mxu0
      %v864 = vpop.f32.mrf.mxu0
      %v865 = vadd.f32 0.0, %v864
      %v866 = vpop.f32.mrf.mxu0
      %867 = vmatprep.mubr.bf16.mxu0 0
      %868 = vmatmul.mubr.bf16.gmra.mxu0 %v775
      %v869 = vpop.f32.mrf.mxu0
      %v870 = vadd.f32 0.0, %v869
      %v871 = vpop.f32.mrf.mxu0
      %v872 = vpop.f32.mrf.mxu0
      %v873 = vadd.f32 0.0, %v872
      %v874 = vpop.f32.mrf.mxu0
      %875 = vmatprep.mubr.bf16.mxu0 0
      %876 = vmatmul.mubr.bf16.gmra.mxu0 %v776
      %v877 = vpop.f32.mrf.mxu0
      %v878 = vadd.f32 0.0, %v877
      %v879 = vpop.f32.mrf.mxu0
      %v880 = vpop.f32.mrf.mxu0
      %v881 = vadd.f32 0.0, %v880
      %v882 = vpop.f32.mrf.mxu0
      %883 = vmatprep.mubr.bf16.mxu0 0
      %884 = vmatmul.mubr.bf16.gmra.mxu0 %v777
      %v885 = vpop.f32.mrf.mxu0
      %v886 = vadd.f32 0.0, %v885
      %v887 = vpop.f32.mrf.mxu0
      %v888 = vpop.f32.mrf.mxu0
      %v889 = vadd.f32 0.0, %v888
      %v890 = vpop.f32.mrf.mxu0
      %891 = vmatprep.mubr.bf16.mxu0 0
      %892 = vmatmul.mubr.bf16.gmra.mxu0 %v778
      %v893 = vpop.f32.mrf.mxu0
      %v894 = vadd.f32 0.0, %v893
      %v895 = vpop.f32.mrf.mxu0
      %v896 = vpop.f32.mrf.mxu0
      %v897 = vadd.f32 0.0, %v896
      %v898 = vpop.f32.mrf.mxu0
      %899 = vmatprep.mubr.bf16.mxu0 0
      %900 = vmatmul.mubr.bf16.gmra.mxu0 %v779
      %v901 = vpop.f32.mrf.mxu0
      %v902 = vadd.f32 0.0, %v901
      %v903 = vpop.f32.mrf.mxu0
      %v904 = vpop.f32.mrf.mxu0
      %v905 = vadd.f32 0.0, %v904
      %v906 = vpop.f32.mrf.mxu0
      %907 = vmatprep.mubr.bf16.mxu0 0
      %908 = vmatmul.mubr.bf16.gmra.mxu0 %v780
      %v909 = vpop.f32.mrf.mxu0
      %v910 = vadd.f32 0.0, %v909
      %v911 = vpop.f32.mrf.mxu0
      %v912 = vpop.f32.mrf.mxu0
      %v913 = vadd.f32 0.0, %v912
      %v914 = vpop.f32.mrf.mxu0
      %915 = vmatprep.mubr.bf16.mxu0 0
      %916 = vmatmul.mubr.bf16.gmra.mxu0 %v781
      %v917 = vpop.f32.mrf.mxu0
      %v918 = vadd.f32 0.0, %v917
      %v919 = vpop.f32.mrf.mxu0
      %v920 = vpop.f32.mrf.mxu0
      %v921 = vadd.f32 0.0, %v920
      %v922 = vpop.f32.mrf.mxu0
      %923 = vmatprep.mubr.bf16.mxu0 0
      %924 = vmatmul.mubr.bf16.gmra.mxu0 %v782
      %v925 = vpop.f32.mrf.mxu0
      %v926 = vadd.f32 0.0, %v925
      %v927 = vpop.f32.mrf.mxu0
      %v928 = vpop.f32.mrf.mxu0
      %v929 = vadd.f32 0.0, %v928
      %v930 = vpop.f32.mrf.mxu0
      %931 = vmatprep.mubr.bf16.mxu0 0
      %932 = vmatmul.mubr.bf16.gmra.mxu0 %v783
      %v933 = vpop.f32.mrf.mxu0
      %v934 = vadd.f32 0.0, %v933
      %v935 = vpop.f32.mrf.mxu0
      %v936 = vpop.f32.mrf.mxu0
      %v937 = vadd.f32 0.0, %v936
      %v938 = vpop.f32.mrf.mxu0
      %939 = vmatprep.mubr.bf16.mxu0 0
      %940 = vmatmul.mubr.bf16.gmra.mxu0 %v784
      %v941 = vpop.f32.mrf.mxu0
      %v942 = vadd.f32 0.0, %v941
      %v943 = vpop.f32.mrf.mxu0
      %v944 = vpop.f32.mrf.mxu0
      %v945 = vadd.f32 0.0, %v944
      %v946 = vpop.f32.mrf.mxu0
      %947 = vmatprep.mubr.bf16.mxu0 0
      %948 = vmatmul.mubr.bf16.gmra.mxu0 %v785
      %v949 = vpop.f32.mrf.mxu0
      %v950 = vadd.f32 0.0, %v949
      %v951 = vpop.f32.mrf.mxu0
      %v952 = vpop.f32.mrf.mxu0
      %v953 = vadd.f32 0.0, %v952
      %v954 = vpop.f32.mrf.mxu0
      %955 = vmatprep.mubr.bf16.mxu0 0
      %956 = vmatmul.mubr.bf16.gmra.mxu0 %v786
      %v957 = vpop.f32.mrf.mxu0
      %v958 = vadd.f32 0.0, %v957
      %v959 = vpop.f32.mrf.mxu0
      %v960 = vpop.f32.mrf.mxu0
      %v961 = vadd.f32 0.0, %v960
      %v962 = vpop.f32.mrf.mxu0
      %963 = vdwg.mxu0
      %v964 = vld [vmem:[%s307] sm:$0xf]
      %v965 = vld [vmem:[%s307 + $0x4] sm:$0xf]
      %v966 = vld [vmem:[%s307 + $0x8] sm:$0xf]
      %v967 = vld [vmem:[%s307 + $0xc] sm:$0xf]
      %v968 = vld [vmem:[%s307 + $0x10] sm:$0xf]
      %v969 = vld [vmem:[%s307 + $0x14] sm:$0xf]
      %v970 = vld [vmem:[%s307 + $0x18] sm:$0xf]
      %v971 = vld [vmem:[%s307 + $0x1c] sm:$0xf]
      %v972 = vld [vmem:[%s307 + $0x20] sm:$0xf]
      %v973 = vld [vmem:[%s307 + $0x24] sm:$0xf]
      %v974 = vld [vmem:[%s307 + $0x28] sm:$0xf]
      %v975 = vld [vmem:[%s307 + $0x2c] sm:$0xf]
      %v976 = vld [vmem:[%s307 + $0x30] sm:$0xf]
      %v977 = vld [vmem:[%s307 + $0x34] sm:$0xf]
      %v978 = vld [vmem:[%s307 + $0x38] sm:$0xf]
      %v979 = vld [vmem:[%s307 + $0x3c] sm:$0xf]
      %v980 = vld [vmem:[%s307 + $0x40] sm:$0xf]
      %v981 = vld [vmem:[%s307 + $0x44] sm:$0xf]
      %v982 = vld [vmem:[%s307 + $0x48] sm:$0xf]
      %v983 = vld [vmem:[%s307 + $0x4c] sm:$0xf]
      %v984 = vld [vmem:[%s307 + $0x50] sm:$0xf]
      %v985 = vld [vmem:[%s307 + $0x54] sm:$0xf]
      %v986 = vld [vmem:[%s307 + $0x58] sm:$0xf]
      %v987 = vld [vmem:[%s307 + $0x5c] sm:$0xf]
      %v988 = vld [vmem:[%s307 + $0x60] sm:$0xf]
      %v989 = vld [vmem:[%s307 + $0x64] sm:$0xf]
      %v990 = vld [vmem:[%s307 + $0x68] sm:$0xf]
      %v991 = vld [vmem:[%s307 + $0x6c] sm:$0xf]
      %v992 = vld [vmem:[%s307 + $0x70] sm:$0xf]
      %v993 = vld [vmem:[%s307 + $0x74] sm:$0xf]
      %v994 = vld [vmem:[%s307 + $0x78] sm:$0xf]
      %v995 = vld [vmem:[%s307 + $0x7c] sm:$0xf]
      %v1028 = vunpack.c.l.b16 %v964
      %v1029 = vunpack.c.l.b16 %v965
      %v1030 = vunpack.c.l.b16 %v966
      %v1031 = vunpack.c.l.b16 %v967
      %v1032 = vunpack.c.l.b16 %v968
      %v1033 = vunpack.c.l.b16 %v969
      %v1034 = vunpack.c.l.b16 %v970
      %v1035 = vunpack.c.l.b16 %v971
      %v1036 = vunpack.c.l.b16 %v972
      %v1037 = vunpack.c.l.b16 %v973
      %v1038 = vunpack.c.l.b16 %v974
      %v1039 = vunpack.c.l.b16 %v975
      %v1040 = vunpack.c.l.b16 %v976
      %v1041 = vunpack.c.l.b16 %v977
      %v1042 = vunpack.c.l.b16 %v978
      %v1043 = vunpack.c.l.b16 %v979
      %v1044 = vunpack.c.l.b16 %v980
      %v1045 = vunpack.c.l.b16 %v981
      %v1046 = vunpack.c.l.b16 %v982
      %v1047 = vunpack.c.l.b16 %v983
      %v1048 = vunpack.c.l.b16 %v984
      %v1049 = vunpack.c.l.b16 %v985
      %v1050 = vunpack.c.l.b16 %v986
      %v1051 = vunpack.c.l.b16 %v987
      %v1052 = vunpack.c.l.b16 %v988
      %v1053 = vunpack.c.l.b16 %v989
      %v1054 = vunpack.c.l.b16 %v990
      %v1055 = vunpack.c.l.b16 %v991
      %v1056 = vunpack.c.l.b16 %v992
      %v1057 = vunpack.c.l.b16 %v993
      %v1058 = vunpack.c.l.b16 %v994
      %v1059 = vunpack.c.l.b16 %v995
      %v1060 = vpack.c.b16 %v1029, %v1028
      %v1061 = vpack.c.b16 %v1031, %v1030
      %v1062 = vpack.c.b16 %v1033, %v1032
      %v1063 = vpack.c.b16 %v1035, %v1034
      %v1064 = vpack.c.b16 %v1037, %v1036
      %v1065 = vpack.c.b16 %v1039, %v1038
      %v1066 = vpack.c.b16 %v1041, %v1040
      %v1067 = vpack.c.b16 %v1043, %v1042
      %v1068 = vpack.c.b16 %v1045, %v1044
      %v1069 = vpack.c.b16 %v1047, %v1046
      %v1070 = vpack.c.b16 %v1049, %v1048
      %v1071 = vpack.c.b16 %v1051, %v1050
      %v1072 = vpack.c.b16 %v1053, %v1052
      %v1073 = vpack.c.b16 %v1055, %v1054
      %v1074 = vpack.c.b16 %v1057, %v1056
      %v1075 = vpack.c.b16 %v1059, %v1058
      %1092 = vmatprep.subr.bf16.mxu0 0
      %1093 = vmatpush1.bf16.msra.mxu0 %v505
      %1094 = vmatprep.subr.bf16.mxu0 0
      %1095 = vmatpush1.bf16.msra.mxu0 %v504
      %1096 = vmatprep.subr.bf16.mxu0 0
      %1097 = vmatpush1.bf16.msra.mxu0 %v503
      %1098 = vmatprep.subr.bf16.mxu0 0
      %1099 = vmatpush1.bf16.msra.mxu0 %v502
      %1100 = vmatprep.subr.bf16.mxu0 0
      %1101 = vmatpush1.bf16.msra.mxu0 %v501
      %1102 = vmatprep.subr.bf16.mxu0 0
      %1103 = vmatpush1.bf16.msra.mxu0 %v500
      %1104 = vmatprep.subr.bf16.mxu0 0
      %1105 = vmatpush1.bf16.msra.mxu0 %v499
      %1106 = vmatprep.subr.bf16.mxu0 0
      %1107 = vmatpush1.bf16.msra.mxu0 %v498
      %1108 = vmatprep.subr.bf16.mxu0 0
      %1109 = vmatpush2.bf16.msra.mxu0 0
      %1110 = vmatprep.subr.bf16.mxu0 0
      %1111 = vmatpush2.bf16.msra.mxu0 0
      %1112 = vmatprep.subr.bf16.mxu0 0
      %1113 = vmatpush2.bf16.msra.mxu0 0
      %1114 = vmatprep.subr.bf16.mxu0 0
      %1115 = vmatpush2.bf16.msra.mxu0 0
      %1116 = vmatprep.subr.bf16.mxu0 0
      %1117 = vmatpush2.bf16.msra.mxu0 0
      %1118 = vmatprep.subr.bf16.mxu0 0
      %1119 = vmatpush2.bf16.msra.mxu0 0
      %1120 = vmatprep.subr.bf16.mxu0 0
      %1121 = vmatpush2.bf16.msra.mxu0 0
      %1122 = vmatprep.subr.bf16.mxu0 0
      %1123 = vmatpush2.bf16.msra.mxu0 0
      %1124 = vmatprep.mubr.bf16.mxu0 0
      %1125 = vmatmul.mubr.bf16.gmra.mxu0 %v1060
      %v1126 = vpop.f32.mrf.mxu0
      %v1127 = vadd.f32 0.0, %v1126
      %v1128 = vpop.f32.mrf.mxu0
      %v1129 = vpop.f32.mrf.mxu0
      %v1130 = vadd.f32 0.0, %v1129
      %v1131 = vpop.f32.mrf.mxu0
      %1132 = vmatprep.mubr.bf16.mxu0 0
      %1133 = vmatmul.mubr.bf16.gmra.mxu0 %v1061
      %v1134 = vpop.f32.mrf.mxu0
      %v1135 = vadd.f32 0.0, %v1134
      %v1136 = vpop.f32.mrf.mxu0
      %v1137 = vpop.f32.mrf.mxu0
      %v1138 = vadd.f32 0.0, %v1137
      %v1139 = vpop.f32.mrf.mxu0
      %1140 = vmatprep.mubr.bf16.mxu0 0
      %1141 = vmatmul.mubr.bf16.gmra.mxu0 %v1062
      %v1142 = vpop.f32.mrf.mxu0
      %v1143 = vadd.f32 0.0, %v1142
      %v1144 = vpop.f32.mrf.mxu0
      %v1145 = vpop.f32.mrf.mxu0
      %v1146 = vadd.f32 0.0, %v1145
      %v1147 = vpop.f32.mrf.mxu0
      %1148 = vmatprep.mubr.bf16.mxu0 0
      %1149 = vmatmul.mubr.bf16.gmra.mxu0 %v1063
      %v1150 = vpop.f32.mrf.mxu0
      %v1151 = vadd.f32 0.0, %v1150
      %v1152 = vpop.f32.mrf.mxu0
      %v1153 = vpop.f32.mrf.mxu0
      %v1154 = vadd.f32 0.0, %v1153
      %v1155 = vpop.f32.mrf.mxu0
      %1156 = vmatprep.mubr.bf16.mxu0 0
      %1157 = vmatmul.mubr.bf16.gmra.mxu0 %v1064
      %v1158 = vpop.f32.mrf.mxu0
      %v1159 = vadd.f32 0.0, %v1158
      %v1160 = vpop.f32.mrf.mxu0
      %v1161 = vpop.f32.mrf.mxu0
      %v1162 = vadd.f32 0.0, %v1161
      %v1163 = vpop.f32.mrf.mxu0
      %1164 = vmatprep.mubr.bf16.mxu0 0
      %1165 = vmatmul.mubr.bf16.gmra.mxu0 %v1065
      %v1166 = vpop.f32.mrf.mxu0
      %v1167 = vadd.f32 0.0, %v1166
      %v1168 = vpop.f32.mrf.mxu0
      %v1169 = vpop.f32.mrf.mxu0
      %v1170 = vadd.f32 0.0, %v1169
      %v1171 = vpop.f32.mrf.mxu0
      %1172 = vmatprep.mubr.bf16.mxu0 0
      %1173 = vmatmul.mubr.bf16.gmra.mxu0 %v1066
      %v1174 = vpop.f32.mrf.mxu0
      %v1175 = vadd.f32 0.0, %v1174
      %v1176 = vpop.f32.mrf.mxu0
      %v1177 = vpop.f32.mrf.mxu0
      %v1178 = vadd.f32 0.0, %v1177
      %v1179 = vpop.f32.mrf.mxu0
      %1180 = vmatprep.mubr.bf16.mxu0 0
      %1181 = vmatmul.mubr.bf16.gmra.mxu0 %v1067
      %v1182 = vpop.f32.mrf.mxu0
      %v1183 = vadd.f32 0.0, %v1182
      %v1184 = vpop.f32.mrf.mxu0
      %v1185 = vpop.f32.mrf.mxu0
      %v1186 = vadd.f32 0.0, %v1185
      %v1187 = vpop.f32.mrf.mxu0
      %1188 = vmatprep.mubr.bf16.mxu0 0
      %1189 = vmatmul.mubr.bf16.gmra.mxu0 %v1068
      %v1190 = vpop.f32.mrf.mxu0
      %v1191 = vadd.f32 0.0, %v1190
      %v1192 = vpop.f32.mrf.mxu0
      %v1193 = vpop.f32.mrf.mxu0
      %v1194 = vadd.f32 0.0, %v1193
      %v1195 = vpop.f32.mrf.mxu0
      %1196 = vmatprep.mubr.bf16.mxu0 0
      %1197 = vmatmul.mubr.bf16.gmra.mxu0 %v1069
      %v1198 = vpop.f32.mrf.mxu0
      %v1199 = vadd.f32 0.0, %v1198
      %v1200 = vpop.f32.mrf.mxu0
      %v1201 = vpop.f32.mrf.mxu0
      %v1202 = vadd.f32 0.0, %v1201
      %v1203 = vpop.f32.mrf.mxu0
      %1204 = vmatprep.mubr.bf16.mxu0 0
      %1205 = vmatmul.mubr.bf16.gmra.mxu0 %v1070
      %v1206 = vpop.f32.mrf.mxu0
      %v1207 = vadd.f32 0.0, %v1206
      %v1208 = vpop.f32.mrf.mxu0
      %v1209 = vpop.f32.mrf.mxu0
      %v1210 = vadd.f32 0.0, %v1209
      %v1211 = vpop.f32.mrf.mxu0
      %1212 = vmatprep.mubr.bf16.mxu0 0
      %1213 = vmatmul.mubr.bf16.gmra.mxu0 %v1071
      %v1214 = vpop.f32.mrf.mxu0
      %v1215 = vadd.f32 0.0, %v1214
      %v1216 = vpop.f32.mrf.mxu0
      %v1217 = vpop.f32.mrf.mxu0
      %v1218 = vadd.f32 0.0, %v1217
      %v1219 = vpop.f32.mrf.mxu0
      %1220 = vmatprep.mubr.bf16.mxu0 0
      %1221 = vmatmul.mubr.bf16.gmra.mxu0 %v1072
      %v1222 = vpop.f32.mrf.mxu0
      %v1223 = vadd.f32 0.0, %v1222
      %v1224 = vpop.f32.mrf.mxu0
      %v1225 = vpop.f32.mrf.mxu0
      %v1226 = vadd.f32 0.0, %v1225
      %v1227 = vpop.f32.mrf.mxu0
      %1228 = vmatprep.mubr.bf16.mxu0 0
      %1229 = vmatmul.mubr.bf16.gmra.mxu0 %v1073
      %v1230 = vpop.f32.mrf.mxu0
      %v1231 = vadd.f32 0.0, %v1230
      %v1232 = vpop.f32.mrf.mxu0
      %v1233 = vpop.f32.mrf.mxu0
      %v1234 = vadd.f32 0.0, %v1233
      %v1235 = vpop.f32.mrf.mxu0
      %1236 = vmatprep.mubr.bf16.mxu0 0
      %1237 = vmatmul.mubr.bf16.gmra.mxu0 %v1074
      %v1238 = vpop.f32.mrf.mxu0
      %v1239 = vadd.f32 0.0, %v1238
      %v1240 = vpop.f32.mrf.mxu0
      %v1241 = vpop.f32.mrf.mxu0
      %v1242 = vadd.f32 0.0, %v1241
      %v1243 = vpop.f32.mrf.mxu0
      %1244 = vmatprep.mubr.bf16.mxu0 0
      %1245 = vmatmul.mubr.bf16.gmra.mxu0 %v1075
      %v1246 = vpop.f32.mrf.mxu0
      %v1247 = vadd.f32 0.0, %v1246
      %v1248 = vpop.f32.mrf.mxu0
      %v1249 = vpop.f32.mrf.mxu0
      %v1250 = vadd.f32 0.0, %v1249
      %v1251 = vpop.f32.mrf.mxu0
      %1252 = vdwg.mxu0
      %v1253 = vld [vmem:[%s313] sm:$0xf]
      %v1254 = vld [vmem:[%s313 + $0x4] sm:$0xf]
      %v1255 = vld [vmem:[%s313 + $0x8] sm:$0xf]
      %v1256 = vld [vmem:[%s313 + $0xc] sm:$0xf]
      %v1257 = vld [vmem:[%s313 + $0x10] sm:$0xf]
      %v1258 = vld [vmem:[%s313 + $0x14] sm:$0xf]
      %v1259 = vld [vmem:[%s313 + $0x18] sm:$0xf]
      %v1260 = vld [vmem:[%s313 + $0x1c] sm:$0xf]
      %v1261 = vld [vmem:[%s313 + $0x20] sm:$0xf]
      %v1262 = vld [vmem:[%s313 + $0x24] sm:$0xf]
      %v1263 = vld [vmem:[%s313 + $0x28] sm:$0xf]
      %v1264 = vld [vmem:[%s313 + $0x2c] sm:$0xf]
      %v1265 = vld [vmem:[%s313 + $0x30] sm:$0xf]
      %v1266 = vld [vmem:[%s313 + $0x34] sm:$0xf]
      %v1267 = vld [vmem:[%s313 + $0x38] sm:$0xf]
      %v1268 = vld [vmem:[%s313 + $0x3c] sm:$0xf]
      %v1269 = vld [vmem:[%s313 + $0x40] sm:$0xf]
      %v1270 = vld [vmem:[%s313 + $0x44] sm:$0xf]
      %v1271 = vld [vmem:[%s313 + $0x48] sm:$0xf]
      %v1272 = vld [vmem:[%s313 + $0x4c] sm:$0xf]
      %v1273 = vld [vmem:[%s313 + $0x50] sm:$0xf]
      %v1274 = vld [vmem:[%s313 + $0x54] sm:$0xf]
      %v1275 = vld [vmem:[%s313 + $0x58] sm:$0xf]
      %v1276 = vld [vmem:[%s313 + $0x5c] sm:$0xf]
      %v1277 = vld [vmem:[%s313 + $0x60] sm:$0xf]
      %v1278 = vld [vmem:[%s313 + $0x64] sm:$0xf]
      %v1279 = vld [vmem:[%s313 + $0x68] sm:$0xf]
      %v1280 = vld [vmem:[%s313 + $0x6c] sm:$0xf]
      %v1281 = vld [vmem:[%s313 + $0x70] sm:$0xf]
      %v1282 = vld [vmem:[%s313 + $0x74] sm:$0xf]
      %v1283 = vld [vmem:[%s313 + $0x78] sm:$0xf]
      %v1284 = vld [vmem:[%s313 + $0x7c] sm:$0xf]
      %v1317 = vunpack.c.l.b16 %v1253
      %v1318 = vunpack.c.l.b16 %v1254
      %v1319 = vunpack.c.l.b16 %v1255
      %v1320 = vunpack.c.l.b16 %v1256
      %v1321 = vunpack.c.l.b16 %v1257
      %v1322 = vunpack.c.l.b16 %v1258
      %v1323 = vunpack.c.l.b16 %v1259
      %v1324 = vunpack.c.l.b16 %v1260
      %v1325 = vunpack.c.l.b16 %v1261
      %v1326 = vunpack.c.l.b16 %v1262
      %v1327 = vunpack.c.l.b16 %v1263
      %v1328 = vunpack.c.l.b16 %v1264
      %v1329 = vunpack.c.l.b16 %v1265
      %v1330 = vunpack.c.l.b16 %v1266
      %v1331 = vunpack.c.l.b16 %v1267
      %v1332 = vunpack.c.l.b16 %v1268
      %v1333 = vunpack.c.l.b16 %v1269
      %v1334 = vunpack.c.l.b16 %v1270
      %v1335 = vunpack.c.l.b16 %v1271
      %v1336 = vunpack.c.l.b16 %v1272
      %v1337 = vunpack.c.l.b16 %v1273
      %v1338 = vunpack.c.l.b16 %v1274
      %v1339 = vunpack.c.l.b16 %v1275
      %v1340 = vunpack.c.l.b16 %v1276
      %v1341 = vunpack.c.l.b16 %v1277
      %v1342 = vunpack.c.l.b16 %v1278
      %v1343 = vunpack.c.l.b16 %v1279
      %v1344 = vunpack.c.l.b16 %v1280
      %v1345 = vunpack.c.l.b16 %v1281
      %v1346 = vunpack.c.l.b16 %v1282
      %v1347 = vunpack.c.l.b16 %v1283
      %v1348 = vunpack.c.l.b16 %v1284
      %v1349 = vpack.c.b16 %v1318, %v1317
      %v1350 = vpack.c.b16 %v1320, %v1319
      %v1351 = vpack.c.b16 %v1322, %v1321
      %v1352 = vpack.c.b16 %v1324, %v1323
      %v1353 = vpack.c.b16 %v1326, %v1325
      %v1354 = vpack.c.b16 %v1328, %v1327
      %v1355 = vpack.c.b16 %v1330, %v1329
      %v1356 = vpack.c.b16 %v1332, %v1331
      %v1357 = vpack.c.b16 %v1334, %v1333
      %v1358 = vpack.c.b16 %v1336, %v1335
      %v1359 = vpack.c.b16 %v1338, %v1337
      %v1360 = vpack.c.b16 %v1340, %v1339
      %v1361 = vpack.c.b16 %v1342, %v1341
      %v1362 = vpack.c.b16 %v1344, %v1343
      %v1363 = vpack.c.b16 %v1346, %v1345
      %v1364 = vpack.c.b16 %v1348, %v1347
      %1381 = vmatprep.subr.bf16.mxu0 0
      %1382 = vmatpush1.bf16.msra.mxu0 %v505
      %1383 = vmatprep.subr.bf16.mxu0 0
      %1384 = vmatpush1.bf16.msra.mxu0 %v504
      %1385 = vmatprep.subr.bf16.mxu0 0
      %1386 = vmatpush1.bf16.msra.mxu0 %v503
      %1387 = vmatprep.subr.bf16.mxu0 0
      %1388 = vmatpush1.bf16.msra.mxu0 %v502
      %1389 = vmatprep.subr.bf16.mxu0 0
      %1390 = vmatpush1.bf16.msra.mxu0 %v501
      %1391 = vmatprep.subr.bf16.mxu0 0
      %1392 = vmatpush1.bf16.msra.mxu0 %v500
      %1393 = vmatprep.subr.bf16.mxu0 0
      %1394 = vmatpush1.bf16.msra.mxu0 %v499
      %1395 = vmatprep.subr.bf16.mxu0 0
      %1396 = vmatpush1.bf16.msra.mxu0 %v498
      %1397 = vmatprep.subr.bf16.mxu0 0
      %1398 = vmatpush2.bf16.msra.mxu0 0
      %1399 = vmatprep.subr.bf16.mxu0 0
      %1400 = vmatpush2.bf16.msra.mxu0 0
      %1401 = vmatprep.subr.bf16.mxu0 0
      %1402 = vmatpush2.bf16.msra.mxu0 0
      %1403 = vmatprep.subr.bf16.mxu0 0
      %1404 = vmatpush2.bf16.msra.mxu0 0
      %1405 = vmatprep.subr.bf16.mxu0 0
      %1406 = vmatpush2.bf16.msra.mxu0 0
      %1407 = vmatprep.subr.bf16.mxu0 0
      %1408 = vmatpush2.bf16.msra.mxu0 0
      %1409 = vmatprep.subr.bf16.mxu0 0
      %1410 = vmatpush2.bf16.msra.mxu0 0
      %1411 = vmatprep.subr.bf16.mxu0 0
      %1412 = vmatpush2.bf16.msra.mxu0 0
      %1413 = vmatprep.mubr.bf16.mxu0 0
      %1414 = vmatmul.mubr.bf16.gmra.mxu0 %v1349
      %v1415 = vpop.f32.mrf.mxu0
      %v1416 = vadd.f32 0.0, %v1415
      %v1417 = vpop.f32.mrf.mxu0
      %v1418 = vpop.f32.mrf.mxu0
      %v1419 = vadd.f32 0.0, %v1418
      %v1420 = vpop.f32.mrf.mxu0
      %1421 = vmatprep.mubr.bf16.mxu0 0
      %1422 = vmatmul.mubr.bf16.gmra.mxu0 %v1350
      %v1423 = vpop.f32.mrf.mxu0
      %v1424 = vadd.f32 0.0, %v1423
      %v1425 = vpop.f32.mrf.mxu0
      %v1426 = vpop.f32.mrf.mxu0
      %v1427 = vadd.f32 0.0, %v1426
      %v1428 = vpop.f32.mrf.mxu0
      %1429 = vmatprep.mubr.bf16.mxu0 0
      %1430 = vmatmul.mubr.bf16.gmra.mxu0 %v1351
      %v1431 = vpop.f32.mrf.mxu0
      %v1432 = vadd.f32 0.0, %v1431
      %v1433 = vpop.f32.mrf.mxu0
      %v1434 = vpop.f32.mrf.mxu0
      %v1435 = vadd.f32 0.0, %v1434
      %v1436 = vpop.f32.mrf.mxu0
      %1437 = vmatprep.mubr.bf16.mxu0 0
      %1438 = vmatmul.mubr.bf16.gmra.mxu0 %v1352
      %v1439 = vpop.f32.mrf.mxu0
      %v1440 = vadd.f32 0.0, %v1439
      %v1441 = vpop.f32.mrf.mxu0
      %v1442 = vpop.f32.mrf.mxu0
      %v1443 = vadd.f32 0.0, %v1442
      %v1444 = vpop.f32.mrf.mxu0
      %1445 = vmatprep.mubr.bf16.mxu0 0
      %1446 = vmatmul.mubr.bf16.gmra.mxu0 %v1353
      %v1447 = vpop.f32.mrf.mxu0
      %v1448 = vadd.f32 0.0, %v1447
      %v1449 = vpop.f32.mrf.mxu0
      %v1450 = vpop.f32.mrf.mxu0
      %v1451 = vadd.f32 0.0, %v1450
      %v1452 = vpop.f32.mrf.mxu0
      %1453 = vmatprep.mubr.bf16.mxu0 0
      %1454 = vmatmul.mubr.bf16.gmra.mxu0 %v1354
      %v1455 = vpop.f32.mrf.mxu0
      %v1456 = vadd.f32 0.0, %v1455
      %v1457 = vpop.f32.mrf.mxu0
      %v1458 = vpop.f32.mrf.mxu0
      %v1459 = vadd.f32 0.0, %v1458
      %v1460 = vpop.f32.mrf.mxu0
      %1461 = vmatprep.mubr.bf16.mxu0 0
      %1462 = vmatmul.mubr.bf16.gmra.mxu0 %v1355
      %v1463 = vpop.f32.mrf.mxu0
      %v1464 = vadd.f32 0.0, %v1463
      %v1465 = vpop.f32.mrf.mxu0
      %v1466 = vpop.f32.mrf.mxu0
      %v1467 = vadd.f32 0.0, %v1466
      %v1468 = vpop.f32.mrf.mxu0
      %1469 = vmatprep.mubr.bf16.mxu0 0
      %1470 = vmatmul.mubr.bf16.gmra.mxu0 %v1356
      %v1471 = vpop.f32.mrf.mxu0
      %v1472 = vadd.f32 0.0, %v1471
      %v1473 = vpop.f32.mrf.mxu0
      %v1474 = vpop.f32.mrf.mxu0
      %v1475 = vadd.f32 0.0, %v1474
      %v1476 = vpop.f32.mrf.mxu0
      %1477 = vmatprep.mubr.bf16.mxu0 0
      %1478 = vmatmul.mubr.bf16.gmra.mxu0 %v1357
      %v1479 = vpop.f32.mrf.mxu0
      %v1480 = vadd.f32 0.0, %v1479
      %v1481 = vpop.f32.mrf.mxu0
      %v1482 = vpop.f32.mrf.mxu0
      %v1483 = vadd.f32 0.0, %v1482
      %v1484 = vpop.f32.mrf.mxu0
      %1485 = vmatprep.mubr.bf16.mxu0 0
      %1486 = vmatmul.mubr.bf16.gmra.mxu0 %v1358
      %v1487 = vpop.f32.mrf.mxu0
      %v1488 = vadd.f32 0.0, %v1487
      %v1489 = vpop.f32.mrf.mxu0
      %v1490 = vpop.f32.mrf.mxu0
      %v1491 = vadd.f32 0.0, %v1490
      %v1492 = vpop.f32.mrf.mxu0
      %1493 = vmatprep.mubr.bf16.mxu0 0
      %1494 = vmatmul.mubr.bf16.gmra.mxu0 %v1359
      %v1495 = vpop.f32.mrf.mxu0
      %v1496 = vadd.f32 0.0, %v1495
      %v1497 = vpop.f32.mrf.mxu0
      %v1498 = vpop.f32.mrf.mxu0
      %v1499 = vadd.f32 0.0, %v1498
      %v1500 = vpop.f32.mrf.mxu0
      %1501 = vmatprep.mubr.bf16.mxu0 0
      %1502 = vmatmul.mubr.bf16.gmra.mxu0 %v1360
      %v1503 = vpop.f32.mrf.mxu0
      %v1504 = vadd.f32 0.0, %v1503
      %v1505 = vpop.f32.mrf.mxu0
      %v1506 = vpop.f32.mrf.mxu0
      %v1507 = vadd.f32 0.0, %v1506
      %v1508 = vpop.f32.mrf.mxu0
      %1509 = vmatprep.mubr.bf16.mxu0 0
      %1510 = vmatmul.mubr.bf16.gmra.mxu0 %v1361
      %v1511 = vpop.f32.mrf.mxu0
      %v1512 = vadd.f32 0.0, %v1511
      %v1513 = vpop.f32.mrf.mxu0
      %v1514 = vpop.f32.mrf.mxu0
      %v1515 = vadd.f32 0.0, %v1514
      %v1516 = vpop.f32.mrf.mxu0
      %1517 = vmatprep.mubr.bf16.mxu0 0
      %1518 = vmatmul.mubr.bf16.gmra.mxu0 %v1362
      %v1519 = vpop.f32.mrf.mxu0
      %v1520 = vadd.f32 0.0, %v1519
      %v1521 = vpop.f32.mrf.mxu0
      %v1522 = vpop.f32.mrf.mxu0
      %v1523 = vadd.f32 0.0, %v1522
      %v1524 = vpop.f32.mrf.mxu0
      %1525 = vmatprep.mubr.bf16.mxu0 0
      %1526 = vmatmul.mubr.bf16.gmra.mxu0 %v1363
      %v1527 = vpop.f32.mrf.mxu0
      %v1528 = vadd.f32 0.0, %v1527
      %v1529 = vpop.f32.mrf.mxu0
      %v1530 = vpop.f32.mrf.mxu0
      %v1531 = vadd.f32 0.0, %v1530
      %v1532 = vpop.f32.mrf.mxu0
      %1533 = vmatprep.mubr.bf16.mxu0 0
      %1534 = vmatmul.mubr.bf16.gmra.mxu0 %v1364
      %v1535 = vpop.f32.mrf.mxu0
      %v1536 = vadd.f32 0.0, %v1535
      %v1537 = vpop.f32.mrf.mxu0
      %v1538 = vpop.f32.mrf.mxu0
      %v1539 = vadd.f32 0.0, %v1538
      %v1540 = vpop.f32.mrf.mxu0
      %1541 = vdwg.mxu0
      %v1542 = vmax.f32 %v549, %v838
      %v1543 = vmax.f32 %v552, %v841
      %v1544 = vmax.f32 %v557, %v846
      %v1545 = vmax.f32 %v560, %v849
      %v1546 = vmax.f32 %v565, %v854
      %v1547 = vmax.f32 %v568, %v857
      %v1548 = vmax.f32 %v573, %v862
      %v1549 = vmax.f32 %v576, %v865
      %v1550 = vmax.f32 %v581, %v870
      %v1551 = vmax.f32 %v584, %v873
      %v1552 = vmax.f32 %v589, %v878
      %v1553 = vmax.f32 %v592, %v881
      %v1554 = vmax.f32 %v597, %v886
      %v1555 = vmax.f32 %v600, %v889
      %v1556 = vmax.f32 %v605, %v894
      %v1557 = vmax.f32 %v608, %v897
      %v1558 = vmax.f32 %v613, %v902
      %v1559 = vmax.f32 %v616, %v905
      %v1560 = vmax.f32 %v621, %v910
      %v1561 = vmax.f32 %v624, %v913
      %v1562 = vmax.f32 %v629, %v918
      %v1563 = vmax.f32 %v632, %v921
      %v1564 = vmax.f32 %v637, %v926
      %v1565 = vmax.f32 %v640, %v929
      %v1566 = vmax.f32 %v645, %v934
      %v1567 = vmax.f32 %v648, %v937
      %v1568 = vmax.f32 %v653, %v942
      %v1569 = vmax.f32 %v656, %v945
      %v1570 = vmax.f32 %v661, %v950
      %v1571 = vmax.f32 %v664, %v953
      %v1572 = vmax.f32 %v669, %v958
      %v1573 = vmax.f32 %v672, %v961
      %v1574 = vmax.f32 %v1127, %v1416
      %v1575 = vmax.f32 %v1130, %v1419
      %v1576 = vmax.f32 %v1135, %v1424
      %v1577 = vmax.f32 %v1138, %v1427
      %v1578 = vmax.f32 %v1143, %v1432
      %v1579 = vmax.f32 %v1146, %v1435
      %v1580 = vmax.f32 %v1151, %v1440
      %v1581 = vmax.f32 %v1154, %v1443
      %v1582 = vmax.f32 %v1159, %v1448
      %v1583 = vmax.f32 %v1162, %v1451
      %v1584 = vmax.f32 %v1167, %v1456
      %v1585 = vmax.f32 %v1170, %v1459
      %v1586 = vmax.f32 %v1175, %v1464
      %v1587 = vmax.f32 %v1178, %v1467
      %v1588 = vmax.f32 %v1183, %v1472
      %v1589 = vmax.f32 %v1186, %v1475
      %v1590 = vmax.f32 %v1191, %v1480
      %v1591 = vmax.f32 %v1194, %v1483
      %v1592 = vmax.f32 %v1199, %v1488
      %v1593 = vmax.f32 %v1202, %v1491
      %v1594 = vmax.f32 %v1207, %v1496
      %v1595 = vmax.f32 %v1210, %v1499
      %v1596 = vmax.f32 %v1215, %v1504
      %v1597 = vmax.f32 %v1218, %v1507
      %v1598 = vmax.f32 %v1223, %v1512
      %v1599 = vmax.f32 %v1226, %v1515
      %v1600 = vmax.f32 %v1231, %v1520
      %v1601 = vmax.f32 %v1234, %v1523
      %v1602 = vmax.f32 %v1239, %v1528
      %v1603 = vmax.f32 %v1242, %v1531
      %v1604 = vmax.f32 %v1247, %v1536
      %v1605 = vmax.f32 %v1250, %v1539
      %v1606 = vmax.f32 %v1542, %v1574
      %v1607 = vmax.f32 %v1543, %v1575
      %v1608 = vmax.f32 %v1544, %v1576
      %v1609 = vmax.f32 %v1545, %v1577
      %v1610 = vmax.f32 %v1546, %v1578
      %v1611 = vmax.f32 %v1547, %v1579
      %v1612 = vmax.f32 %v1548, %v1580
      %v1613 = vmax.f32 %v1549, %v1581
      %v1614 = vmax.f32 %v1550, %v1582
      %v1615 = vmax.f32 %v1551, %v1583
      %v1616 = vmax.f32 %v1552, %v1584
      %v1617 = vmax.f32 %v1553, %v1585
      %v1618 = vmax.f32 %v1554, %v1586
      %v1619 = vmax.f32 %v1555, %v1587
      %v1620 = vmax.f32 %v1556, %v1588
      %v1621 = vmax.f32 %v1557, %v1589
      %v1622 = vmax.f32 %v1558, %v1590
      %v1623 = vmax.f32 %v1559, %v1591
      %v1624 = vmax.f32 %v1560, %v1592
      %v1625 = vmax.f32 %v1561, %v1593
      %v1626 = vmax.f32 %v1562, %v1594
      %v1627 = vmax.f32 %v1563, %v1595
      %v1628 = vmax.f32 %v1564, %v1596
      %v1629 = vmax.f32 %v1565, %v1597
      %v1630 = vmax.f32 %v1566, %v1598
      %v1631 = vmax.f32 %v1567, %v1599
      %v1632 = vmax.f32 %v1568, %v1600
      %v1633 = vmax.f32 %v1569, %v1601
      %v1634 = vmax.f32 %v1570, %v1602
      %v1635 = vmax.f32 %v1571, %v1603
      %v1636 = vmax.f32 %v1572, %v1604
      %v1637 = vmax.f32 %v1573, %v1605
      %v1638 = vld [vmem:[%s5] sm:$0x1]
      %v1640 = vlaneseq
      %v1641 = vshrl.u32 %v1640, 7
      %v1642 = vsub.s32 0, %v1641
      %v1643 = vrot.slane %v1638, %v1642
      %v1645 = vadd.f32 %v1606, %v1643
      %v1646 = vadd.f32 %v1607, %v1643
      %v1647 = vadd.f32 %v1608, %v1643
      %v1648 = vadd.f32 %v1609, %v1643
      %v1649 = vadd.f32 %v1610, %v1643
      %v1650 = vadd.f32 %v1611, %v1643
      %v1651 = vadd.f32 %v1612, %v1643
      %v1652 = vadd.f32 %v1613, %v1643
      %v1653 = vadd.f32 %v1614, %v1643
      %v1654 = vadd.f32 %v1615, %v1643
      %v1655 = vadd.f32 %v1616, %v1643
      %v1656 = vadd.f32 %v1617, %v1643
      %v1657 = vadd.f32 %v1618, %v1643
      %v1658 = vadd.f32 %v1619, %v1643
      %v1659 = vadd.f32 %v1620, %v1643
      %v1660 = vadd.f32 %v1621, %v1643
      %v1661 = vadd.f32 %v1622, %v1643
      %v1662 = vadd.f32 %v1623, %v1643
      %v1663 = vadd.f32 %v1624, %v1643
      %v1664 = vadd.f32 %v1625, %v1643
      %v1665 = vadd.f32 %v1626, %v1643
      %v1666 = vadd.f32 %v1627, %v1643
      %v1667 = vadd.f32 %v1628, %v1643
      %v1668 = vadd.f32 %v1629, %v1643
      %v1669 = vadd.f32 %v1630, %v1643
      %v1670 = vadd.f32 %v1631, %v1643
      %v1671 = vadd.f32 %v1632, %v1643
      %v1672 = vadd.f32 %v1633, %v1643
      %v1673 = vadd.f32 %v1634, %v1643
      %v1674 = vadd.f32 %v1635, %v1643
      %v1675 = vadd.f32 %v1636, %v1643
      %v1676 = vadd.f32 %v1637, %v1643
      %1677 = vst [vmem:[%s319] sm:$0xff] %v1645
      %1678 = vst [vmem:[%s319 + $0x8] sm:$0xff] %v1646
      %1679 = vst [vmem:[%s319 + $0x10] sm:$0xff] %v1647
      %1680 = vst [vmem:[%s319 + $0x18] sm:$0xff] %v1648
      %1681 = vst [vmem:[%s319 + $0x20] sm:$0xff] %v1649
      %1682 = vst [vmem:[%s319 + $0x28] sm:$0xff] %v1650
      %1683 = vst [vmem:[%s319 + $0x30] sm:$0xff] %v1651
      %1684 = vst [vmem:[%s319 + $0x38] sm:$0xff] %v1652
      %1685 = vst [vmem:[%s319 + $0x40] sm:$0xff] %v1653
      %1686 = vst [vmem:[%s319 + $0x48] sm:$0xff] %v1654
      %1687 = vst [vmem:[%s319 + $0x50] sm:$0xff] %v1655
      %1688 = vst [vmem:[%s319 + $0x58] sm:$0xff] %v1656
      %1689 = vst [vmem:[%s319 + $0x60] sm:$0xff] %v1657
      %1690 = vst [vmem:[%s319 + $0x68] sm:$0xff] %v1658
      %1691 = vst [vmem:[%s319 + $0x70] sm:$0xff] %v1659
      %1692 = vst [vmem:[%s319 + $0x78] sm:$0xff] %v1660
      %1693 = vst [vmem:[%s319 + $0x80] sm:$0xff] %v1661
      %1694 = vst [vmem:[%s319 + $0x88] sm:$0xff] %v1662
      %1695 = vst [vmem:[%s319 + $0x90] sm:$0xff] %v1663
      %1696 = vst [vmem:[%s319 + $0x98] sm:$0xff] %v1664
      %1697 = vst [vmem:[%s319 + $0xa0] sm:$0xff] %v1665
      %1698 = vst [vmem:[%s319 + $0xa8] sm:$0xff] %v1666
      %1699 = vst [vmem:[%s319 + $0xb0] sm:$0xff] %v1667
      %1700 = vst [vmem:[%s319 + $0xb8] sm:$0xff] %v1668
      %1701 = vst [vmem:[%s319 + $0xc0] sm:$0xff] %v1669
      %1702 = vst [vmem:[%s319 + $0xc8] sm:$0xff] %v1670
      %1703 = vst [vmem:[%s319 + $0xd0] sm:$0xff] %v1671
      %1704 = vst [vmem:[%s319 + $0xd8] sm:$0xff] %v1672
      %1705 = vst [vmem:[%s319 + $0xe0] sm:$0xff] %v1673
      %1706 = vst [vmem:[%s319 + $0xe8] sm:$0xff] %v1674
      %1707 = vst [vmem:[%s319 + $0xf0] sm:$0xff] %v1675
      %1708 = vst [vmem:[%s319 + $0xf8] sm:$0xff] %v1676
      %s1709 = smul.u32 32, %s17
      %p1710 = scmp.lt.s32.totalorder %s1709, 63
      %s1711 = scalar_select %p1710, %s1709, 63
      %s1712 = smul.addr %s1711, 8
      %s1713 = scalar_lea.vmem %s6, %s1712
      // Predicated region
      $region45: #{cifar10_forward.4} parent=43 // pred_check
        %p1714 = pneg %p181
      $region46: #{cifar10_forward.4} parent=43 // pred_check_branch
        %1716 = sbr.rel (%p1714) target = $region48
      $region47: #{cifar10_forward.4} parent=43 // pred_region
        %s1717 = smul.u32 32, %s17
      $region48: #{cifar10_forward.4} parent=43 // pred_fallthru
        _
    $region44: #{cifar10_forward.4} parent=5 // pred_fallthru
      _
    %p1718 = scmp.le.s32.totalorder 2, %s12
    // Predicated region
    $region49: #{cifar10_forward.4} parent=5 // pred_check
      %p1719 = pneg %p1718
    $region50: #{cifar10_forward.4} parent=5 // pred_check_branch
      %1721 = sbr.rel (%p1719) target = $region52
    $region51: #{cifar10_forward.4} parent=5 // pred_region
      %s1722 = ssub.s32 %s12, 2
      // Predicated region
      $region53: #{cifar10_forward.4} parent=51 // pred_check
        %p1723 = pneg %p187
      $region54: #{cifar10_forward.4} parent=51 // pred_check_branch
        %1725 = sbr.rel (%p1723) target = $region56
      $region55: #{cifar10_forward.4} parent=51 // pred_region
        %s1726 = smul.u32 32, %s18
        %p1727 = scmp.lt.s32.totalorder %s1726, 63
        %s1728 = scalar_select %p1727, %s1726, 63
        %s1729 = smul.addr %s1728, 8
        %s1730 = scalar_lea.vmem %s6, %s1729
      $region56: #{cifar10_forward.4} parent=51 // pred_fallthru
        _
    $region52: #{cifar10_forward.4} parent=5 // pred_fallthru
      _
  $region6: #{cifar10_forward.4} parent=0 // loop_footer
    %s16 = sadd.s32 1, %s12
  $region7: #{cifar10_forward.4} parent=0 // loop_footer_branch
    %11 = sbr.rel target = $region3
  $region8: #{cifar10_forward.4} parent=0 // loop_exit
    _

// kernel: cifar10_forward.5
$region0: #{cifar10_forward.5}
  #allocation0 [shape = 'u32[]', space=smem, size = 0x4, offset = 0x4, fixed_abs, tag = 'smem constant byte address 0x4 - core index']
  #allocation1 [shape = 'u32[144,128]{1,0:T(1,128)}', space=vmem, size = 0x12000, scoped, tag = 'internal scratch']
  %s0 = inlined_call_operand.vmem [shape: bf16[128,896], index: 0, kind: input, shape index: {}]
  %s1 = inlined_call_operand.vmem [shape: bf16[128,896], index: 1, kind: input, shape index: {}]
  %s2 = inlined_call_operand.vmem [shape: bf16[128,896], index: 2, kind: input, shape index: {}]
  %s3 = inlined_call_operand.vmem [shape: bf16[128,896], index: 3, kind: input, shape index: {}]
  %s4 = inlined_call_operand.vmem [shape: bf16[896,128], index: 4, kind: input, shape index: {}]
  %s5 = inlined_call_operand.vmem [shape: f32[1,128], index: 5, kind: input, shape index: {}]
  %s6 = inlined_call_operand.vmem [shape: f32[128,128], index: 6, kind: output, shape index: {}]
  %s7 = sld [smem:[#allocation0]]
  $region57: #{cifar10_forward.5} parent=0
    _
  %s9 = ssub.s32 1, %s7
  %s10 = scalar_select 0, %s9, %s7
  loop: start=0, step=1, limit=4
  $region2: #{cifar10_forward.5} parent=0 // loop_pre_header
    _
  $region3: #{cifar10_forward.5} parent=0 // loop_header
    %s12 = sphi 0, %s16
    %p13 = scmp.ge.s32.totalorder %s12, 4
    %s22 = sphi 0, %s24
    %s25 = sphi 0, %s22
    %s26 = sphi 0, %s25
    %s42 = sphi 0, %s26
    %s48 = sphi 0, %s50
    %s51 = sphi 0, %s48
    %s52 = sphi 0, %s51
    %s68 = sphi 0, %s52
    %s74 = sphi 0, %s76
    %s77 = sphi 0, %s74
    %s78 = sphi 0, %s77
    %s94 = sphi 0, %s78
    %s100 = sphi 0, %s102
    %s103 = sphi 0, %s100
    %s104 = sphi 0, %s103
    %s120 = sphi 0, %s104
    %s124 = sphi 0, %s124
    %s126 = sphi 0, %s124
    %s127 = sphi 0, %s126
    %s141 = sphi 0, %s127
    %s145 = sphi 0, %s145
    %s147 = sphi 0, %s145
    %s148 = sphi 0, %s147
    %s162 = sphi 0, %s148
    %s168 = sphi 0, %s170
    %s171 = sphi 0, %s168
    %s172 = sphi 0, %s171
    %s188 = sphi 0, %s172
  $region4: #{cifar10_forward.5} parent=0 // loop_header_branch
    %15 = sbr.rel (%p13) target = $region8
  $region5: #{cifar10_forward.5} parent=0 // loop_body
    %s17 = ssub.s32 %s12, 1
    %s18 = ssub.s32 %s12, 2
    %s19 = sadd.s32 %s12, 1
    %s20 = ssub.s32 %s12, %s19
    %p21 = scmp.eq.s32.totalorder %s20, 0
    %s23 = sadd.s32 %s22, 1
    %s24 = scalar_select %p21, %s22, %s23
    %p27 = pneg %p21
    %p28 = scmp.eq.s32.totalorder %s12, 1
    %p29 = por %p27, %p28
    %p30 = scmp.ne.s32.totalorder %s22, %s25
    %p31 = scmp.eq.s32.totalorder %s12, 0
    %p32 = por %p30, %p31
    %p33 = scmp.ne.s32.totalorder %s22, %s25
    %p34 = scmp.eq.s32.totalorder %s17, 1
    %p35 = por %p33, %p34
    %p36 = scmp.ne.s32.totalorder %s25, %s26
    %p37 = scmp.eq.s32.totalorder %s17, 0
    %p38 = por %p36, %p37
    %p39 = scmp.ne.s32.totalorder %s25, %s26
    %p40 = scmp.eq.s32.totalorder %s18, 1
    %p41 = por %p39, %p40
    %p43 = scmp.ne.s32.totalorder %s26, %s42
    %p44 = scmp.eq.s32.totalorder %s18, 0
    %p45 = por %p43, %p44
    %s46 = ssub.s32 %s12, %s19
    %p47 = scmp.eq.s32.totalorder %s46, 0
    %s49 = sadd.s32 %s48, 1
    %s50 = scalar_select %p47, %s48, %s49
    %p53 = pneg %p47
    %p54 = scmp.eq.s32.totalorder %s12, 1
    %p55 = por %p53, %p54
    %p56 = scmp.ne.s32.totalorder %s48, %s51
    %p57 = scmp.eq.s32.totalorder %s12, 0
    %p58 = por %p56, %p57
    %p59 = scmp.ne.s32.totalorder %s48, %s51
    %p60 = scmp.eq.s32.totalorder %s17, 1
    %p61 = por %p59, %p60
    %p62 = scmp.ne.s32.totalorder %s51, %s52
    %p63 = scmp.eq.s32.totalorder %s17, 0
    %p64 = por %p62, %p63
    %p65 = scmp.ne.s32.totalorder %s51, %s52
    %p66 = scmp.eq.s32.totalorder %s18, 1
    %p67 = por %p65, %p66
    %p69 = scmp.ne.s32.totalorder %s52, %s68
    %p70 = scmp.eq.s32.totalorder %s18, 0
    %p71 = por %p69, %p70
    %s72 = ssub.s32 %s12, %s19
    %p73 = scmp.eq.s32.totalorder %s72, 0
    %s75 = sadd.s32 %s74, 1
    %s76 = scalar_select %p73, %s74, %s75
    %p79 = pneg %p73
    %p80 = scmp.eq.s32.totalorder %s12, 1
    %p81 = por %p79, %p80
    %p82 = scmp.ne.s32.totalorder %s74, %s77
    %p83 = scmp.eq.s32.totalorder %s12, 0
    %p84 = por %p82, %p83
    %p85 = scmp.ne.s32.totalorder %s74, %s77
    %p86 = scmp.eq.s32.totalorder %s17, 1
    %p87 = por %p85, %p86
    %p88 = scmp.ne.s32.totalorder %s77, %s78
    %p89 = scmp.eq.s32.totalorder %s17, 0
    %p90 = por %p88, %p89
    %p91 = scmp.ne.s32.totalorder %s77, %s78
    %p92 = scmp.eq.s32.totalorder %s18, 1
    %p93 = por %p91, %p92
    %p95 = scmp.ne.s32.totalorder %s78, %s94
    %p96 = scmp.eq.s32.totalorder %s18, 0
    %p97 = por %p95, %p96
    %s98 = ssub.s32 %s12, %s19
    %p99 = scmp.eq.s32.totalorder %s98, 0
    %s101 = sadd.s32 %s100, 1
    %s102 = scalar_select %p99, %s100, %s101
    %p105 = pneg %p99
    %p106 = scmp.eq.s32.totalorder %s12, 1
    %p107 = por %p105, %p106
    %p108 = scmp.ne.s32.totalorder %s100, %s103
    %p109 = scmp.eq.s32.totalorder %s12, 0
    %p110 = por %p108, %p109
    %p111 = scmp.ne.s32.totalorder %s100, %s103
    %p112 = scmp.eq.s32.totalorder %s17, 1
    %p113 = por %p111, %p112
    %p114 = scmp.ne.s32.totalorder %s103, %s104
    %p115 = scmp.eq.s32.totalorder %s17, 0
    %p116 = por %p114, %p115
    %p117 = scmp.ne.s32.totalorder %s103, %s104
    %p118 = scmp.eq.s32.totalorder %s18, 1
    %p119 = por %p117, %p118
    %p121 = scmp.ne.s32.totalorder %s104, %s120
    %p122 = scmp.eq.s32.totalorder %s18, 0
    %p123 = por %p121, %p122
    %s125 = sadd.s32 %s124, 1
    %p128 = scmp.eq.s32.totalorder %s12, 1
    %p129 = scmp.ne.s32.totalorder %s124, %s126
    %p130 = scmp.eq.s32.totalorder %s12, 0
    %p131 = por %p129, %p130
    %p132 = scmp.ne.s32.totalorder %s124, %s126
    %p133 = scmp.eq.s32.totalorder %s17, 1
    %p134 = por %p132, %p133
    %p135 = scmp.ne.s32.totalorder %s126, %s127
    %p136 = scmp.eq.s32.totalorder %s17, 0
    %p137 = por %p135, %p136
    %p138 = scmp.ne.s32.totalorder %s126, %s127
    %p139 = scmp.eq.s32.totalorder %s18, 1
    %p140 = por %p138, %p139
    %p142 = scmp.ne.s32.totalorder %s127, %s141
    %p143 = scmp.eq.s32.totalorder %s18, 0
    %p144 = por %p142, %p143
    %s146 = sadd.s32 %s145, 1
    %p149 = scmp.eq.s32.totalorder %s12, 1
    %p150 = scmp.ne.s32.totalorder %s145, %s147
    %p151 = scmp.eq.s32.totalorder %s12, 0
    %p152 = por %p150, %p151
    %p153 = scmp.ne.s32.totalorder %s145, %s147
    %p154 = scmp.eq.s32.totalorder %s17, 1
    %p155 = por %p153, %p154
    %p156 = scmp.ne.s32.totalorder %s147, %s148
    %p157 = scmp.eq.s32.totalorder %s17, 0
    %p158 = por %p156, %p157
    %p159 = scmp.ne.s32.totalorder %s147, %s148
    %p160 = scmp.eq.s32.totalorder %s18, 1
    %p161 = por %p159, %p160
    %p163 = scmp.ne.s32.totalorder %s148, %s162
    %p164 = scmp.eq.s32.totalorder %s18, 0
    %p165 = por %p163, %p164
    %s166 = ssub.s32 %s12, %s19
    %p167 = scmp.eq.s32.totalorder %s166, 0
    %s169 = sadd.s32 %s168, 1
    %s170 = scalar_select %p167, %s168, %s169
    %p173 = pneg %p167
    %p174 = scmp.eq.s32.totalorder %s12, 1
    %p175 = por %p173, %p174
    %p176 = scmp.ne.s32.totalorder %s168, %s171
    %p177 = scmp.eq.s32.totalorder %s12, 0
    %p178 = por %p176, %p177
    %p179 = scmp.ne.s32.totalorder %s168, %s171
    %p180 = scmp.eq.s32.totalorder %s17, 1
    %p181 = por %p179, %p180
    %p182 = scmp.ne.s32.totalorder %s171, %s172
    %p183 = scmp.eq.s32.totalorder %s17, 0
    %p184 = por %p182, %p183
    %p185 = scmp.ne.s32.totalorder %s171, %s172
    %p186 = scmp.eq.s32.totalorder %s18, 1
    %p187 = por %p185, %p186
    %p189 = scmp.ne.s32.totalorder %s172, %s188
    %p190 = scmp.eq.s32.totalorder %s18, 0
    %p191 = por %p189, %p190
    %p192 = scmp.le.s32.totalorder 1, %s12
    %p193 = scmp.lt.s32.totalorder %s12, 3
    %p194 = pnand %p192, %p193
    %p195 = pneg %p194
    // Predicated region
    $region9: #{cifar10_forward.5} parent=5 // pred_check
      _
    $region10: #{cifar10_forward.5} parent=5 // pred_check_branch
      %197 = sbr.rel (%p194) target = $region12
    $region11: #{cifar10_forward.5} parent=5 // pred_region
      %s198 = ssub.s32 %s12, 1
      // Predicated region
      $region13: #{cifar10_forward.5} parent=11 // pred_check
        %p199 = pneg %p137
      $region14: #{cifar10_forward.5} parent=11 // pred_check_branch
        %201 = sbr.rel (%p199) target = $region16
      $region15: #{cifar10_forward.5} parent=11 // pred_region
        _
      $region16: #{cifar10_forward.5} parent=11 // pred_fallthru
        _
      // Predicated region
      $region17: #{cifar10_forward.5} parent=11 // pred_check
        %p202 = pneg %p158
      $region18: #{cifar10_forward.5} parent=11 // pred_check_branch
        %204 = sbr.rel (%p202) target = $region20
      $region19: #{cifar10_forward.5} parent=11 // pred_region
        _
      $region20: #{cifar10_forward.5} parent=11 // pred_fallthru
        _
    $region12: #{cifar10_forward.5} parent=5 // pred_fallthru
      _
    %p205 = scmp.lt.s32.totalorder %s12, 2
    // Predicated region
    $region21: #{cifar10_forward.5} parent=5 // pred_check
      %p206 = pneg %p205
    $region22: #{cifar10_forward.5} parent=5 // pred_check_branch
      %208 = sbr.rel (%p206) target = $region24
    $region23: #{cifar10_forward.5} parent=5 // pred_region
      // Predicated region
      $region25: #{cifar10_forward.5} parent=23 // pred_check
        %p209 = pneg %p32
      $region26: #{cifar10_forward.5} parent=23 // pred_check_branch
        %211 = sbr.rel (%p209) target = $region28
      $region27: #{cifar10_forward.5} parent=23 // pred_region
        %s212 = smul.u32 8, %s12
        %p213 = scmp.lt.s32.totalorder %s212, 15
        %s214 = scalar_select %p213, %s212, 15
        %s215 = smul.addr %s214, 7
        %s216 = smul.addr %s215, 4
        %s217 = scalar_lea.vmem %s0, %s216
        %s218 = smul.u32 8, %s12
      $region28: #{cifar10_forward.5} parent=23 // pred_fallthru
        _
      // Predicated region
      $region29: #{cifar10_forward.5} parent=23 // pred_check
        %p219 = pneg %p58
      $region30: #{cifar10_forward.5} parent=23 // pred_check_branch
        %221 = sbr.rel (%p219) target = $region32
      $region31: #{cifar10_forward.5} parent=23 // pred_region
        %s222 = smul.u32 8, %s12
        %p223 = scmp.lt.s32.totalorder %s222, 15
        %s224 = scalar_select %p223, %s222, 15
        %s225 = smul.addr %s224, 7
        %s226 = smul.addr %s225, 4
        %s227 = scalar_lea.vmem %s1, %s226
        %s228 = smul.u32 8, %s12
      $region32: #{cifar10_forward.5} parent=23 // pred_fallthru
        _
      // Predicated region
      $region33: #{cifar10_forward.5} parent=23 // pred_check
        %p229 = pneg %p84
      $region34: #{cifar10_forward.5} parent=23 // pred_check_branch
        %231 = sbr.rel (%p229) target = $region36
      $region35: #{cifar10_forward.5} parent=23 // pred_region
        %s232 = smul.u32 8, %s12
        %p233 = scmp.lt.s32.totalorder %s232, 15
        %s234 = scalar_select %p233, %s232, 15
        %s235 = smul.addr %s234, 7
        %s236 = smul.addr %s235, 4
        %s237 = scalar_lea.vmem %s2, %s236
        %s238 = smul.u32 8, %s12
      $region36: #{cifar10_forward.5} parent=23 // pred_fallthru
        _
      // Predicated region
      $region37: #{cifar10_forward.5} parent=23 // pred_check
        %p239 = pneg %p110
      $region38: #{cifar10_forward.5} parent=23 // pred_check_branch
        %241 = sbr.rel (%p239) target = $region40
      $region39: #{cifar10_forward.5} parent=23 // pred_region
        %s242 = smul.u32 8, %s12
        %p243 = scmp.lt.s32.totalorder %s242, 15
        %s244 = scalar_select %p243, %s242, 15
        %s245 = smul.addr %s244, 7
        %s246 = smul.addr %s245, 4
        %s247 = scalar_lea.vmem %s3, %s246
        %s248 = smul.u32 8, %s12
      $region40: #{cifar10_forward.5} parent=23 // pred_fallthru
        _
    $region24: #{cifar10_forward.5} parent=5 // pred_fallthru
      _
    %p249 = scmp.le.s32.totalorder 1, %s12
    %p250 = scmp.lt.s32.totalorder %s12, 3
    %p251 = pnand %p249, %p250
    %p252 = pneg %p251
    // Predicated region
    $region41: #{cifar10_forward.5} parent=5 // pred_check
      _
    $region42: #{cifar10_forward.5} parent=5 // pred_check_branch
      %254 = sbr.rel (%p251) target = $region44
    $region43: #{cifar10_forward.5} parent=5 // pred_region
      %s255 = ssub.s32 %s12, 1
      %s256 = smul.u32 8, %s17
      %p257 = scmp.lt.s32.totalorder %s256, 15
      %s258 = scalar_select %p257, %s256, 15
      %s259 = smul.addr %s258, 7
      %s260 = smul.addr %s259, 4
      %s261 = scalar_lea.vmem %s0, %s260
      %p262 = pneg %p38
      %p263 = pneg %p35
      %s264 = smul.u32 8, %s17
      %p265 = scmp.lt.s32.totalorder %s264, 15
      %s266 = scalar_select %p265, %s264, 15
      %s267 = smul.addr %s266, 7
      %s268 = smul.addr %s267, 4
      %s269 = scalar_lea.vmem %s1, %s268
      %p270 = pneg %p64
      %p271 = pneg %p61
      %s272 = smul.u32 8, %s17
      %p273 = scmp.lt.s32.totalorder %s272, 15
      %s274 = scalar_select %p273, %s272, 15
      %s275 = smul.addr %s274, 7
      %s276 = smul.addr %s275, 4
      %s277 = scalar_lea.vmem %s2, %s276
      %p278 = pneg %p90
      %p279 = pneg %p87
      %s280 = smul.u32 8, %s17
      %p281 = scmp.lt.s32.totalorder %s280, 15
      %s282 = scalar_select %p281, %s280, 15
      %s283 = smul.addr %s282, 7
      %s284 = smul.addr %s283, 4
      %s285 = scalar_lea.vmem %s3, %s284
      %p286 = pneg %p116
      %p287 = pneg %p113
      %p288 = pneg %p137
      %p289 = pneg %p134
      %p290 = pneg %p158
      %p291 = pneg %p155
      %p292 = pneg %p184
      %p293 = pneg %p181
      %s294 = smul.u32 8, %s17
      %p295 = scmp.lt.s32.totalorder %s294, 15
      %s296 = scalar_select %p295, %s294, 15
      %s297 = smul.addr %s296, 8
      %s298 = scalar_lea.vmem %s6, %s297
      %s299 = smul.u32 8, %s17
      %p300 = scmp.lt.s32.totalorder %s299, 15
      %s301 = scalar_select %p300, %s299, 15
      %s302 = smul.addr %s301, 7
      %s303 = smul.addr %s302, 4
      %s304 = scalar_lea.vmem %s0, %s303
      %s305 = smul.u32 8, %s17
      %s306 = smul.u32 8, %s17
      %p307 = scmp.lt.s32.totalorder %s306, 15
      %s308 = scalar_select %p307, %s306, 15
      %s309 = smul.addr %s308, 7
      %s310 = smul.addr %s309, 4
      %s311 = scalar_lea.vmem %s1, %s310
      %s312 = smul.u32 8, %s17
      %s313 = smul.u32 8, %s17
      %p314 = scmp.lt.s32.totalorder %s313, 15
      %s315 = scalar_select %p314, %s313, 15
      %s316 = smul.addr %s315, 7
      %s317 = smul.addr %s316, 4
      %s318 = scalar_lea.vmem %s2, %s317
      %s319 = smul.u32 8, %s17
      %s320 = smul.u32 8, %s17
      %p321 = scmp.lt.s32.totalorder %s320, 15
      %s322 = scalar_select %p321, %s320, 15
      %s323 = smul.addr %s322, 7
      %s324 = smul.addr %s323, 4
      %s325 = scalar_lea.vmem %s3, %s324
      %s326 = smul.u32 8, %s17
      %s327 = smul.u32 8, %s17
      %p328 = scmp.lt.s32.totalorder %s327, 15
      %s329 = scalar_select %p328, %s327, 15
      %s330 = smul.addr %s329, 8
      %s331 = scalar_lea.vmem %s6, %s330
      %s332 = smul.u32 8, %s17
      %v334 = vld [vmem:[%s4] sm:$0xf]
      %v335 = vld [vmem:[%s4 + $0x4] sm:$0xf]
      %v336 = vld [vmem:[%s4 + $0x8] sm:$0xf]
      %v337 = vld [vmem:[%s4 + $0xc] sm:$0xf]
      %v338 = vld [vmem:[%s4 + $0x10] sm:$0xf]
      %v339 = vld [vmem:[%s4 + $0x14] sm:$0xf]
      %v340 = vld [vmem:[%s4 + $0x18] sm:$0xf]
      %v341 = vld [vmem:[%s4 + $0x1c] sm:$0xf]
      %v342 = vld [vmem:[%s4 + $0x20] sm:$0xf]
      %v343 = vld [vmem:[%s4 + $0x24] sm:$0xf]
      %v344 = vld [vmem:[%s4 + $0x28] sm:$0xf]
      %v345 = vld [vmem:[%s4 + $0x2c] sm:$0xf]
      %v346 = vld [vmem:[%s4 + $0x30] sm:$0xf]
      %v347 = vld [vmem:[%s4 + $0x34] sm:$0xf]
      %v348 = vld [vmem:[%s4 + $0x38] sm:$0xf]
      %v349 = vld [vmem:[%s4 + $0x3c] sm:$0xf]
      %v350 = vld [vmem:[%s4 + $0x40] sm:$0xf]
      %v351 = vld [vmem:[%s4 + $0x44] sm:$0xf]
      %v352 = vld [vmem:[%s4 + $0x48] sm:$0xf]
      %v353 = vld [vmem:[%s4 + $0x4c] sm:$0xf]
      %v354 = vld [vmem:[%s4 + $0x50] sm:$0xf]
      %v355 = vld [vmem:[%s4 + $0x54] sm:$0xf]
      %v356 = vld [vmem:[%s4 + $0x58] sm:$0xf]
      %v357 = vld [vmem:[%s4 + $0x5c] sm:$0xf]
      %v358 = vld [vmem:[%s4 + $0x60] sm:$0xf]
      %v359 = vld [vmem:[%s4 + $0x64] sm:$0xf]
      %v360 = vld [vmem:[%s4 + $0x68] sm:$0xf]
      %v361 = vld [vmem:[%s4 + $0x6c] sm:$0xf]
      %v362 = vld [vmem:[%s4 + $0x70] sm:$0xf]
      %v363 = vld [vmem:[%s4 + $0x74] sm:$0xf]
      %v364 = vld [vmem:[%s4 + $0x78] sm:$0xf]
      %v365 = vld [vmem:[%s4 + $0x7c] sm:$0xf]
      %v366 = vld [vmem:[%s4 + $0x80] sm:$0xf]
      %v367 = vld [vmem:[%s4 + $0x84] sm:$0xf]
      %v368 = vld [vmem:[%s4 + $0x88] sm:$0xf]
      %v369 = vld [vmem:[%s4 + $0x8c] sm:$0xf]
      %v370 = vld [vmem:[%s4 + $0x90] sm:$0xf]
      %v371 = vld [vmem:[%s4 + $0x94] sm:$0xf]
      %v372 = vld [vmem:[%s4 + $0x98] sm:$0xf]
      %v373 = vld [vmem:[%s4 + $0x9c] sm:$0xf]
      %v374 = vld [vmem:[%s4 + $0xa0] sm:$0xf]
      %v375 = vld [vmem:[%s4 + $0xa4] sm:$0xf]
      %v376 = vld [vmem:[%s4 + $0xa8] sm:$0xf]
      %v377 = vld [vmem:[%s4 + $0xac] sm:$0xf]
      %v378 = vld [vmem:[%s4 + $0xb0] sm:$0xf]
      %v379 = vld [vmem:[%s4 + $0xb4] sm:$0xf]
      %v380 = vld [vmem:[%s4 + $0xb8] sm:$0xf]
      %v381 = vld [vmem:[%s4 + $0xbc] sm:$0xf]
      %v382 = vld [vmem:[%s4 + $0xc0] sm:$0xf]
      %v383 = vld [vmem:[%s4 + $0xc4] sm:$0xf]
      %v384 = vld [vmem:[%s4 + $0xc8] sm:$0xf]
      %v385 = vld [vmem:[%s4 + $0xcc] sm:$0xf]
      %v386 = vld [vmem:[%s4 + $0xd0] sm:$0xf]
      %v387 = vld [vmem:[%s4 + $0xd4] sm:$0xf]
      %v388 = vld [vmem:[%s4 + $0xd8] sm:$0xf]
      %v389 = vld [vmem:[%s4 + $0xdc] sm:$0xf]
      %v390 = vld [vmem:[%s4 + $0xe0] sm:$0xf]
      %v391 = vld [vmem:[%s4 + $0xe4] sm:$0xf]
      %v392 = vld [vmem:[%s4 + $0xe8] sm:$0xf]
      %v393 = vld [vmem:[%s4 + $0xec] sm:$0xf]
      %v394 = vld [vmem:[%s4 + $0xf0] sm:$0xf]
      %v395 = vld [vmem:[%s4 + $0xf4] sm:$0xf]
      %v396 = vld [vmem:[%s4 + $0xf8] sm:$0xf]
      %v397 = vld [vmem:[%s4 + $0xfc] sm:$0xf]
      %v398 = vld [vmem:[%s4 + $0x100] sm:$0xf]
      %v399 = vld [vmem:[%s4 + $0x104] sm:$0xf]
      %v400 = vld [vmem:[%s4 + $0x108] sm:$0xf]
      %v401 = vld [vmem:[%s4 + $0x10c] sm:$0xf]
      %v402 = vld [vmem:[%s4 + $0x110] sm:$0xf]
      %v403 = vld [vmem:[%s4 + $0x114] sm:$0xf]
      %v404 = vld [vmem:[%s4 + $0x118] sm:$0xf]
      %v405 = vld [vmem:[%s4 + $0x11c] sm:$0xf]
      %v406 = vld [vmem:[%s4 + $0x120] sm:$0xf]
      %v407 = vld [vmem:[%s4 + $0x124] sm:$0xf]
      %v408 = vld [vmem:[%s4 + $0x128] sm:$0xf]
      %v409 = vld [vmem:[%s4 + $0x12c] sm:$0xf]
      %v410 = vld [vmem:[%s4 + $0x130] sm:$0xf]
      %v411 = vld [vmem:[%s4 + $0x134] sm:$0xf]
      %v412 = vld [vmem:[%s4 + $0x138] sm:$0xf]
      %v413 = vld [vmem:[%s4 + $0x13c] sm:$0xf]
      %v414 = vld [vmem:[%s4 + $0x140] sm:$0xf]
      %v415 = vld [vmem:[%s4 + $0x144] sm:$0xf]
      %v416 = vld [vmem:[%s4 + $0x148] sm:$0xf]
      %v417 = vld [vmem:[%s4 + $0x14c] sm:$0xf]
      %v418 = vld [vmem:[%s4 + $0x150] sm:$0xf]
      %v419 = vld [vmem:[%s4 + $0x154] sm:$0xf]
      %v420 = vld [vmem:[%s4 + $0x158] sm:$0xf]
      %v421 = vld [vmem:[%s4 + $0x15c] sm:$0xf]
      %v422 = vld [vmem:[%s4 + $0x160] sm:$0xf]
      %v423 = vld [vmem:[%s4 + $0x164] sm:$0xf]
      %v424 = vld [vmem:[%s4 + $0x168] sm:$0xf]
      %v425 = vld [vmem:[%s4 + $0x16c] sm:$0xf]
      %v426 = vld [vmem:[%s4 + $0x170] sm:$0xf]
      %v427 = vld [vmem:[%s4 + $0x174] sm:$0xf]
      %v428 = vld [vmem:[%s4 + $0x178] sm:$0xf]
      %v429 = vld [vmem:[%s4 + $0x17c] sm:$0xf]
      %v430 = vld [vmem:[%s4 + $0x180] sm:$0xf]
      %v431 = vld [vmem:[%s4 + $0x184] sm:$0xf]
      %v432 = vld [vmem:[%s4 + $0x188] sm:$0xf]
      %v433 = vld [vmem:[%s4 + $0x18c] sm:$0xf]
      %v434 = vld [vmem:[%s4 + $0x190] sm:$0xf]
      %v435 = vld [vmem:[%s4 + $0x194] sm:$0xf]
      %v436 = vld [vmem:[%s4 + $0x198] sm:$0xf]
      %v437 = vld [vmem:[%s4 + $0x19c] sm:$0xf]
      %v438 = vld [vmem:[%s4 + $0x1a0] sm:$0xf]
      %v439 = vld [vmem:[%s4 + $0x1a4] sm:$0xf]
      %v440 = vld [vmem:[%s4 + $0x1a8] sm:$0xf]
      %v441 = vld [vmem:[%s4 + $0x1ac] sm:$0xf]
      %v442 = vld [vmem:[%s4 + $0x1b0] sm:$0xf]
      %v443 = vld [vmem:[%s4 + $0x1b4] sm:$0xf]
      %v444 = vld [vmem:[%s4 + $0x1b8] sm:$0xf]
      %v445 = vld [vmem:[%s4 + $0x1bc] sm:$0xf]
      %v446 = vld [vmem:[%s304] sm:$0xff]
      %v447 = vld [vmem:[%s304 + $0x8] sm:$0xff]
      %v448 = vld [vmem:[%s304 + $0x10] sm:$0xff]
      %v449 = vld [vmem:[%s304 + $0x18] sm:$0xf]
      %v450 = vld [vmem:[%s304 + $0x1c] sm:$0xff]
      %v451 = vld [vmem:[%s304 + $0x24] sm:$0xff]
      %v452 = vld [vmem:[%s304 + $0x2c] sm:$0xff]
      %v453 = vld [vmem:[%s304 + $0x34] sm:$0xf]
      %v454 = vld [vmem:[%s304 + $0x38] sm:$0xff]
      %v455 = vld [vmem:[%s304 + $0x40] sm:$0xff]
      %v456 = vld [vmem:[%s304 + $0x48] sm:$0xff]
      %v457 = vld [vmem:[%s304 + $0x50] sm:$0xf]
      %v458 = vld [vmem:[%s304 + $0x54] sm:$0xff]
      %v459 = vld [vmem:[%s304 + $0x5c] sm:$0xff]
      %v460 = vld [vmem:[%s304 + $0x64] sm:$0xff]
      %v461 = vld [vmem:[%s304 + $0x6c] sm:$0xf]
      %v462 = vld [vmem:[%s304 + $0x70] sm:$0xff]
      %v463 = vld [vmem:[%s304 + $0x78] sm:$0xff]
      %v464 = vld [vmem:[%s304 + $0x80] sm:$0xff]
      %v465 = vld [vmem:[%s304 + $0x88] sm:$0xf]
      %v466 = vld [vmem:[%s304 + $0x8c] sm:$0xff]
      %v467 = vld [vmem:[%s304 + $0x94] sm:$0xff]
      %v468 = vld [vmem:[%s304 + $0x9c] sm:$0xff]
      %v469 = vld [vmem:[%s304 + $0xa4] sm:$0xf]
      %v470 = vld [vmem:[%s304 + $0xa8] sm:$0xff]
      %v471 = vld [vmem:[%s304 + $0xb0] sm:$0xff]
      %v472 = vld [vmem:[%s304 + $0xb8] sm:$0xff]
      %v473 = vld [vmem:[%s304 + $0xc0] sm:$0xf]
      %v474 = vld [vmem:[%s304 + $0xc4] sm:$0xff]
      %v475 = vld [vmem:[%s304 + $0xcc] sm:$0xff]
      %v476 = vld [vmem:[%s304 + $0xd4] sm:$0xff]
      %v477 = vld [vmem:[%s304 + $0xdc] sm:$0xf]
      %v510 = vunpack.c.l.b16 %v446
      %v511 = vunpack.c.h.b16 %v446
      %v512 = vunpack.c.l.b16 %v447
      %v513 = vunpack.c.h.b16 %v447
      %v514 = vunpack.c.l.b16 %v448
      %v515 = vunpack.c.h.b16 %v448
      %v516 = vunpack.c.l.b16 %v449
      %v517 = vunpack.c.l.b16 %v450
      %v518 = vunpack.c.h.b16 %v450
      %v519 = vunpack.c.l.b16 %v451
      %v520 = vunpack.c.h.b16 %v451
      %v521 = vunpack.c.l.b16 %v452
      %v522 = vunpack.c.h.b16 %v452
      %v523 = vunpack.c.l.b16 %v453
      %v524 = vunpack.c.l.b16 %v454
      %v525 = vunpack.c.h.b16 %v454
      %v526 = vunpack.c.l.b16 %v455
      %v527 = vunpack.c.h.b16 %v455
      %v528 = vunpack.c.l.b16 %v456
      %v529 = vunpack.c.h.b16 %v456
      %v530 = vunpack.c.l.b16 %v457
      %v531 = vunpack.c.l.b16 %v458
      %v532 = vunpack.c.h.b16 %v458
      %v533 = vunpack.c.l.b16 %v459
      %v534 = vunpack.c.h.b16 %v459
      %v535 = vunpack.c.l.b16 %v460
      %v536 = vunpack.c.h.b16 %v460
      %v537 = vunpack.c.l.b16 %v461
      %v538 = vunpack.c.l.b16 %v462
      %v539 = vunpack.c.h.b16 %v462
      %v540 = vunpack.c.l.b16 %v463
      %v541 = vunpack.c.h.b16 %v463
      %v542 = vunpack.c.l.b16 %v464
      %v543 = vunpack.c.h.b16 %v464
      %v544 = vunpack.c.l.b16 %v465
      %v545 = vunpack.c.l.b16 %v466
      %v546 = vunpack.c.h.b16 %v466
      %v547 = vunpack.c.l.b16 %v467
      %v548 = vunpack.c.h.b16 %v467
      %v549 = vunpack.c.l.b16 %v468
      %v550 = vunpack.c.h.b16 %v468
      %v551 = vunpack.c.l.b16 %v469
      %v552 = vunpack.c.l.b16 %v470
      %v553 = vunpack.c.h.b16 %v470
      %v554 = vunpack.c.l.b16 %v471
      %v555 = vunpack.c.h.b16 %v471
      %v556 = vunpack.c.l.b16 %v472
      %v557 = vunpack.c.h.b16 %v472
      %v558 = vunpack.c.l.b16 %v473
      %v559 = vunpack.c.l.b16 %v474
      %v560 = vunpack.c.h.b16 %v474
      %v561 = vunpack.c.l.b16 %v475
      %v562 = vunpack.c.h.b16 %v475
      %v563 = vunpack.c.l.b16 %v476
      %v564 = vunpack.c.h.b16 %v476
      %v565 = vunpack.c.l.b16 %v477
      %v566 = vpack.c.b16 %v517, %v510
      %v567 = vpack.c.b16 %v518, %v511
      %v568 = vpack.c.b16 %v519, %v512
      %v569 = vpack.c.b16 %v520, %v513
      %v570 = vpack.c.b16 %v521, %v514
      %v571 = vpack.c.b16 %v522, %v515
      %v572 = vpack.c.b16 %v523, %v516
      %v573 = vpack.c.b16 %v531, %v524
      %v574 = vpack.c.b16 %v532, %v525
      %v575 = vpack.c.b16 %v533, %v526
      %v576 = vpack.c.b16 %v534, %v527
      %v577 = vpack.c.b16 %v535, %v528
      %v578 = vpack.c.b16 %v536, %v529
      %v579 = vpack.c.b16 %v537, %v530
      %v580 = vpack.c.b16 %v545, %v538
      %v581 = vpack.c.b16 %v546, %v539
      %v582 = vpack.c.b16 %v547, %v540
      %v583 = vpack.c.b16 %v548, %v541
      %v584 = vpack.c.b16 %v549, %v542
      %v585 = vpack.c.b16 %v550, %v543
      %v586 = vpack.c.b16 %v551, %v544
      %v587 = vpack.c.b16 %v559, %v552
      %v588 = vpack.c.b16 %v560, %v553
      %v589 = vpack.c.b16 %v561, %v554
      %v590 = vpack.c.b16 %v562, %v555
      %v591 = vpack.c.b16 %v563, %v556
      %v592 = vpack.c.b16 %v564, %v557
      %v593 = vpack.c.b16 %v565, %v558
      %v734 = vunpack.c.l.b16 %v334
      %v735 = vunpack.c.l.b16 %v335
      %v736 = vunpack.c.l.b16 %v336
      %v737 = vunpack.c.l.b16 %v337
      %v738 = vunpack.c.l.b16 %v338
      %v739 = vunpack.c.l.b16 %v339
      %v740 = vunpack.c.l.b16 %v340
      %v741 = vunpack.c.l.b16 %v341
      %v742 = vunpack.c.l.b16 %v342
      %v743 = vunpack.c.l.b16 %v343
      %v744 = vunpack.c.l.b16 %v344
      %v745 = vunpack.c.l.b16 %v345
      %v746 = vunpack.c.l.b16 %v346
      %v747 = vunpack.c.l.b16 %v347
      %v748 = vunpack.c.l.b16 %v348
      %v749 = vunpack.c.l.b16 %v349
      %v750 = vunpack.c.l.b16 %v350
      %v751 = vunpack.c.l.b16 %v351
      %v752 = vunpack.c.l.b16 %v352
      %v753 = vunpack.c.l.b16 %v353
      %v754 = vunpack.c.l.b16 %v354
      %v755 = vunpack.c.l.b16 %v355
      %v756 = vunpack.c.l.b16 %v356
      %v757 = vunpack.c.l.b16 %v357
      %v758 = vunpack.c.l.b16 %v358
      %v759 = vunpack.c.l.b16 %v359
      %v760 = vunpack.c.l.b16 %v360
      %v761 = vunpack.c.l.b16 %v361
      %v762 = vunpack.c.l.b16 %v362
      %v763 = vunpack.c.l.b16 %v363
      %v764 = vunpack.c.l.b16 %v364
      %v765 = vunpack.c.l.b16 %v365
      %v766 = vunpack.c.l.b16 %v366
      %v767 = vunpack.c.l.b16 %v367
      %v768 = vunpack.c.l.b16 %v368
      %v769 = vunpack.c.l.b16 %v369
      %v770 = vunpack.c.l.b16 %v370
      %v771 = vunpack.c.l.b16 %v371
      %v772 = vunpack.c.l.b16 %v372
      %v773 = vunpack.c.l.b16 %v373
      %v774 = vunpack.c.l.b16 %v374
      %v775 = vunpack.c.l.b16 %v375
      %v776 = vunpack.c.l.b16 %v376
      %v777 = vunpack.c.l.b16 %v377
      %v778 = vunpack.c.l.b16 %v378
      %v779 = vunpack.c.l.b16 %v379
      %v780 = vunpack.c.l.b16 %v380
      %v781 = vunpack.c.l.b16 %v381
      %v782 = vunpack.c.l.b16 %v382
      %v783 = vunpack.c.l.b16 %v383
      %v784 = vunpack.c.l.b16 %v384
      %v785 = vunpack.c.l.b16 %v385
      %v786 = vunpack.c.l.b16 %v386
      %v787 = vunpack.c.l.b16 %v387
      %v788 = vunpack.c.l.b16 %v388
      %v789 = vunpack.c.l.b16 %v389
      %v790 = vunpack.c.l.b16 %v390
      %v791 = vunpack.c.l.b16 %v391
      %v792 = vunpack.c.l.b16 %v392
      %v793 = vunpack.c.l.b16 %v393
      %v794 = vunpack.c.l.b16 %v394
      %v795 = vunpack.c.l.b16 %v395
      %v796 = vunpack.c.l.b16 %v396
      %v797 = vunpack.c.l.b16 %v397
      %v798 = vunpack.c.l.b16 %v398
      %v799 = vunpack.c.l.b16 %v399
      %v800 = vunpack.c.l.b16 %v400
      %v801 = vunpack.c.l.b16 %v401
      %v802 = vunpack.c.l.b16 %v402
      %v803 = vunpack.c.l.b16 %v403
      %v804 = vunpack.c.l.b16 %v404
      %v805 = vunpack.c.l.b16 %v405
      %v806 = vunpack.c.l.b16 %v406
      %v807 = vunpack.c.l.b16 %v407
      %v808 = vunpack.c.l.b16 %v408
      %v809 = vunpack.c.l.b16 %v409
      %v810 = vunpack.c.l.b16 %v410
      %v811 = vunpack.c.l.b16 %v411
      %v812 = vunpack.c.l.b16 %v412
      %v813 = vunpack.c.l.b16 %v413
      %v814 = vunpack.c.l.b16 %v414
      %v815 = vunpack.c.l.b16 %v415
      %v816 = vunpack.c.l.b16 %v416
      %v817 = vunpack.c.l.b16 %v417
      %v818 = vunpack.c.l.b16 %v418
      %v819 = vunpack.c.l.b16 %v419
      %v820 = vunpack.c.l.b16 %v420
      %v821 = vunpack.c.l.b16 %v421
      %v822 = vunpack.c.l.b16 %v422
      %v823 = vunpack.c.l.b16 %v423
      %v824 = vunpack.c.l.b16 %v424
      %v825 = vunpack.c.l.b16 %v425
      %v826 = vunpack.c.l.b16 %v426
      %v827 = vunpack.c.l.b16 %v427
      %v828 = vunpack.c.l.b16 %v428
      %v829 = vunpack.c.l.b16 %v429
      %v830 = vunpack.c.l.b16 %v430
      %v831 = vunpack.c.l.b16 %v431
      %v832 = vunpack.c.l.b16 %v432
      %v833 = vunpack.c.l.b16 %v433
      %v834 = vunpack.c.l.b16 %v434
      %v835 = vunpack.c.l.b16 %v435
      %v836 = vunpack.c.l.b16 %v436
      %v837 = vunpack.c.l.b16 %v437
      %v838 = vunpack.c.l.b16 %v438
      %v839 = vunpack.c.l.b16 %v439
      %v840 = vunpack.c.l.b16 %v440
      %v841 = vunpack.c.l.b16 %v441
      %v842 = vunpack.c.l.b16 %v442
      %v843 = vunpack.c.l.b16 %v443
      %v844 = vunpack.c.l.b16 %v444
      %v845 = vunpack.c.l.b16 %v445
      %v846 = vpack.c.b16 %v735, %v734
      %v847 = vpack.c.b16 %v737, %v736
      %v848 = vpack.c.b16 %v739, %v738
      %v849 = vpack.c.b16 %v741, %v740
      %v850 = vpack.c.b16 %v743, %v742
      %v851 = vpack.c.b16 %v745, %v744
      %v852 = vpack.c.b16 %v747, %v746
      %v853 = vpack.c.b16 %v749, %v748
      %v854 = vpack.c.b16 %v751, %v750
      %v855 = vpack.c.b16 %v753, %v752
      %v856 = vpack.c.b16 %v755, %v754
      %v857 = vpack.c.b16 %v757, %v756
      %v858 = vpack.c.b16 %v759, %v758
      %v859 = vpack.c.b16 %v761, %v760
      %v860 = vpack.c.b16 %v763, %v762
      %v861 = vpack.c.b16 %v765, %v764
      %v862 = vpack.c.b16 %v767, %v766
      %v863 = vpack.c.b16 %v769, %v768
      %v864 = vpack.c.b16 %v771, %v770
      %v865 = vpack.c.b16 %v773, %v772
      %v866 = vpack.c.b16 %v775, %v774
      %v867 = vpack.c.b16 %v777, %v776
      %v868 = vpack.c.b16 %v779, %v778
      %v869 = vpack.c.b16 %v781, %v780
      %v870 = vpack.c.b16 %v783, %v782
      %v871 = vpack.c.b16 %v785, %v784
      %v872 = vpack.c.b16 %v787, %v786
      %v873 = vpack.c.b16 %v789, %v788
      %v874 = vpack.c.b16 %v791, %v790
      %v875 = vpack.c.b16 %v793, %v792
      %v876 = vpack.c.b16 %v795, %v794
      %v877 = vpack.c.b16 %v797, %v796
      %v878 = vpack.c.b16 %v799, %v798
      %v879 = vpack.c.b16 %v801, %v800
      %v880 = vpack.c.b16 %v803, %v802
      %v881 = vpack.c.b16 %v805, %v804
      %v882 = vpack.c.b16 %v807, %v806
      %v883 = vpack.c.b16 %v809, %v808
      %v884 = vpack.c.b16 %v811, %v810
      %v885 = vpack.c.b16 %v813, %v812
      %v886 = vpack.c.b16 %v815, %v814
      %v887 = vpack.c.b16 %v817, %v816
      %v888 = vpack.c.b16 %v819, %v818
      %v889 = vpack.c.b16 %v821, %v820
      %v890 = vpack.c.b16 %v823, %v822
      %v891 = vpack.c.b16 %v825, %v824
      %v892 = vpack.c.b16 %v827, %v826
      %v893 = vpack.c.b16 %v829, %v828
      %v894 = vpack.c.b16 %v831, %v830
      %v895 = vpack.c.b16 %v833, %v832
      %v896 = vpack.c.b16 %v835, %v834
      %v897 = vpack.c.b16 %v837, %v836
      %v898 = vpack.c.b16 %v839, %v838
      %v899 = vpack.c.b16 %v841, %v840
      %v900 = vpack.c.b16 %v843, %v842
      %v901 = vpack.c.b16 %v845, %v844
      %958 = vmatprep.subr.bf16.mxu0 0
      %959 = vmatpush1.bf16.msra.mxu0 %v853
      %960 = vmatprep.subr.bf16.mxu0 0
      %961 = vmatpush1.bf16.msra.mxu0 %v852
      %962 = vmatprep.subr.bf16.mxu0 0
      %963 = vmatpush1.bf16.msra.mxu0 %v851
      %964 = vmatprep.subr.bf16.mxu0 0
      %965 = vmatpush1.bf16.msra.mxu0 %v850
      %966 = vmatprep.subr.bf16.mxu0 0
      %967 = vmatpush1.bf16.msra.mxu0 %v849
      %968 = vmatprep.subr.bf16.mxu0 0
      %969 = vmatpush1.bf16.msra.mxu0 %v848
      %970 = vmatprep.subr.bf16.mxu0 0
      %971 = vmatpush1.bf16.msra.mxu0 %v847
      %972 = vmatprep.subr.bf16.mxu0 0
      %973 = vmatpush1.bf16.msra.mxu0 %v846
      %974 = vmatprep.subr.bf16.mxu0 0
      %975 = vmatpush2.bf16.msra.mxu0 %v861
      %976 = vmatprep.subr.bf16.mxu0 0
      %977 = vmatpush2.bf16.msra.mxu0 %v860
      %978 = vmatprep.subr.bf16.mxu0 0
      %979 = vmatpush2.bf16.msra.mxu0 %v859
      %980 = vmatprep.subr.bf16.mxu0 0
      %981 = vmatpush2.bf16.msra.mxu0 %v858
      %982 = vmatprep.subr.bf16.mxu0 0
      %983 = vmatpush2.bf16.msra.mxu0 %v857
      %984 = vmatprep.subr.bf16.mxu0 0
      %985 = vmatpush2.bf16.msra.mxu0 %v856
      %986 = vmatprep.subr.bf16.mxu0 0
      %987 = vmatpush2.bf16.msra.mxu0 %v855
      %988 = vmatprep.subr.bf16.mxu0 0
      %989 = vmatpush2.bf16.msra.mxu0 %v854
      %990 = vmatprep.mubr.bf16.mxu0 %v567
      %991 = vmatmul.mubr.bf16.gmra.mxu0 %v566
      %v992 = vpop.f32.mrf.mxu0
      %v993 = vadd.f32 0.0, %v992
      %v994 = vpop.f32.mrf.mxu0
      %v995 = vpop.f32.mrf.mxu0
      %v996 = vadd.f32 0.0, %v995
      %v997 = vpop.f32.mrf.mxu0
      %998 = vmatprep.mubr.bf16.mxu0 %v574
      %999 = vmatmul.mubr.bf16.gmra.mxu0 %v573
      %v1000 = vpop.f32.mrf.mxu0
      %v1001 = vadd.f32 0.0, %v1000
      %v1002 = vpop.f32.mrf.mxu0
      %v1003 = vpop.f32.mrf.mxu0
      %v1004 = vadd.f32 0.0, %v1003
      %v1005 = vpop.f32.mrf.mxu0
      %1006 = vmatprep.mubr.bf16.mxu0 %v581
      %1007 = vmatmul.mubr.bf16.gmra.mxu0 %v580
      %v1008 = vpop.f32.mrf.mxu0
      %v1009 = vadd.f32 0.0, %v1008
      %v1010 = vpop.f32.mrf.mxu0
      %v1011 = vpop.f32.mrf.mxu0
      %v1012 = vadd.f32 0.0, %v1011
      %v1013 = vpop.f32.mrf.mxu0
      %1014 = vmatprep.mubr.bf16.mxu0 %v588
      %1015 = vmatmul.mubr.bf16.gmra.mxu0 %v587
      %v1016 = vpop.f32.mrf.mxu0
      %v1017 = vadd.f32 0.0, %v1016
      %v1018 = vpop.f32.mrf.mxu0
      %v1019 = vpop.f32.mrf.mxu0
      %v1020 = vadd.f32 0.0, %v1019
      %v1021 = vpop.f32.mrf.mxu0
      %1022 = vdwg.mxu0
      %1023 = vmatprep.subr.bf16.mxu0 0
      %1024 = vmatpush1.bf16.msra.mxu0 %v869
      %1025 = vmatprep.subr.bf16.mxu0 0
      %1026 = vmatpush1.bf16.msra.mxu0 %v868
      %1027 = vmatprep.subr.bf16.mxu0 0
      %1028 = vmatpush1.bf16.msra.mxu0 %v867
      %1029 = vmatprep.subr.bf16.mxu0 0
      %1030 = vmatpush1.bf16.msra.mxu0 %v866
      %1031 = vmatprep.subr.bf16.mxu0 0
      %1032 = vmatpush1.bf16.msra.mxu0 %v865
      %1033 = vmatprep.subr.bf16.mxu0 0
      %1034 = vmatpush1.bf16.msra.mxu0 %v864
      %1035 = vmatprep.subr.bf16.mxu0 0
      %1036 = vmatpush1.bf16.msra.mxu0 %v863
      %1037 = vmatprep.subr.bf16.mxu0 0
      %1038 = vmatpush1.bf16.msra.mxu0 %v862
      %1039 = vmatprep.subr.bf16.mxu0 0
      %1040 = vmatpush2.bf16.msra.mxu0 %v877
      %1041 = vmatprep.subr.bf16.mxu0 0
      %1042 = vmatpush2.bf16.msra.mxu0 %v876
      %1043 = vmatprep.subr.bf16.mxu0 0
      %1044 = vmatpush2.bf16.msra.mxu0 %v875
      %1045 = vmatprep.subr.bf16.mxu0 0
      %1046 = vmatpush2.bf16.msra.mxu0 %v874
      %1047 = vmatprep.subr.bf16.mxu0 0
      %1048 = vmatpush2.bf16.msra.mxu0 %v873
      %1049 = vmatprep.subr.bf16.mxu0 0
      %1050 = vmatpush2.bf16.msra.mxu0 %v872
      %1051 = vmatprep.subr.bf16.mxu0 0
      %1052 = vmatpush2.bf16.msra.mxu0 %v871
      %1053 = vmatprep.subr.bf16.mxu0 0
      %1054 = vmatpush2.bf16.msra.mxu0 %v870
      %1055 = vmatprep.mubr.bf16.mxu0 %v569
      %1056 = vmatmul.mubr.bf16.gmra.mxu0 %v568
      %v1057 = vpop.f32.mrf.mxu0
      %v1058 = vadd.f32 %v993, %v1057
      %v1059 = vpop.f32.mrf.mxu0
      %v1060 = vpop.f32.mrf.mxu0
      %v1061 = vadd.f32 %v996, %v1060
      %v1062 = vpop.f32.mrf.mxu0
      %1063 = vmatprep.mubr.bf16.mxu0 %v576
      %1064 = vmatmul.mubr.bf16.gmra.mxu0 %v575
      %v1065 = vpop.f32.mrf.mxu0
      %v1066 = vadd.f32 %v1001, %v1065
      %v1067 = vpop.f32.mrf.mxu0
      %v1068 = vpop.f32.mrf.mxu0
      %v1069 = vadd.f32 %v1004, %v1068
      %v1070 = vpop.f32.mrf.mxu0
      %1071 = vmatprep.mubr.bf16.mxu0 %v583
      %1072 = vmatmul.mubr.bf16.gmra.mxu0 %v582
      %v1073 = vpop.f32.mrf.mxu0
      %v1074 = vadd.f32 %v1009, %v1073
      %v1075 = vpop.f32.mrf.mxu0
      %v1076 = vpop.f32.mrf.mxu0
      %v1077 = vadd.f32 %v1012, %v1076
      %v1078 = vpop.f32.mrf.mxu0
      %1079 = vmatprep.mubr.bf16.mxu0 %v590
      %1080 = vmatmul.mubr.bf16.gmra.mxu0 %v589
      %v1081 = vpop.f32.mrf.mxu0
      %v1082 = vadd.f32 %v1017, %v1081
      %v1083 = vpop.f32.mrf.mxu0
      %v1084 = vpop.f32.mrf.mxu0
      %v1085 = vadd.f32 %v1020, %v1084
      %v1086 = vpop.f32.mrf.mxu0
      %1087 = vdwg.mxu0
      %1088 = vmatprep.subr.bf16.mxu0 0
      %1089 = vmatpush1.bf16.msra.mxu0 %v885
      %1090 = vmatprep.subr.bf16.mxu0 0
      %1091 = vmatpush1.bf16.msra.mxu0 %v884
      %1092 = vmatprep.subr.bf16.mxu0 0
      %1093 = vmatpush1.bf16.msra.mxu0 %v883
      %1094 = vmatprep.subr.bf16.mxu0 0
      %1095 = vmatpush1.bf16.msra.mxu0 %v882
      %1096 = vmatprep.subr.bf16.mxu0 0
      %1097 = vmatpush1.bf16.msra.mxu0 %v881
      %1098 = vmatprep.subr.bf16.mxu0 0
      %1099 = vmatpush1.bf16.msra.mxu0 %v880
      %1100 = vmatprep.subr.bf16.mxu0 0
      %1101 = vmatpush1.bf16.msra.mxu0 %v879
      %1102 = vmatprep.subr.bf16.mxu0 0
      %1103 = vmatpush1.bf16.msra.mxu0 %v878
      %1104 = vmatprep.subr.bf16.mxu0 0
      %1105 = vmatpush2.bf16.msra.mxu0 %v893
      %1106 = vmatprep.subr.bf16.mxu0 0
      %1107 = vmatpush2.bf16.msra.mxu0 %v892
      %1108 = vmatprep.subr.bf16.mxu0 0
      %1109 = vmatpush2.bf16.msra.mxu0 %v891
      %1110 = vmatprep.subr.bf16.mxu0 0
      %1111 = vmatpush2.bf16.msra.mxu0 %v890
      %1112 = vmatprep.subr.bf16.mxu0 0
      %1113 = vmatpush2.bf16.msra.mxu0 %v889
      %1114 = vmatprep.subr.bf16.mxu0 0
      %1115 = vmatpush2.bf16.msra.mxu0 %v888
      %1116 = vmatprep.subr.bf16.mxu0 0
      %1117 = vmatpush2.bf16.msra.mxu0 %v887
      %1118 = vmatprep.subr.bf16.mxu0 0
      %1119 = vmatpush2.bf16.msra.mxu0 %v886
      %1120 = vmatprep.mubr.bf16.mxu0 %v571
      %1121 = vmatmul.mubr.bf16.gmra.mxu0 %v570
      %v1122 = vpop.f32.mrf.mxu0
      %v1123 = vadd.f32 %v1058, %v1122
      %v1124 = vpop.f32.mrf.mxu0
      %v1125 = vpop.f32.mrf.mxu0
      %v1126 = vadd.f32 %v1061, %v1125
      %v1127 = vpop.f32.mrf.mxu0
      %1128 = vmatprep.mubr.bf16.mxu0 %v578
      %1129 = vmatmul.mubr.bf16.gmra.mxu0 %v577
      %v1130 = vpop.f32.mrf.mxu0
      %v1131 = vadd.f32 %v1066, %v1130
      %v1132 = vpop.f32.mrf.mxu0
      %v1133 = vpop.f32.mrf.mxu0
      %v1134 = vadd.f32 %v1069, %v1133
      %v1135 = vpop.f32.mrf.mxu0
      %1136 = vmatprep.mubr.bf16.mxu0 %v585
      %1137 = vmatmul.mubr.bf16.gmra.mxu0 %v584
      %v1138 = vpop.f32.mrf.mxu0
      %v1139 = vadd.f32 %v1074, %v1138
      %v1140 = vpop.f32.mrf.mxu0
      %v1141 = vpop.f32.mrf.mxu0
      %v1142 = vadd.f32 %v1077, %v1141
      %v1143 = vpop.f32.mrf.mxu0
      %1144 = vmatprep.mubr.bf16.mxu0 %v592
      %1145 = vmatmul.mubr.bf16.gmra.mxu0 %v591
      %v1146 = vpop.f32.mrf.mxu0
      %v1147 = vadd.f32 %v1082, %v1146
      %v1148 = vpop.f32.mrf.mxu0
      %v1149 = vpop.f32.mrf.mxu0
      %v1150 = vadd.f32 %v1085, %v1149
      %v1151 = vpop.f32.mrf.mxu0
      %1152 = vdwg.mxu0
      %1153 = vmatprep.subr.bf16.mxu0 0
      %1154 = vmatpush1.bf16.msra.mxu0 %v901
      %1155 = vmatprep.subr.bf16.mxu0 0
      %1156 = vmatpush1.bf16.msra.mxu0 %v900
      %1157 = vmatprep.subr.bf16.mxu0 0
      %1158 = vmatpush1.bf16.msra.mxu0 %v899
      %1159 = vmatprep.subr.bf16.mxu0 0
      %1160 = vmatpush1.bf16.msra.mxu0 %v898
      %1161 = vmatprep.subr.bf16.mxu0 0
      %1162 = vmatpush1.bf16.msra.mxu0 %v897
      %1163 = vmatprep.subr.bf16.mxu0 0
      %1164 = vmatpush1.bf16.msra.mxu0 %v896
      %1165 = vmatprep.subr.bf16.mxu0 0
      %1166 = vmatpush1.bf16.msra.mxu0 %v895
      %1167 = vmatprep.subr.bf16.mxu0 0
      %1168 = vmatpush1.bf16.msra.mxu0 %v894
      %1169 = vmatprep.subr.bf16.mxu0 0
      %1170 = vmatpush2.bf16.msra.mxu0 0
      %1171 = vmatprep.subr.bf16.mxu0 0
      %1172 = vmatpush2.bf16.msra.mxu0 0
      %1173 = vmatprep.subr.bf16.mxu0 0
      %1174 = vmatpush2.bf16.msra.mxu0 0
      %1175 = vmatprep.subr.bf16.mxu0 0
      %1176 = vmatpush2.bf16.msra.mxu0 0
      %1177 = vmatprep.subr.bf16.mxu0 0
      %1178 = vmatpush2.bf16.msra.mxu0 0
      %1179 = vmatprep.subr.bf16.mxu0 0
      %1180 = vmatpush2.bf16.msra.mxu0 0
      %1181 = vmatprep.subr.bf16.mxu0 0
      %1182 = vmatpush2.bf16.msra.mxu0 0
      %1183 = vmatprep.subr.bf16.mxu0 0
      %1184 = vmatpush2.bf16.msra.mxu0 0
      %1185 = vmatprep.mubr.bf16.mxu0 0
      %1186 = vmatmul.mubr.bf16.gmra.mxu0 %v572
      %v1187 = vpop.f32.mrf.mxu0
      %v1188 = vadd.f32 %v1123, %v1187
      %v1189 = vpop.f32.mrf.mxu0
      %v1190 = vpop.f32.mrf.mxu0
      %v1191 = vadd.f32 %v1126, %v1190
      %v1192 = vpop.f32.mrf.mxu0
      %1193 = vmatprep.mubr.bf16.mxu0 0
      %1194 = vmatmul.mubr.bf16.gmra.mxu0 %v579
      %v1195 = vpop.f32.mrf.mxu0
      %v1196 = vadd.f32 %v1131, %v1195
      %v1197 = vpop.f32.mrf.mxu0
      %v1198 = vpop.f32.mrf.mxu0
      %v1199 = vadd.f32 %v1134, %v1198
      %v1200 = vpop.f32.mrf.mxu0
      %1201 = vmatprep.mubr.bf16.mxu0 0
      %1202 = vmatmul.mubr.bf16.gmra.mxu0 %v586
      %v1203 = vpop.f32.mrf.mxu0
      %v1204 = vadd.f32 %v1139, %v1203
      %v1205 = vpop.f32.mrf.mxu0
      %v1206 = vpop.f32.mrf.mxu0
      %v1207 = vadd.f32 %v1142, %v1206
      %v1208 = vpop.f32.mrf.mxu0
      %1209 = vmatprep.mubr.bf16.mxu0 0
      %1210 = vmatmul.mubr.bf16.gmra.mxu0 %v593
      %v1211 = vpop.f32.mrf.mxu0
      %v1212 = vadd.f32 %v1147, %v1211
      %v1213 = vpop.f32.mrf.mxu0
      %v1214 = vpop.f32.mrf.mxu0
      %v1215 = vadd.f32 %v1150, %v1214
      %v1216 = vpop.f32.mrf.mxu0
      %1217 = vdwg.mxu0
      %v1218 = vld [vmem:[%s311] sm:$0xff]
      %v1219 = vld [vmem:[%s311 + $0x8] sm:$0xff]
      %v1220 = vld [vmem:[%s311 + $0x10] sm:$0xff]
      %v1221 = vld [vmem:[%s311 + $0x18] sm:$0xf]
      %v1222 = vld [vmem:[%s311 + $0x1c] sm:$0xff]
      %v1223 = vld [vmem:[%s311 + $0x24] sm:$0xff]
      %v1224 = vld [vmem:[%s311 + $0x2c] sm:$0xff]
      %v1225 = vld [vmem:[%s311 + $0x34] sm:$0xf]
      %v1226 = vld [vmem:[%s311 + $0x38] sm:$0xff]
      %v1227 = vld [vmem:[%s311 + $0x40] sm:$0xff]
      %v1228 = vld [vmem:[%s311 + $0x48] sm:$0xff]
      %v1229 = vld [vmem:[%s311 + $0x50] sm:$0xf]
      %v1230 = vld [vmem:[%s311 + $0x54] sm:$0xff]
      %v1231 = vld [vmem:[%s311 + $0x5c] sm:$0xff]
      %v1232 = vld [vmem:[%s311 + $0x64] sm:$0xff]
      %v1233 = vld [vmem:[%s311 + $0x6c] sm:$0xf]
      %v1234 = vld [vmem:[%s311 + $0x70] sm:$0xff]
      %v1235 = vld [vmem:[%s311 + $0x78] sm:$0xff]
      %v1236 = vld [vmem:[%s311 + $0x80] sm:$0xff]
      %v1237 = vld [vmem:[%s311 + $0x88] sm:$0xf]
      %v1238 = vld [vmem:[%s311 + $0x8c] sm:$0xff]
      %v1239 = vld [vmem:[%s311 + $0x94] sm:$0xff]
      %v1240 = vld [vmem:[%s311 + $0x9c] sm:$0xff]
      %v1241 = vld [vmem:[%s311 + $0xa4] sm:$0xf]
      %v1242 = vld [vmem:[%s311 + $0xa8] sm:$0xff]
      %v1243 = vld [vmem:[%s311 + $0xb0] sm:$0xff]
      %v1244 = vld [vmem:[%s311 + $0xb8] sm:$0xff]
      %v1245 = vld [vmem:[%s311 + $0xc0] sm:$0xf]
      %v1246 = vld [vmem:[%s311 + $0xc4] sm:$0xff]
      %v1247 = vld [vmem:[%s311 + $0xcc] sm:$0xff]
      %v1248 = vld [vmem:[%s311 + $0xd4] sm:$0xff]
      %v1249 = vld [vmem:[%s311 + $0xdc] sm:$0xf]
      %v1282 = vunpack.c.l.b16 %v1218
      %v1283 = vunpack.c.h.b16 %v1218
      %v1284 = vunpack.c.l.b16 %v1219
      %v1285 = vunpack.c.h.b16 %v1219
      %v1286 = vunpack.c.l.b16 %v1220
      %v1287 = vunpack.c.h.b16 %v1220
      %v1288 = vunpack.c.l.b16 %v1221
      %v1289 = vunpack.c.l.b16 %v1222
      %v1290 = vunpack.c.h.b16 %v1222
      %v1291 = vunpack.c.l.b16 %v1223
      %v1292 = vunpack.c.h.b16 %v1223
      %v1293 = vunpack.c.l.b16 %v1224
      %v1294 = vunpack.c.h.b16 %v1224
      %v1295 = vunpack.c.l.b16 %v1225
      %v1296 = vunpack.c.l.b16 %v1226
      %v1297 = vunpack.c.h.b16 %v1226
      %v1298 = vunpack.c.l.b16 %v1227
      %v1299 = vunpack.c.h.b16 %v1227
      %v1300 = vunpack.c.l.b16 %v1228
      %v1301 = vunpack.c.h.b16 %v1228
      %v1302 = vunpack.c.l.b16 %v1229
      %v1303 = vunpack.c.l.b16 %v1230
      %v1304 = vunpack.c.h.b16 %v1230
      %v1305 = vunpack.c.l.b16 %v1231
      %v1306 = vunpack.c.h.b16 %v1231
      %v1307 = vunpack.c.l.b16 %v1232
      %v1308 = vunpack.c.h.b16 %v1232
      %v1309 = vunpack.c.l.b16 %v1233
      %v1310 = vunpack.c.l.b16 %v1234
      %v1311 = vunpack.c.h.b16 %v1234
      %v1312 = vunpack.c.l.b16 %v1235
      %v1313 = vunpack.c.h.b16 %v1235
      %v1314 = vunpack.c.l.b16 %v1236
      %v1315 = vunpack.c.h.b16 %v1236
      %v1316 = vunpack.c.l.b16 %v1237
      %v1317 = vunpack.c.l.b16 %v1238
      %v1318 = vunpack.c.h.b16 %v1238
      %v1319 = vunpack.c.l.b16 %v1239
      %v1320 = vunpack.c.h.b16 %v1239
      %v1321 = vunpack.c.l.b16 %v1240
      %v1322 = vunpack.c.h.b16 %v1240
      %v1323 = vunpack.c.l.b16 %v1241
      %v1324 = vunpack.c.l.b16 %v1242
      %v1325 = vunpack.c.h.b16 %v1242
      %v1326 = vunpack.c.l.b16 %v1243
      %v1327 = vunpack.c.h.b16 %v1243
      %v1328 = vunpack.c.l.b16 %v1244
      %v1329 = vunpack.c.h.b16 %v1244
      %v1330 = vunpack.c.l.b16 %v1245
      %v1331 = vunpack.c.l.b16 %v1246
      %v1332 = vunpack.c.h.b16 %v1246
      %v1333 = vunpack.c.l.b16 %v1247
      %v1334 = vunpack.c.h.b16 %v1247
      %v1335 = vunpack.c.l.b16 %v1248
      %v1336 = vunpack.c.h.b16 %v1248
      %v1337 = vunpack.c.l.b16 %v1249
      %v1338 = vpack.c.b16 %v1289, %v1282
      %v1339 = vpack.c.b16 %v1290, %v1283
      %v1340 = vpack.c.b16 %v1291, %v1284
      %v1341 = vpack.c.b16 %v1292, %v1285
      %v1342 = vpack.c.b16 %v1293, %v1286
      %v1343 = vpack.c.b16 %v1294, %v1287
      %v1344 = vpack.c.b16 %v1295, %v1288
      %v1345 = vpack.c.b16 %v1303, %v1296
      %v1346 = vpack.c.b16 %v1304, %v1297
      %v1347 = vpack.c.b16 %v1305, %v1298
      %v1348 = vpack.c.b16 %v1306, %v1299
      %v1349 = vpack.c.b16 %v1307, %v1300
      %v1350 = vpack.c.b16 %v1308, %v1301
      %v1351 = vpack.c.b16 %v1309, %v1302
      %v1352 = vpack.c.b16 %v1317, %v1310
      %v1353 = vpack.c.b16 %v1318, %v1311
      %v1354 = vpack.c.b16 %v1319, %v1312
      %v1355 = vpack.c.b16 %v1320, %v1313
      %v1356 = vpack.c.b16 %v1321, %v1314
      %v1357 = vpack.c.b16 %v1322, %v1315
      %v1358 = vpack.c.b16 %v1323, %v1316
      %v1359 = vpack.c.b16 %v1331, %v1324
      %v1360 = vpack.c.b16 %v1332, %v1325
      %v1361 = vpack.c.b16 %v1333, %v1326
      %v1362 = vpack.c.b16 %v1334, %v1327
      %v1363 = vpack.c.b16 %v1335, %v1328
      %v1364 = vpack.c.b16 %v1336, %v1329
      %v1365 = vpack.c.b16 %v1337, %v1330
      %1394 = vmatprep.subr.bf16.mxu0 0
      %1395 = vmatpush1.bf16.msra.mxu0 %v853
      %1396 = vmatprep.subr.bf16.mxu0 0
      %1397 = vmatpush1.bf16.msra.mxu0 %v852
      %1398 = vmatprep.subr.bf16.mxu0 0
      %1399 = vmatpush1.bf16.msra.mxu0 %v851
      %1400 = vmatprep.subr.bf16.mxu0 0
      %1401 = vmatpush1.bf16.msra.mxu0 %v850
      %1402 = vmatprep.subr.bf16.mxu0 0
      %1403 = vmatpush1.bf16.msra.mxu0 %v849
      %1404 = vmatprep.subr.bf16.mxu0 0
      %1405 = vmatpush1.bf16.msra.mxu0 %v848
      %1406 = vmatprep.subr.bf16.mxu0 0
      %1407 = vmatpush1.bf16.msra.mxu0 %v847
      %1408 = vmatprep.subr.bf16.mxu0 0
      %1409 = vmatpush1.bf16.msra.mxu0 %v846
      %1410 = vmatprep.subr.bf16.mxu0 0
      %1411 = vmatpush2.bf16.msra.mxu0 %v861
      %1412 = vmatprep.subr.bf16.mxu0 0
      %1413 = vmatpush2.bf16.msra.mxu0 %v860
      %1414 = vmatprep.subr.bf16.mxu0 0
      %1415 = vmatpush2.bf16.msra.mxu0 %v859
      %1416 = vmatprep.subr.bf16.mxu0 0
      %1417 = vmatpush2.bf16.msra.mxu0 %v858
      %1418 = vmatprep.subr.bf16.mxu0 0
      %1419 = vmatpush2.bf16.msra.mxu0 %v857
      %1420 = vmatprep.subr.bf16.mxu0 0
      %1421 = vmatpush2.bf16.msra.mxu0 %v856
      %1422 = vmatprep.subr.bf16.mxu0 0
      %1423 = vmatpush2.bf16.msra.mxu0 %v855
      %1424 = vmatprep.subr.bf16.mxu0 0
      %1425 = vmatpush2.bf16.msra.mxu0 %v854
      %1426 = vmatprep.mubr.bf16.mxu0 %v1339
      %1427 = vmatmul.mubr.bf16.gmra.mxu0 %v1338
      %v1428 = vpop.f32.mrf.mxu0
      %v1429 = vadd.f32 0.0, %v1428
      %v1430 = vpop.f32.mrf.mxu0
      %v1431 = vpop.f32.mrf.mxu0
      %v1432 = vadd.f32 0.0, %v1431
      %v1433 = vpop.f32.mrf.mxu0
      %1434 = vmatprep.mubr.bf16.mxu0 %v1346
      %1435 = vmatmul.mubr.bf16.gmra.mxu0 %v1345
      %v1436 = vpop.f32.mrf.mxu0
      %v1437 = vadd.f32 0.0, %v1436
      %v1438 = vpop.f32.mrf.mxu0
      %v1439 = vpop.f32.mrf.mxu0
      %v1440 = vadd.f32 0.0, %v1439
      %v1441 = vpop.f32.mrf.mxu0
      %1442 = vmatprep.mubr.bf16.mxu0 %v1353
      %1443 = vmatmul.mubr.bf16.gmra.mxu0 %v1352
      %v1444 = vpop.f32.mrf.mxu0
      %v1445 = vadd.f32 0.0, %v1444
      %v1446 = vpop.f32.mrf.mxu0
      %v1447 = vpop.f32.mrf.mxu0
      %v1448 = vadd.f32 0.0, %v1447
      %v1449 = vpop.f32.mrf.mxu0
      %1450 = vmatprep.mubr.bf16.mxu0 %v1360
      %1451 = vmatmul.mubr.bf16.gmra.mxu0 %v1359
      %v1452 = vpop.f32.mrf.mxu0
      %v1453 = vadd.f32 0.0, %v1452
      %v1454 = vpop.f32.mrf.mxu0
      %v1455 = vpop.f32.mrf.mxu0
      %v1456 = vadd.f32 0.0, %v1455
      %v1457 = vpop.f32.mrf.mxu0
      %1458 = vdwg.mxu0
      %1459 = vmatprep.subr.bf16.mxu0 0
      %1460 = vmatpush1.bf16.msra.mxu0 %v869
      %1461 = vmatprep.subr.bf16.mxu0 0
      %1462 = vmatpush1.bf16.msra.mxu0 %v868
      %1463 = vmatprep.subr.bf16.mxu0 0
      %1464 = vmatpush1.bf16.msra.mxu0 %v867
      %1465 = vmatprep.subr.bf16.mxu0 0
      %1466 = vmatpush1.bf16.msra.mxu0 %v866
      %1467 = vmatprep.subr.bf16.mxu0 0
      %1468 = vmatpush1.bf16.msra.mxu0 %v865
      %1469 = vmatprep.subr.bf16.mxu0 0
      %1470 = vmatpush1.bf16.msra.mxu0 %v864
      %1471 = vmatprep.subr.bf16.mxu0 0
      %1472 = vmatpush1.bf16.msra.mxu0 %v863
      %1473 = vmatprep.subr.bf16.mxu0 0
      %1474 = vmatpush1.bf16.msra.mxu0 %v862
      %1475 = vmatprep.subr.bf16.mxu0 0
      %1476 = vmatpush2.bf16.msra.mxu0 %v877
      %1477 = vmatprep.subr.bf16.mxu0 0
      %1478 = vmatpush2.bf16.msra.mxu0 %v876
      %1479 = vmatprep.subr.bf16.mxu0 0
      %1480 = vmatpush2.bf16.msra.mxu0 %v875
      %1481 = vmatprep.subr.bf16.mxu0 0
      %1482 = vmatpush2.bf16.msra.mxu0 %v874
      %1483 = vmatprep.subr.bf16.mxu0 0
      %1484 = vmatpush2.bf16.msra.mxu0 %v873
      %1485 = vmatprep.subr.bf16.mxu0 0
      %1486 = vmatpush2.bf16.msra.mxu0 %v872
      %1487 = vmatprep.subr.bf16.mxu0 0
      %1488 = vmatpush2.bf16.msra.mxu0 %v871
      %1489 = vmatprep.subr.bf16.mxu0 0
      %1490 = vmatpush2.bf16.msra.mxu0 %v870
      %1491 = vmatprep.mubr.bf16.mxu0 %v1341
      %1492 = vmatmul.mubr.bf16.gmra.mxu0 %v1340
      %v1493 = vpop.f32.mrf.mxu0
      %v1494 = vadd.f32 %v1429, %v1493
      %v1495 = vpop.f32.mrf.mxu0
      %v1496 = vpop.f32.mrf.mxu0
      %v1497 = vadd.f32 %v1432, %v1496
      %v1498 = vpop.f32.mrf.mxu0
      %1499 = vmatprep.mubr.bf16.mxu0 %v1348
      %1500 = vmatmul.mubr.bf16.gmra.mxu0 %v1347
      %v1501 = vpop.f32.mrf.mxu0
      %v1502 = vadd.f32 %v1437, %v1501
      %v1503 = vpop.f32.mrf.mxu0
      %v1504 = vpop.f32.mrf.mxu0
      %v1505 = vadd.f32 %v1440, %v1504
      %v1506 = vpop.f32.mrf.mxu0
      %1507 = vmatprep.mubr.bf16.mxu0 %v1355
      %1508 = vmatmul.mubr.bf16.gmra.mxu0 %v1354
      %v1509 = vpop.f32.mrf.mxu0
      %v1510 = vadd.f32 %v1445, %v1509
      %v1511 = vpop.f32.mrf.mxu0
      %v1512 = vpop.f32.mrf.mxu0
      %v1513 = vadd.f32 %v1448, %v1512
      %v1514 = vpop.f32.mrf.mxu0
      %1515 = vmatprep.mubr.bf16.mxu0 %v1362
      %1516 = vmatmul.mubr.bf16.gmra.mxu0 %v1361
      %v1517 = vpop.f32.mrf.mxu0
      %v1518 = vadd.f32 %v1453, %v1517
      %v1519 = vpop.f32.mrf.mxu0
      %v1520 = vpop.f32.mrf.mxu0
      %v1521 = vadd.f32 %v1456, %v1520
      %v1522 = vpop.f32.mrf.mxu0
      %1523 = vdwg.mxu0
      %1524 = vmatprep.subr.bf16.mxu0 0
      %1525 = vmatpush1.bf16.msra.mxu0 %v885
      %1526 = vmatprep.subr.bf16.mxu0 0
      %1527 = vmatpush1.bf16.msra.mxu0 %v884
      %1528 = vmatprep.subr.bf16.mxu0 0
      %1529 = vmatpush1.bf16.msra.mxu0 %v883
      %1530 = vmatprep.subr.bf16.mxu0 0
      %1531 = vmatpush1.bf16.msra.mxu0 %v882
      %1532 = vmatprep.subr.bf16.mxu0 0
      %1533 = vmatpush1.bf16.msra.mxu0 %v881
      %1534 = vmatprep.subr.bf16.mxu0 0
      %1535 = vmatpush1.bf16.msra.mxu0 %v880
      %1536 = vmatprep.subr.bf16.mxu0 0
      %1537 = vmatpush1.bf16.msra.mxu0 %v879
      %1538 = vmatprep.subr.bf16.mxu0 0
      %1539 = vmatpush1.bf16.msra.mxu0 %v878
      %1540 = vmatprep.subr.bf16.mxu0 0
      %1541 = vmatpush2.bf16.msra.mxu0 %v893
      %1542 = vmatprep.subr.bf16.mxu0 0
      %1543 = vmatpush2.bf16.msra.mxu0 %v892
      %1544 = vmatprep.subr.bf16.mxu0 0
      %1545 = vmatpush2.bf16.msra.mxu0 %v891
      %1546 = vmatprep.subr.bf16.mxu0 0
      %1547 = vmatpush2.bf16.msra.mxu0 %v890
      %1548 = vmatprep.subr.bf16.mxu0 0
      %1549 = vmatpush2.bf16.msra.mxu0 %v889
      %1550 = vmatprep.subr.bf16.mxu0 0
      %1551 = vmatpush2.bf16.msra.mxu0 %v888
      %1552 = vmatprep.subr.bf16.mxu0 0
      %1553 = vmatpush2.bf16.msra.mxu0 %v887
      %1554 = vmatprep.subr.bf16.mxu0 0
      %1555 = vmatpush2.bf16.msra.mxu0 %v886
      %1556 = vmatprep.mubr.bf16.mxu0 %v1343
      %1557 = vmatmul.mubr.bf16.gmra.mxu0 %v1342
      %v1558 = vpop.f32.mrf.mxu0
      %v1559 = vadd.f32 %v1494, %v1558
      %v1560 = vpop.f32.mrf.mxu0
      %v1561 = vpop.f32.mrf.mxu0
      %v1562 = vadd.f32 %v1497, %v1561
      %v1563 = vpop.f32.mrf.mxu0
      %1564 = vmatprep.mubr.bf16.mxu0 %v1350
      %1565 = vmatmul.mubr.bf16.gmra.mxu0 %v1349
      %v1566 = vpop.f32.mrf.mxu0
      %v1567 = vadd.f32 %v1502, %v1566
      %v1568 = vpop.f32.mrf.mxu0
      %v1569 = vpop.f32.mrf.mxu0
      %v1570 = vadd.f32 %v1505, %v1569
      %v1571 = vpop.f32.mrf.mxu0
      %1572 = vmatprep.mubr.bf16.mxu0 %v1357
      %1573 = vmatmul.mubr.bf16.gmra.mxu0 %v1356
      %v1574 = vpop.f32.mrf.mxu0
      %v1575 = vadd.f32 %v1510, %v1574
      %v1576 = vpop.f32.mrf.mxu0
      %v1577 = vpop.f32.mrf.mxu0
      %v1578 = vadd.f32 %v1513, %v1577
      %v1579 = vpop.f32.mrf.mxu0
      %1580 = vmatprep.mubr.bf16.mxu0 %v1364
      %1581 = vmatmul.mubr.bf16.gmra.mxu0 %v1363
      %v1582 = vpop.f32.mrf.mxu0
      %v1583 = vadd.f32 %v1518, %v1582
      %v1584 = vpop.f32.mrf.mxu0
      %v1585 = vpop.f32.mrf.mxu0
      %v1586 = vadd.f32 %v1521, %v1585
      %v1587 = vpop.f32.mrf.mxu0
      %1588 = vdwg.mxu0
      %1589 = vmatprep.subr.bf16.mxu0 0
      %1590 = vmatpush1.bf16.msra.mxu0 %v901
      %1591 = vmatprep.subr.bf16.mxu0 0
      %1592 = vmatpush1.bf16.msra.mxu0 %v900
      %1593 = vmatprep.subr.bf16.mxu0 0
      %1594 = vmatpush1.bf16.msra.mxu0 %v899
      %1595 = vmatprep.subr.bf16.mxu0 0
      %1596 = vmatpush1.bf16.msra.mxu0 %v898
      %1597 = vmatprep.subr.bf16.mxu0 0
      %1598 = vmatpush1.bf16.msra.mxu0 %v897
      %1599 = vmatprep.subr.bf16.mxu0 0
      %1600 = vmatpush1.bf16.msra.mxu0 %v896
      %1601 = vmatprep.subr.bf16.mxu0 0
      %1602 = vmatpush1.bf16.msra.mxu0 %v895
      %1603 = vmatprep.subr.bf16.mxu0 0
      %1604 = vmatpush1.bf16.msra.mxu0 %v894
      %1605 = vmatprep.subr.bf16.mxu0 0
      %1606 = vmatpush2.bf16.msra.mxu0 0
      %1607 = vmatprep.subr.bf16.mxu0 0
      %1608 = vmatpush2.bf16.msra.mxu0 0
      %1609 = vmatprep.subr.bf16.mxu0 0
      %1610 = vmatpush2.bf16.msra.mxu0 0
      %1611 = vmatprep.subr.bf16.mxu0 0
      %1612 = vmatpush2.bf16.msra.mxu0 0
      %1613 = vmatprep.subr.bf16.mxu0 0
      %1614 = vmatpush2.bf16.msra.mxu0 0
      %1615 = vmatprep.subr.bf16.mxu0 0
      %1616 = vmatpush2.bf16.msra.mxu0 0
      %1617 = vmatprep.subr.bf16.mxu0 0
      %1618 = vmatpush2.bf16.msra.mxu0 0
      %1619 = vmatprep.subr.bf16.mxu0 0
      %1620 = vmatpush2.bf16.msra.mxu0 0
      %1621 = vmatprep.mubr.bf16.mxu0 0
      %1622 = vmatmul.mubr.bf16.gmra.mxu0 %v1344
      %v1623 = vpop.f32.mrf.mxu0
      %v1624 = vadd.f32 %v1559, %v1623
      %v1625 = vpop.f32.mrf.mxu0
      %v1626 = vpop.f32.mrf.mxu0
      %v1627 = vadd.f32 %v1562, %v1626
      %v1628 = vpop.f32.mrf.mxu0
      %1629 = vmatprep.mubr.bf16.mxu0 0
      %1630 = vmatmul.mubr.bf16.gmra.mxu0 %v1351
      %v1631 = vpop.f32.mrf.mxu0
      %v1632 = vadd.f32 %v1567, %v1631
      %v1633 = vpop.f32.mrf.mxu0
      %v1634 = vpop.f32.mrf.mxu0
      %v1635 = vadd.f32 %v1570, %v1634
      %v1636 = vpop.f32.mrf.mxu0
      %1637 = vmatprep.mubr.bf16.mxu0 0
      %1638 = vmatmul.mubr.bf16.gmra.mxu0 %v1358
      %v1639 = vpop.f32.mrf.mxu0
      %v1640 = vadd.f32 %v1575, %v1639
      %v1641 = vpop.f32.mrf.mxu0
      %v1642 = vpop.f32.mrf.mxu0
      %v1643 = vadd.f32 %v1578, %v1642
      %v1644 = vpop.f32.mrf.mxu0
      %1645 = vmatprep.mubr.bf16.mxu0 0
      %1646 = vmatmul.mubr.bf16.gmra.mxu0 %v1365
      %v1647 = vpop.f32.mrf.mxu0
      %v1648 = vadd.f32 %v1583, %v1647
      %v1649 = vpop.f32.mrf.mxu0
      %v1650 = vpop.f32.mrf.mxu0
      %v1651 = vadd.f32 %v1586, %v1650
      %v1652 = vpop.f32.mrf.mxu0
      %1653 = vdwg.mxu0
      %v1654 = vld [vmem:[%s318] sm:$0xff]
      %v1655 = vld [vmem:[%s318 + $0x8] sm:$0xff]
      %v1656 = vld [vmem:[%s318 + $0x10] sm:$0xff]
      %v1657 = vld [vmem:[%s318 + $0x18] sm:$0xf]
      %v1658 = vld [vmem:[%s318 + $0x1c] sm:$0xff]
      %v1659 = vld [vmem:[%s318 + $0x24] sm:$0xff]
      %v1660 = vld [vmem:[%s318 + $0x2c] sm:$0xff]
      %v1661 = vld [vmem:[%s318 + $0x34] sm:$0xf]
      %v1662 = vld [vmem:[%s318 + $0x38] sm:$0xff]
      %v1663 = vld [vmem:[%s318 + $0x40] sm:$0xff]
      %v1664 = vld [vmem:[%s318 + $0x48] sm:$0xff]
      %v1665 = vld [vmem:[%s318 + $0x50] sm:$0xf]
      %v1666 = vld [vmem:[%s318 + $0x54] sm:$0xff]
      %v1667 = vld [vmem:[%s318 + $0x5c] sm:$0xff]
      %v1668 = vld [vmem:[%s318 + $0x64] sm:$0xff]
      %v1669 = vld [vmem:[%s318 + $0x6c] sm:$0xf]
      %v1670 = vld [vmem:[%s318 + $0x70] sm:$0xff]
      %v1671 = vld [vmem:[%s318 + $0x78] sm:$0xff]
      %v1672 = vld [vmem:[%s318 + $0x80] sm:$0xff]
      %v1673 = vld [vmem:[%s318 + $0x88] sm:$0xf]
      %v1674 = vld [vmem:[%s318 + $0x8c] sm:$0xff]
      %v1675 = vld [vmem:[%s318 + $0x94] sm:$0xff]
      %v1676 = vld [vmem:[%s318 + $0x9c] sm:$0xff]
      %v1677 = vld [vmem:[%s318 + $0xa4] sm:$0xf]
      %v1678 = vld [vmem:[%s318 + $0xa8] sm:$0xff]
      %v1679 = vld [vmem:[%s318 + $0xb0] sm:$0xff]
      %v1680 = vld [vmem:[%s318 + $0xb8] sm:$0xff]
      %v1681 = vld [vmem:[%s318 + $0xc0] sm:$0xf]
      %v1682 = vld [vmem:[%s318 + $0xc4] sm:$0xff]
      %v1683 = vld [vmem:[%s318 + $0xcc] sm:$0xff]
      %v1684 = vld [vmem:[%s318 + $0xd4] sm:$0xff]
      %v1685 = vld [vmem:[%s318 + $0xdc] sm:$0xf]
      %v1718 = vunpack.c.l.b16 %v1654
      %v1719 = vunpack.c.h.b16 %v1654
      %v1720 = vunpack.c.l.b16 %v1655
      %v1721 = vunpack.c.h.b16 %v1655
      %v1722 = vunpack.c.l.b16 %v1656
      %v1723 = vunpack.c.h.b16 %v1656
      %v1724 = vunpack.c.l.b16 %v1657
      %v1725 = vunpack.c.l.b16 %v1658
      %v1726 = vunpack.c.h.b16 %v1658
      %v1727 = vunpack.c.l.b16 %v1659
      %v1728 = vunpack.c.h.b16 %v1659
      %v1729 = vunpack.c.l.b16 %v1660
      %v1730 = vunpack.c.h.b16 %v1660
      %v1731 = vunpack.c.l.b16 %v1661
      %v1732 = vunpack.c.l.b16 %v1662
      %v1733 = vunpack.c.h.b16 %v1662
      %v1734 = vunpack.c.l.b16 %v1663
      %v1735 = vunpack.c.h.b16 %v1663
      %v1736 = vunpack.c.l.b16 %v1664
      %v1737 = vunpack.c.h.b16 %v1664
      %v1738 = vunpack.c.l.b16 %v1665
      %v1739 = vunpack.c.l.b16 %v1666
      %v1740 = vunpack.c.h.b16 %v1666
      %v1741 = vunpack.c.l.b16 %v1667
      %v1742 = vunpack.c.h.b16 %v1667
      %v1743 = vunpack.c.l.b16 %v1668
      %v1744 = vunpack.c.h.b16 %v1668
      %v1745 = vunpack.c.l.b16 %v1669
      %v1746 = vunpack.c.l.b16 %v1670
      %v1747 = vunpack.c.h.b16 %v1670
      %v1748 = vunpack.c.l.b16 %v1671
      %v1749 = vunpack.c.h.b16 %v1671
      %v1750 = vunpack.c.l.b16 %v1672
      %v1751 = vunpack.c.h.b16 %v1672
      %v1752 = vunpack.c.l.b16 %v1673
      %v1753 = vunpack.c.l.b16 %v1674
      %v1754 = vunpack.c.h.b16 %v1674
      %v1755 = vunpack.c.l.b16 %v1675
      %v1756 = vunpack.c.h.b16 %v1675
      %v1757 = vunpack.c.l.b16 %v1676
      %v1758 = vunpack.c.h.b16 %v1676
      %v1759 = vunpack.c.l.b16 %v1677
      %v1760 = vunpack.c.l.b16 %v1678
      %v1761 = vunpack.c.h.b16 %v1678
      %v1762 = vunpack.c.l.b16 %v1679
      %v1763 = vunpack.c.h.b16 %v1679
      %v1764 = vunpack.c.l.b16 %v1680
      %v1765 = vunpack.c.h.b16 %v1680
      %v1766 = vunpack.c.l.b16 %v1681
      %v1767 = vunpack.c.l.b16 %v1682
      %v1768 = vunpack.c.h.b16 %v1682
      %v1769 = vunpack.c.l.b16 %v1683
      %v1770 = vunpack.c.h.b16 %v1683
      %v1771 = vunpack.c.l.b16 %v1684
      %v1772 = vunpack.c.h.b16 %v1684
      %v1773 = vunpack.c.l.b16 %v1685
      %v1774 = vpack.c.b16 %v1725, %v1718
      %v1775 = vpack.c.b16 %v1726, %v1719
      %v1776 = vpack.c.b16 %v1727, %v1720
      %v1777 = vpack.c.b16 %v1728, %v1721
      %v1778 = vpack.c.b16 %v1729, %v1722
      %v1779 = vpack.c.b16 %v1730, %v1723
      %v1780 = vpack.c.b16 %v1731, %v1724
      %v1781 = vpack.c.b16 %v1739, %v1732
      %v1782 = vpack.c.b16 %v1740, %v1733
      %v1783 = vpack.c.b16 %v1741, %v1734
      %v1784 = vpack.c.b16 %v1742, %v1735
      %v1785 = vpack.c.b16 %v1743, %v1736
      %v1786 = vpack.c.b16 %v1744, %v1737
      %v1787 = vpack.c.b16 %v1745, %v1738
      %v1788 = vpack.c.b16 %v1753, %v1746
      %v1789 = vpack.c.b16 %v1754, %v1747
      %v1790 = vpack.c.b16 %v1755, %v1748
      %v1791 = vpack.c.b16 %v1756, %v1749
      %v1792 = vpack.c.b16 %v1757, %v1750
      %v1793 = vpack.c.b16 %v1758, %v1751
      %v1794 = vpack.c.b16 %v1759, %v1752
      %v1795 = vpack.c.b16 %v1767, %v1760
      %v1796 = vpack.c.b16 %v1768, %v1761
      %v1797 = vpack.c.b16 %v1769, %v1762
      %v1798 = vpack.c.b16 %v1770, %v1763
      %v1799 = vpack.c.b16 %v1771, %v1764
      %v1800 = vpack.c.b16 %v1772, %v1765
      %v1801 = vpack.c.b16 %v1773, %v1766
      %1830 = vmatprep.subr.bf16.mxu0 0
      %1831 = vmatpush1.bf16.msra.mxu0 %v853
      %1832 = vmatprep.subr.bf16.mxu0 0
      %1833 = vmatpush1.bf16.msra.mxu0 %v852
      %1834 = vmatprep.subr.bf16.mxu0 0
      %1835 = vmatpush1.bf16.msra.mxu0 %v851
      %1836 = vmatprep.subr.bf16.mxu0 0
      %1837 = vmatpush1.bf16.msra.mxu0 %v850
      %1838 = vmatprep.subr.bf16.mxu0 0
      %1839 = vmatpush1.bf16.msra.mxu0 %v849
      %1840 = vmatprep.subr.bf16.mxu0 0
      %1841 = vmatpush1.bf16.msra.mxu0 %v848
      %1842 = vmatprep.subr.bf16.mxu0 0
      %1843 = vmatpush1.bf16.msra.mxu0 %v847
      %1844 = vmatprep.subr.bf16.mxu0 0
      %1845 = vmatpush1.bf16.msra.mxu0 %v846
      %1846 = vmatprep.subr.bf16.mxu0 0
      %1847 = vmatpush2.bf16.msra.mxu0 %v861
      %1848 = vmatprep.subr.bf16.mxu0 0
      %1849 = vmatpush2.bf16.msra.mxu0 %v860
      %1850 = vmatprep.subr.bf16.mxu0 0
      %1851 = vmatpush2.bf16.msra.mxu0 %v859
      %1852 = vmatprep.subr.bf16.mxu0 0
      %1853 = vmatpush2.bf16.msra.mxu0 %v858
      %1854 = vmatprep.subr.bf16.mxu0 0
      %1855 = vmatpush2.bf16.msra.mxu0 %v857
      %1856 = vmatprep.subr.bf16.mxu0 0
      %1857 = vmatpush2.bf16.msra.mxu0 %v856
      %1858 = vmatprep.subr.bf16.mxu0 0
      %1859 = vmatpush2.bf16.msra.mxu0 %v855
      %1860 = vmatprep.subr.bf16.mxu0 0
      %1861 = vmatpush2.bf16.msra.mxu0 %v854
      %1862 = vmatprep.mubr.bf16.mxu0 %v1775
      %1863 = vmatmul.mubr.bf16.gmra.mxu0 %v1774
      %v1864 = vpop.f32.mrf.mxu0
      %v1865 = vadd.f32 0.0, %v1864
      %v1866 = vpop.f32.mrf.mxu0
      %v1867 = vpop.f32.mrf.mxu0
      %v1868 = vadd.f32 0.0, %v1867
      %v1869 = vpop.f32.mrf.mxu0
      %1870 = vmatprep.mubr.bf16.mxu0 %v1782
      %1871 = vmatmul.mubr.bf16.gmra.mxu0 %v1781
      %v1872 = vpop.f32.mrf.mxu0
      %v1873 = vadd.f32 0.0, %v1872
      %v1874 = vpop.f32.mrf.mxu0
      %v1875 = vpop.f32.mrf.mxu0
      %v1876 = vadd.f32 0.0, %v1875
      %v1877 = vpop.f32.mrf.mxu0
      %1878 = vmatprep.mubr.bf16.mxu0 %v1789
      %1879 = vmatmul.mubr.bf16.gmra.mxu0 %v1788
      %v1880 = vpop.f32.mrf.mxu0
      %v1881 = vadd.f32 0.0, %v1880
      %v1882 = vpop.f32.mrf.mxu0
      %v1883 = vpop.f32.mrf.mxu0
      %v1884 = vadd.f32 0.0, %v1883
      %v1885 = vpop.f32.mrf.mxu0
      %1886 = vmatprep.mubr.bf16.mxu0 %v1796
      %1887 = vmatmul.mubr.bf16.gmra.mxu0 %v1795
      %v1888 = vpop.f32.mrf.mxu0
      %v1889 = vadd.f32 0.0, %v1888
      %v1890 = vpop.f32.mrf.mxu0
      %v1891 = vpop.f32.mrf.mxu0
      %v1892 = vadd.f32 0.0, %v1891
      %v1893 = vpop.f32.mrf.mxu0
      %1894 = vdwg.mxu0
      %1895 = vmatprep.subr.bf16.mxu0 0
      %1896 = vmatpush1.bf16.msra.mxu0 %v869
      %1897 = vmatprep.subr.bf16.mxu0 0
      %1898 = vmatpush1.bf16.msra.mxu0 %v868
      %1899 = vmatprep.subr.bf16.mxu0 0
      %1900 = vmatpush1.bf16.msra.mxu0 %v867
      %1901 = vmatprep.subr.bf16.mxu0 0
      %1902 = vmatpush1.bf16.msra.mxu0 %v866
      %1903 = vmatprep.subr.bf16.mxu0 0
      %1904 = vmatpush1.bf16.msra.mxu0 %v865
      %1905 = vmatprep.subr.bf16.mxu0 0
      %1906 = vmatpush1.bf16.msra.mxu0 %v864
      %1907 = vmatprep.subr.bf16.mxu0 0
      %1908 = vmatpush1.bf16.msra.mxu0 %v863
      %1909 = vmatprep.subr.bf16.mxu0 0
      %1910 = vmatpush1.bf16.msra.mxu0 %v862
      %1911 = vmatprep.subr.bf16.mxu0 0
      %1912 = vmatpush2.bf16.msra.mxu0 %v877
      %1913 = vmatprep.subr.bf16.mxu0 0
      %1914 = vmatpush2.bf16.msra.mxu0 %v876
      %1915 = vmatprep.subr.bf16.mxu0 0
      %1916 = vmatpush2.bf16.msra.mxu0 %v875
      %1917 = vmatprep.subr.bf16.mxu0 0
      %1918 = vmatpush2.bf16.msra.mxu0 %v874
      %1919 = vmatprep.subr.bf16.mxu0 0
      %1920 = vmatpush2.bf16.msra.mxu0 %v873
      %1921 = vmatprep.subr.bf16.mxu0 0
      %1922 = vmatpush2.bf16.msra.mxu0 %v872
      %1923 = vmatprep.subr.bf16.mxu0 0
      %1924 = vmatpush2.bf16.msra.mxu0 %v871
      %1925 = vmatprep.subr.bf16.mxu0 0
      %1926 = vmatpush2.bf16.msra.mxu0 %v870
      %1927 = vmatprep.mubr.bf16.mxu0 %v1777
      %1928 = vmatmul.mubr.bf16.gmra.mxu0 %v1776
      %v1929 = vpop.f32.mrf.mxu0
      %v1930 = vadd.f32 %v1865, %v1929
      %v1931 = vpop.f32.mrf.mxu0
      %v1932 = vpop.f32.mrf.mxu0
      %v1933 = vadd.f32 %v1868, %v1932
      %v1934 = vpop.f32.mrf.mxu0
      %1935 = vmatprep.mubr.bf16.mxu0 %v1784
      %1936 = vmatmul.mubr.bf16.gmra.mxu0 %v1783
      %v1937 = vpop.f32.mrf.mxu0
      %v1938 = vadd.f32 %v1873, %v1937
      %v1939 = vpop.f32.mrf.mxu0
      %v1940 = vpop.f32.mrf.mxu0
      %v1941 = vadd.f32 %v1876, %v1940
      %v1942 = vpop.f32.mrf.mxu0
      %1943 = vmatprep.mubr.bf16.mxu0 %v1791
      %1944 = vmatmul.mubr.bf16.gmra.mxu0 %v1790
      %v1945 = vpop.f32.mrf.mxu0
      %v1946 = vadd.f32 %v1881, %v1945
      %v1947 = vpop.f32.mrf.mxu0
      %v1948 = vpop.f32.mrf.mxu0
      %v1949 = vadd.f32 %v1884, %v1948
      %v1950 = vpop.f32.mrf.mxu0
      %1951 = vmatprep.mubr.bf16.mxu0 %v1798
      %1952 = vmatmul.mubr.bf16.gmra.mxu0 %v1797
      %v1953 = vpop.f32.mrf.mxu0
      %v1954 = vadd.f32 %v1889, %v1953
      %v1955 = vpop.f32.mrf.mxu0
      %v1956 = vpop.f32.mrf.mxu0
      %v1957 = vadd.f32 %v1892, %v1956
      %v1958 = vpop.f32.mrf.mxu0
      %1959 = vdwg.mxu0
      %1960 = vmatprep.subr.bf16.mxu0 0
      %1961 = vmatpush1.bf16.msra.mxu0 %v885
      %1962 = vmatprep.subr.bf16.mxu0 0
      %1963 = vmatpush1.bf16.msra.mxu0 %v884
      %1964 = vmatprep.subr.bf16.mxu0 0
      %1965 = vmatpush1.bf16.msra.mxu0 %v883
      %1966 = vmatprep.subr.bf16.mxu0 0
      %1967 = vmatpush1.bf16.msra.mxu0 %v882
      %1968 = vmatprep.subr.bf16.mxu0 0
      %1969 = vmatpush1.bf16.msra.mxu0 %v881
      %1970 = vmatprep.subr.bf16.mxu0 0
      %1971 = vmatpush1.bf16.msra.mxu0 %v880
      %1972 = vmatprep.subr.bf16.mxu0 0
      %1973 = vmatpush1.bf16.msra.mxu0 %v879
      %1974 = vmatprep.subr.bf16.mxu0 0
      %1975 = vmatpush1.bf16.msra.mxu0 %v878
      %1976 = vmatprep.subr.bf16.mxu0 0
      %1977 = vmatpush2.bf16.msra.mxu0 %v893
      %1978 = vmatprep.subr.bf16.mxu0 0
      %1979 = vmatpush2.bf16.msra.mxu0 %v892
      %1980 = vmatprep.subr.bf16.mxu0 0
      %1981 = vmatpush2.bf16.msra.mxu0 %v891
      %1982 = vmatprep.subr.bf16.mxu0 0
      %1983 = vmatpush2.bf16.msra.mxu0 %v890
      %1984 = vmatprep.subr.bf16.mxu0 0
      %1985 = vmatpush2.bf16.msra.mxu0 %v889
      %1986 = vmatprep.subr.bf16.mxu0 0
      %1987 = vmatpush2.bf16.msra.mxu0 %v888
      %1988 = vmatprep.subr.bf16.mxu0 0
      %1989 = vmatpush2.bf16.msra.mxu0 %v887
      %1990 = vmatprep.subr.bf16.mxu0 0
      %1991 = vmatpush2.bf16.msra.mxu0 %v886
      %1992 = vmatprep.mubr.bf16.mxu0 %v1779
      %1993 = vmatmul.mubr.bf16.gmra.mxu0 %v1778
      %v1994 = vpop.f32.mrf.mxu0
      %v1995 = vadd.f32 %v1930, %v1994
      %v1996 = vpop.f32.mrf.mxu0
      %v1997 = vpop.f32.mrf.mxu0
      %v1998 = vadd.f32 %v1933, %v1997
      %v1999 = vpop.f32.mrf.mxu0
      %2000 = vmatprep.mubr.bf16.mxu0 %v1786
      %2001 = vmatmul.mubr.bf16.gmra.mxu0 %v1785
      %v2002 = vpop.f32.mrf.mxu0
      %v2003 = vadd.f32 %v1938, %v2002
      %v2004 = vpop.f32.mrf.mxu0
      %v2005 = vpop.f32.mrf.mxu0
      %v2006 = vadd.f32 %v1941, %v2005
      %v2007 = vpop.f32.mrf.mxu0
      %2008 = vmatprep.mubr.bf16.mxu0 %v1793
      %2009 = vmatmul.mubr.bf16.gmra.mxu0 %v1792
      %v2010 = vpop.f32.mrf.mxu0
      %v2011 = vadd.f32 %v1946, %v2010
      %v2012 = vpop.f32.mrf.mxu0
      %v2013 = vpop.f32.mrf.mxu0
      %v2014 = vadd.f32 %v1949, %v2013
      %v2015 = vpop.f32.mrf.mxu0
      %2016 = vmatprep.mubr.bf16.mxu0 %v1800
      %2017 = vmatmul.mubr.bf16.gmra.mxu0 %v1799
      %v2018 = vpop.f32.mrf.mxu0
      %v2019 = vadd.f32 %v1954, %v2018
      %v2020 = vpop.f32.mrf.mxu0
      %v2021 = vpop.f32.mrf.mxu0
      %v2022 = vadd.f32 %v1957, %v2021
      %v2023 = vpop.f32.mrf.mxu0
      %2024 = vdwg.mxu0
      %2025 = vmatprep.subr.bf16.mxu0 0
      %2026 = vmatpush1.bf16.msra.mxu0 %v901
      %2027 = vmatprep.subr.bf16.mxu0 0
      %2028 = vmatpush1.bf16.msra.mxu0 %v900
      %2029 = vmatprep.subr.bf16.mxu0 0
      %2030 = vmatpush1.bf16.msra.mxu0 %v899
      %2031 = vmatprep.subr.bf16.mxu0 0
      %2032 = vmatpush1.bf16.msra.mxu0 %v898
      %2033 = vmatprep.subr.bf16.mxu0 0
      %2034 = vmatpush1.bf16.msra.mxu0 %v897
      %2035 = vmatprep.subr.bf16.mxu0 0
      %2036 = vmatpush1.bf16.msra.mxu0 %v896
      %2037 = vmatprep.subr.bf16.mxu0 0
      %2038 = vmatpush1.bf16.msra.mxu0 %v895
      %2039 = vmatprep.subr.bf16.mxu0 0
      %2040 = vmatpush1.bf16.msra.mxu0 %v894
      %2041 = vmatprep.subr.bf16.mxu0 0
      %2042 = vmatpush2.bf16.msra.mxu0 0
      %2043 = vmatprep.subr.bf16.mxu0 0
      %2044 = vmatpush2.bf16.msra.mxu0 0
      %2045 = vmatprep.subr.bf16.mxu0 0
      %2046 = vmatpush2.bf16.msra.mxu0 0
      %2047 = vmatprep.subr.bf16.mxu0 0
      %2048 = vmatpush2.bf16.msra.mxu0 0
      %2049 = vmatprep.subr.bf16.mxu0 0
      %2050 = vmatpush2.bf16.msra.mxu0 0
      %2051 = vmatprep.subr.bf16.mxu0 0
      %2052 = vmatpush2.bf16.msra.mxu0 0
      %2053 = vmatprep.subr.bf16.mxu0 0
      %2054 = vmatpush2.bf16.msra.mxu0 0
      %2055 = vmatprep.subr.bf16.mxu0 0
      %2056 = vmatpush2.bf16.msra.mxu0 0
      %2057 = vmatprep.mubr.bf16.mxu0 0
      %2058 = vmatmul.mubr.bf16.gmra.mxu0 %v1780
      %v2059 = vpop.f32.mrf.mxu0
      %v2060 = vadd.f32 %v1995, %v2059
      %v2061 = vpop.f32.mrf.mxu0
      %v2062 = vpop.f32.mrf.mxu0
      %v2063 = vadd.f32 %v1998, %v2062
      %v2064 = vpop.f32.mrf.mxu0
      %2065 = vmatprep.mubr.bf16.mxu0 0
      %2066 = vmatmul.mubr.bf16.gmra.mxu0 %v1787
      %v2067 = vpop.f32.mrf.mxu0
      %v2068 = vadd.f32 %v2003, %v2067
      %v2069 = vpop.f32.mrf.mxu0
      %v2070 = vpop.f32.mrf.mxu0
      %v2071 = vadd.f32 %v2006, %v2070
      %v2072 = vpop.f32.mrf.mxu0
      %2073 = vmatprep.mubr.bf16.mxu0 0
      %2074 = vmatmul.mubr.bf16.gmra.mxu0 %v1794
      %v2075 = vpop.f32.mrf.mxu0
      %v2076 = vadd.f32 %v2011, %v2075
      %v2077 = vpop.f32.mrf.mxu0
      %v2078 = vpop.f32.mrf.mxu0
      %v2079 = vadd.f32 %v2014, %v2078
      %v2080 = vpop.f32.mrf.mxu0
      %2081 = vmatprep.mubr.bf16.mxu0 0
      %2082 = vmatmul.mubr.bf16.gmra.mxu0 %v1801
      %v2083 = vpop.f32.mrf.mxu0
      %v2084 = vadd.f32 %v2019, %v2083
      %v2085 = vpop.f32.mrf.mxu0
      %v2086 = vpop.f32.mrf.mxu0
      %v2087 = vadd.f32 %v2022, %v2086
      %v2088 = vpop.f32.mrf.mxu0
      %2089 = vdwg.mxu0
      %v2090 = vld [vmem:[%s325] sm:$0xff]
      %v2091 = vld [vmem:[%s325 + $0x8] sm:$0xff]
      %v2092 = vld [vmem:[%s325 + $0x10] sm:$0xff]
      %v2093 = vld [vmem:[%s325 + $0x18] sm:$0xf]
      %v2094 = vld [vmem:[%s325 + $0x1c] sm:$0xff]
      %v2095 = vld [vmem:[%s325 + $0x24] sm:$0xff]
      %v2096 = vld [vmem:[%s325 + $0x2c] sm:$0xff]
      %v2097 = vld [vmem:[%s325 + $0x34] sm:$0xf]
      %v2098 = vld [vmem:[%s325 + $0x38] sm:$0xff]
      %v2099 = vld [vmem:[%s325 + $0x40] sm:$0xff]
      %v2100 = vld [vmem:[%s325 + $0x48] sm:$0xff]
      %v2101 = vld [vmem:[%s325 + $0x50] sm:$0xf]
      %v2102 = vld [vmem:[%s325 + $0x54] sm:$0xff]
      %v2103 = vld [vmem:[%s325 + $0x5c] sm:$0xff]
      %v2104 = vld [vmem:[%s325 + $0x64] sm:$0xff]
      %v2105 = vld [vmem:[%s325 + $0x6c] sm:$0xf]
      %v2106 = vld [vmem:[%s325 + $0x70] sm:$0xff]
      %v2107 = vld [vmem:[%s325 + $0x78] sm:$0xff]
      %v2108 = vld [vmem:[%s325 + $0x80] sm:$0xff]
      %v2109 = vld [vmem:[%s325 + $0x88] sm:$0xf]
      %v2110 = vld [vmem:[%s325 + $0x8c] sm:$0xff]
      %v2111 = vld [vmem:[%s325 + $0x94] sm:$0xff]
      %v2112 = vld [vmem:[%s325 + $0x9c] sm:$0xff]
      %v2113 = vld [vmem:[%s325 + $0xa4] sm:$0xf]
      %v2114 = vld [vmem:[%s325 + $0xa8] sm:$0xff]
      %v2115 = vld [vmem:[%s325 + $0xb0] sm:$0xff]
      %v2116 = vld [vmem:[%s325 + $0xb8] sm:$0xff]
      %v2117 = vld [vmem:[%s325 + $0xc0] sm:$0xf]
      %v2118 = vld [vmem:[%s325 + $0xc4] sm:$0xff]
      %v2119 = vld [vmem:[%s325 + $0xcc] sm:$0xff]
      %v2120 = vld [vmem:[%s325 + $0xd4] sm:$0xff]
      %v2121 = vld [vmem:[%s325 + $0xdc] sm:$0xf]
      %v2154 = vunpack.c.l.b16 %v2090
      %v2155 = vunpack.c.h.b16 %v2090
      %v2156 = vunpack.c.l.b16 %v2091
      %v2157 = vunpack.c.h.b16 %v2091
      %v2158 = vunpack.c.l.b16 %v2092
      %v2159 = vunpack.c.h.b16 %v2092
      %v2160 = vunpack.c.l.b16 %v2093
      %v2161 = vunpack.c.l.b16 %v2094
      %v2162 = vunpack.c.h.b16 %v2094
      %v2163 = vunpack.c.l.b16 %v2095
      %v2164 = vunpack.c.h.b16 %v2095
      %v2165 = vunpack.c.l.b16 %v2096
      %v2166 = vunpack.c.h.b16 %v2096
      %v2167 = vunpack.c.l.b16 %v2097
      %v2168 = vunpack.c.l.b16 %v2098
      %v2169 = vunpack.c.h.b16 %v2098
      %v2170 = vunpack.c.l.b16 %v2099
      %v2171 = vunpack.c.h.b16 %v2099
      %v2172 = vunpack.c.l.b16 %v2100
      %v2173 = vunpack.c.h.b16 %v2100
      %v2174 = vunpack.c.l.b16 %v2101
      %v2175 = vunpack.c.l.b16 %v2102
      %v2176 = vunpack.c.h.b16 %v2102
      %v2177 = vunpack.c.l.b16 %v2103
      %v2178 = vunpack.c.h.b16 %v2103
      %v2179 = vunpack.c.l.b16 %v2104
      %v2180 = vunpack.c.h.b16 %v2104
      %v2181 = vunpack.c.l.b16 %v2105
      %v2182 = vunpack.c.l.b16 %v2106
      %v2183 = vunpack.c.h.b16 %v2106
      %v2184 = vunpack.c.l.b16 %v2107
      %v2185 = vunpack.c.h.b16 %v2107
      %v2186 = vunpack.c.l.b16 %v2108
      %v2187 = vunpack.c.h.b16 %v2108
      %v2188 = vunpack.c.l.b16 %v2109
      %v2189 = vunpack.c.l.b16 %v2110
      %v2190 = vunpack.c.h.b16 %v2110
      %v2191 = vunpack.c.l.b16 %v2111
      %v2192 = vunpack.c.h.b16 %v2111
      %v2193 = vunpack.c.l.b16 %v2112
      %v2194 = vunpack.c.h.b16 %v2112
      %v2195 = vunpack.c.l.b16 %v2113
      %v2196 = vunpack.c.l.b16 %v2114
      %v2197 = vunpack.c.h.b16 %v2114
      %v2198 = vunpack.c.l.b16 %v2115
      %v2199 = vunpack.c.h.b16 %v2115
      %v2200 = vunpack.c.l.b16 %v2116
      %v2201 = vunpack.c.h.b16 %v2116
      %v2202 = vunpack.c.l.b16 %v2117
      %v2203 = vunpack.c.l.b16 %v2118
      %v2204 = vunpack.c.h.b16 %v2118
      %v2205 = vunpack.c.l.b16 %v2119
      %v2206 = vunpack.c.h.b16 %v2119
      %v2207 = vunpack.c.l.b16 %v2120
      %v2208 = vunpack.c.h.b16 %v2120
      %v2209 = vunpack.c.l.b16 %v2121
      %v2210 = vpack.c.b16 %v2161, %v2154
      %v2211 = vpack.c.b16 %v2162, %v2155
      %v2212 = vpack.c.b16 %v2163, %v2156
      %v2213 = vpack.c.b16 %v2164, %v2157
      %v2214 = vpack.c.b16 %v2165, %v2158
      %v2215 = vpack.c.b16 %v2166, %v2159
      %v2216 = vpack.c.b16 %v2167, %v2160
      %v2217 = vpack.c.b16 %v2175, %v2168
      %v2218 = vpack.c.b16 %v2176, %v2169
      %v2219 = vpack.c.b16 %v2177, %v2170
      %v2220 = vpack.c.b16 %v2178, %v2171
      %v2221 = vpack.c.b16 %v2179, %v2172
      %v2222 = vpack.c.b16 %v2180, %v2173
      %v2223 = vpack.c.b16 %v2181, %v2174
      %v2224 = vpack.c.b16 %v2189, %v2182
      %v2225 = vpack.c.b16 %v2190, %v2183
      %v2226 = vpack.c.b16 %v2191, %v2184
      %v2227 = vpack.c.b16 %v2192, %v2185
      %v2228 = vpack.c.b16 %v2193, %v2186
      %v2229 = vpack.c.b16 %v2194, %v2187
      %v2230 = vpack.c.b16 %v2195, %v2188
      %v2231 = vpack.c.b16 %v2203, %v2196
      %v2232 = vpack.c.b16 %v2204, %v2197
      %v2233 = vpack.c.b16 %v2205, %v2198
      %v2234 = vpack.c.b16 %v2206, %v2199
      %v2235 = vpack.c.b16 %v2207, %v2200
      %v2236 = vpack.c.b16 %v2208, %v2201
      %v2237 = vpack.c.b16 %v2209, %v2202
      %2266 = vmatprep.subr.bf16.mxu0 0
      %2267 = vmatpush1.bf16.msra.mxu0 %v853
      %2268 = vmatprep.subr.bf16.mxu0 0
      %2269 = vmatpush1.bf16.msra.mxu0 %v852
      %2270 = vmatprep.subr.bf16.mxu0 0
      %2271 = vmatpush1.bf16.msra.mxu0 %v851
      %2272 = vmatprep.subr.bf16.mxu0 0
      %2273 = vmatpush1.bf16.msra.mxu0 %v850
      %2274 = vmatprep.subr.bf16.mxu0 0
      %2275 = vmatpush1.bf16.msra.mxu0 %v849
      %2276 = vmatprep.subr.bf16.mxu0 0
      %2277 = vmatpush1.bf16.msra.mxu0 %v848
      %2278 = vmatprep.subr.bf16.mxu0 0
      %2279 = vmatpush1.bf16.msra.mxu0 %v847
      %2280 = vmatprep.subr.bf16.mxu0 0
      %2281 = vmatpush1.bf16.msra.mxu0 %v846
      %2282 = vmatprep.subr.bf16.mxu0 0
      %2283 = vmatpush2.bf16.msra.mxu0 %v861
      %2284 = vmatprep.subr.bf16.mxu0 0
      %2285 = vmatpush2.bf16.msra.mxu0 %v860
      %2286 = vmatprep.subr.bf16.mxu0 0
      %2287 = vmatpush2.bf16.msra.mxu0 %v859
      %2288 = vmatprep.subr.bf16.mxu0 0
      %2289 = vmatpush2.bf16.msra.mxu0 %v858
      %2290 = vmatprep.subr.bf16.mxu0 0
      %2291 = vmatpush2.bf16.msra.mxu0 %v857
      %2292 = vmatprep.subr.bf16.mxu0 0
      %2293 = vmatpush2.bf16.msra.mxu0 %v856
      %2294 = vmatprep.subr.bf16.mxu0 0
      %2295 = vmatpush2.bf16.msra.mxu0 %v855
      %2296 = vmatprep.subr.bf16.mxu0 0
      %2297 = vmatpush2.bf16.msra.mxu0 %v854
      %2298 = vmatprep.mubr.bf16.mxu0 %v2211
      %2299 = vmatmul.mubr.bf16.gmra.mxu0 %v2210
      %v2300 = vpop.f32.mrf.mxu0
      %v2301 = vadd.f32 0.0, %v2300
      %v2302 = vpop.f32.mrf.mxu0
      %v2303 = vpop.f32.mrf.mxu0
      %v2304 = vadd.f32 0.0, %v2303
      %v2305 = vpop.f32.mrf.mxu0
      %2306 = vmatprep.mubr.bf16.mxu0 %v2218
      %2307 = vmatmul.mubr.bf16.gmra.mxu0 %v2217
      %v2308 = vpop.f32.mrf.mxu0
      %v2309 = vadd.f32 0.0, %v2308
      %v2310 = vpop.f32.mrf.mxu0
      %v2311 = vpop.f32.mrf.mxu0
      %v2312 = vadd.f32 0.0, %v2311
      %v2313 = vpop.f32.mrf.mxu0
      %2314 = vmatprep.mubr.bf16.mxu0 %v2225
      %2315 = vmatmul.mubr.bf16.gmra.mxu0 %v2224
      %v2316 = vpop.f32.mrf.mxu0
      %v2317 = vadd.f32 0.0, %v2316
      %v2318 = vpop.f32.mrf.mxu0
      %v2319 = vpop.f32.mrf.mxu0
      %v2320 = vadd.f32 0.0, %v2319
      %v2321 = vpop.f32.mrf.mxu0
      %2322 = vmatprep.mubr.bf16.mxu0 %v2232
      %2323 = vmatmul.mubr.bf16.gmra.mxu0 %v2231
      %v2324 = vpop.f32.mrf.mxu0
      %v2325 = vadd.f32 0.0, %v2324
      %v2326 = vpop.f32.mrf.mxu0
      %v2327 = vpop.f32.mrf.mxu0
      %v2328 = vadd.f32 0.0, %v2327
      %v2329 = vpop.f32.mrf.mxu0
      %2330 = vdwg.mxu0
      %2331 = vmatprep.subr.bf16.mxu0 0
      %2332 = vmatpush1.bf16.msra.mxu0 %v869
      %2333 = vmatprep.subr.bf16.mxu0 0
      %2334 = vmatpush1.bf16.msra.mxu0 %v868
      %2335 = vmatprep.subr.bf16.mxu0 0
      %2336 = vmatpush1.bf16.msra.mxu0 %v867
      %2337 = vmatprep.subr.bf16.mxu0 0
      %2338 = vmatpush1.bf16.msra.mxu0 %v866
      %2339 = vmatprep.subr.bf16.mxu0 0
      %2340 = vmatpush1.bf16.msra.mxu0 %v865
      %2341 = vmatprep.subr.bf16.mxu0 0
      %2342 = vmatpush1.bf16.msra.mxu0 %v864
      %2343 = vmatprep.subr.bf16.mxu0 0
      %2344 = vmatpush1.bf16.msra.mxu0 %v863
      %2345 = vmatprep.subr.bf16.mxu0 0
      %2346 = vmatpush1.bf16.msra.mxu0 %v862
      %2347 = vmatprep.subr.bf16.mxu0 0
      %2348 = vmatpush2.bf16.msra.mxu0 %v877
      %2349 = vmatprep.subr.bf16.mxu0 0
      %2350 = vmatpush2.bf16.msra.mxu0 %v876
      %2351 = vmatprep.subr.bf16.mxu0 0
      %2352 = vmatpush2.bf16.msra.mxu0 %v875
      %2353 = vmatprep.subr.bf16.mxu0 0
      %2354 = vmatpush2.bf16.msra.mxu0 %v874
      %2355 = vmatprep.subr.bf16.mxu0 0
      %2356 = vmatpush2.bf16.msra.mxu0 %v873
      %2357 = vmatprep.subr.bf16.mxu0 0
      %2358 = vmatpush2.bf16.msra.mxu0 %v872
      %2359 = vmatprep.subr.bf16.mxu0 0
      %2360 = vmatpush2.bf16.msra.mxu0 %v871
      %2361 = vmatprep.subr.bf16.mxu0 0
      %2362 = vmatpush2.bf16.msra.mxu0 %v870
      %2363 = vmatprep.mubr.bf16.mxu0 %v2213
      %2364 = vmatmul.mubr.bf16.gmra.mxu0 %v2212
      %v2365 = vpop.f32.mrf.mxu0
      %v2366 = vadd.f32 %v2301, %v2365
      %v2367 = vpop.f32.mrf.mxu0
      %v2368 = vpop.f32.mrf.mxu0
      %v2369 = vadd.f32 %v2304, %v2368
      %v2370 = vpop.f32.mrf.mxu0
      %2371 = vmatprep.mubr.bf16.mxu0 %v2220
      %2372 = vmatmul.mubr.bf16.gmra.mxu0 %v2219
      %v2373 = vpop.f32.mrf.mxu0
      %v2374 = vadd.f32 %v2309, %v2373
      %v2375 = vpop.f32.mrf.mxu0
      %v2376 = vpop.f32.mrf.mxu0
      %v2377 = vadd.f32 %v2312, %v2376
      %v2378 = vpop.f32.mrf.mxu0
      %2379 = vmatprep.mubr.bf16.mxu0 %v2227
      %2380 = vmatmul.mubr.bf16.gmra.mxu0 %v2226
      %v2381 = vpop.f32.mrf.mxu0
      %v2382 = vadd.f32 %v2317, %v2381
      %v2383 = vpop.f32.mrf.mxu0
      %v2384 = vpop.f32.mrf.mxu0
      %v2385 = vadd.f32 %v2320, %v2384
      %v2386 = vpop.f32.mrf.mxu0
      %2387 = vmatprep.mubr.bf16.mxu0 %v2234
      %2388 = vmatmul.mubr.bf16.gmra.mxu0 %v2233
      %v2389 = vpop.f32.mrf.mxu0
      %v2390 = vadd.f32 %v2325, %v2389
      %v2391 = vpop.f32.mrf.mxu0
      %v2392 = vpop.f32.mrf.mxu0
      %v2393 = vadd.f32 %v2328, %v2392
      %v2394 = vpop.f32.mrf.mxu0
      %2395 = vdwg.mxu0
      %2396 = vmatprep.subr.bf16.mxu0 0
      %2397 = vmatpush1.bf16.msra.mxu0 %v885
      %2398 = vmatprep.subr.bf16.mxu0 0
      %2399 = vmatpush1.bf16.msra.mxu0 %v884
      %2400 = vmatprep.subr.bf16.mxu0 0
      %2401 = vmatpush1.bf16.msra.mxu0 %v883
      %2402 = vmatprep.subr.bf16.mxu0 0
      %2403 = vmatpush1.bf16.msra.mxu0 %v882
      %2404 = vmatprep.subr.bf16.mxu0 0
      %2405 = vmatpush1.bf16.msra.mxu0 %v881
      %2406 = vmatprep.subr.bf16.mxu0 0
      %2407 = vmatpush1.bf16.msra.mxu0 %v880
      %2408 = vmatprep.subr.bf16.mxu0 0
      %2409 = vmatpush1.bf16.msra.mxu0 %v879
      %2410 = vmatprep.subr.bf16.mxu0 0
      %2411 = vmatpush1.bf16.msra.mxu0 %v878
      %2412 = vmatprep.subr.bf16.mxu0 0
      %2413 = vmatpush2.bf16.msra.mxu0 %v893
      %2414 = vmatprep.subr.bf16.mxu0 0
      %2415 = vmatpush2.bf16.msra.mxu0 %v892
      %2416 = vmatprep.subr.bf16.mxu0 0
      %2417 = vmatpush2.bf16.msra.mxu0 %v891
      %2418 = vmatprep.subr.bf16.mxu0 0
      %2419 = vmatpush2.bf16.msra.mxu0 %v890
      %2420 = vmatprep.subr.bf16.mxu0 0
      %2421 = vmatpush2.bf16.msra.mxu0 %v889
      %2422 = vmatprep.subr.bf16.mxu0 0
      %2423 = vmatpush2.bf16.msra.mxu0 %v888
      %2424 = vmatprep.subr.bf16.mxu0 0
      %2425 = vmatpush2.bf16.msra.mxu0 %v887
      %2426 = vmatprep.subr.bf16.mxu0 0
      %2427 = vmatpush2.bf16.msra.mxu0 %v886
      %2428 = vmatprep.mubr.bf16.mxu0 %v2215
      %2429 = vmatmul.mubr.bf16.gmra.mxu0 %v2214
      %v2430 = vpop.f32.mrf.mxu0
      %v2431 = vadd.f32 %v2366, %v2430
      %v2432 = vpop.f32.mrf.mxu0
      %v2433 = vpop.f32.mrf.mxu0
      %v2434 = vadd.f32 %v2369, %v2433
      %v2435 = vpop.f32.mrf.mxu0
      %2436 = vmatprep.mubr.bf16.mxu0 %v2222
      %2437 = vmatmul.mubr.bf16.gmra.mxu0 %v2221
      %v2438 = vpop.f32.mrf.mxu0
      %v2439 = vadd.f32 %v2374, %v2438
      %v2440 = vpop.f32.mrf.mxu0
      %v2441 = vpop.f32.mrf.mxu0
      %v2442 = vadd.f32 %v2377, %v2441
      %v2443 = vpop.f32.mrf.mxu0
      %2444 = vmatprep.mubr.bf16.mxu0 %v2229
      %2445 = vmatmul.mubr.bf16.gmra.mxu0 %v2228
      %v2446 = vpop.f32.mrf.mxu0
      %v2447 = vadd.f32 %v2382, %v2446
      %v2448 = vpop.f32.mrf.mxu0
      %v2449 = vpop.f32.mrf.mxu0
      %v2450 = vadd.f32 %v2385, %v2449
      %v2451 = vpop.f32.mrf.mxu0
      %2452 = vmatprep.mubr.bf16.mxu0 %v2236
      %2453 = vmatmul.mubr.bf16.gmra.mxu0 %v2235
      %v2454 = vpop.f32.mrf.mxu0
      %v2455 = vadd.f32 %v2390, %v2454
      %v2456 = vpop.f32.mrf.mxu0
      %v2457 = vpop.f32.mrf.mxu0
      %v2458 = vadd.f32 %v2393, %v2457
      %v2459 = vpop.f32.mrf.mxu0
      %2460 = vdwg.mxu0
      %2461 = vmatprep.subr.bf16.mxu0 0
      %2462 = vmatpush1.bf16.msra.mxu0 %v901
      %2463 = vmatprep.subr.bf16.mxu0 0
      %2464 = vmatpush1.bf16.msra.mxu0 %v900
      %2465 = vmatprep.subr.bf16.mxu0 0
      %2466 = vmatpush1.bf16.msra.mxu0 %v899
      %2467 = vmatprep.subr.bf16.mxu0 0
      %2468 = vmatpush1.bf16.msra.mxu0 %v898
      %2469 = vmatprep.subr.bf16.mxu0 0
      %2470 = vmatpush1.bf16.msra.mxu0 %v897
      %2471 = vmatprep.subr.bf16.mxu0 0
      %2472 = vmatpush1.bf16.msra.mxu0 %v896
      %2473 = vmatprep.subr.bf16.mxu0 0
      %2474 = vmatpush1.bf16.msra.mxu0 %v895
      %2475 = vmatprep.subr.bf16.mxu0 0
      %2476 = vmatpush1.bf16.msra.mxu0 %v894
      %2477 = vmatprep.subr.bf16.mxu0 0
      %2478 = vmatpush2.bf16.msra.mxu0 0
      %2479 = vmatprep.subr.bf16.mxu0 0
      %2480 = vmatpush2.bf16.msra.mxu0 0
      %2481 = vmatprep.subr.bf16.mxu0 0
      %2482 = vmatpush2.bf16.msra.mxu0 0
      %2483 = vmatprep.subr.bf16.mxu0 0
      %2484 = vmatpush2.bf16.msra.mxu0 0
      %2485 = vmatprep.subr.bf16.mxu0 0
      %2486 = vmatpush2.bf16.msra.mxu0 0
      %2487 = vmatprep.subr.bf16.mxu0 0
      %2488 = vmatpush2.bf16.msra.mxu0 0
      %2489 = vmatprep.subr.bf16.mxu0 0
      %2490 = vmatpush2.bf16.msra.mxu0 0
      %2491 = vmatprep.subr.bf16.mxu0 0
      %2492 = vmatpush2.bf16.msra.mxu0 0
      %2493 = vmatprep.mubr.bf16.mxu0 0
      %2494 = vmatmul.mubr.bf16.gmra.mxu0 %v2216
      %v2495 = vpop.f32.mrf.mxu0
      %v2496 = vadd.f32 %v2431, %v2495
      %v2497 = vpop.f32.mrf.mxu0
      %v2498 = vpop.f32.mrf.mxu0
      %v2499 = vadd.f32 %v2434, %v2498
      %v2500 = vpop.f32.mrf.mxu0
      %2501 = vmatprep.mubr.bf16.mxu0 0
      %2502 = vmatmul.mubr.bf16.gmra.mxu0 %v2223
      %v2503 = vpop.f32.mrf.mxu0
      %v2504 = vadd.f32 %v2439, %v2503
      %v2505 = vpop.f32.mrf.mxu0
      %v2506 = vpop.f32.mrf.mxu0
      %v2507 = vadd.f32 %v2442, %v2506
      %v2508 = vpop.f32.mrf.mxu0
      %2509 = vmatprep.mubr.bf16.mxu0 0
      %2510 = vmatmul.mubr.bf16.gmra.mxu0 %v2230
      %v2511 = vpop.f32.mrf.mxu0
      %v2512 = vadd.f32 %v2447, %v2511
      %v2513 = vpop.f32.mrf.mxu0
      %v2514 = vpop.f32.mrf.mxu0
      %v2515 = vadd.f32 %v2450, %v2514
      %v2516 = vpop.f32.mrf.mxu0
      %2517 = vmatprep.mubr.bf16.mxu0 0
      %2518 = vmatmul.mubr.bf16.gmra.mxu0 %v2237
      %v2519 = vpop.f32.mrf.mxu0
      %v2520 = vadd.f32 %v2455, %v2519
      %v2521 = vpop.f32.mrf.mxu0
      %v2522 = vpop.f32.mrf.mxu0
      %v2523 = vadd.f32 %v2458, %v2522
      %v2524 = vpop.f32.mrf.mxu0
      %2525 = vdwg.mxu0
      %v2526 = vmax.f32 %v1188, %v1624
      %v2527 = vmax.f32 %v1191, %v1627
      %v2528 = vmax.f32 %v1196, %v1632
      %v2529 = vmax.f32 %v1199, %v1635
      %v2530 = vmax.f32 %v1204, %v1640
      %v2531 = vmax.f32 %v1207, %v1643
      %v2532 = vmax.f32 %v1212, %v1648
      %v2533 = vmax.f32 %v1215, %v1651
      %v2534 = vmax.f32 %v2060, %v2496
      %v2535 = vmax.f32 %v2063, %v2499
      %v2536 = vmax.f32 %v2068, %v2504
      %v2537 = vmax.f32 %v2071, %v2507
      %v2538 = vmax.f32 %v2076, %v2512
      %v2539 = vmax.f32 %v2079, %v2515
      %v2540 = vmax.f32 %v2084, %v2520
      %v2541 = vmax.f32 %v2087, %v2523
      %v2542 = vmax.f32 %v2526, %v2534
      %v2543 = vmax.f32 %v2527, %v2535
      %v2544 = vmax.f32 %v2528, %v2536
      %v2545 = vmax.f32 %v2529, %v2537
      %v2546 = vmax.f32 %v2530, %v2538
      %v2547 = vmax.f32 %v2531, %v2539
      %v2548 = vmax.f32 %v2532, %v2540
      %v2549 = vmax.f32 %v2533, %v2541
      %v2550 = vld [vmem:[%s5] sm:$0x1]
      %v2552 = vlaneseq
      %v2553 = vshrl.u32 %v2552, 7
      %v2554 = vsub.s32 0, %v2553
      %v2555 = vrot.slane %v2550, %v2554
      %v2557 = vadd.f32 %v2542, %v2555
      %v2558 = vadd.f32 %v2543, %v2555
      %v2559 = vadd.f32 %v2544, %v2555
      %v2560 = vadd.f32 %v2545, %v2555
      %v2561 = vadd.f32 %v2546, %v2555
      %v2562 = vadd.f32 %v2547, %v2555
      %v2563 = vadd.f32 %v2548, %v2555
      %v2564 = vadd.f32 %v2549, %v2555
      %2565 = vst [vmem:[%s331] sm:$0xff] %v2557
      %2566 = vst [vmem:[%s331 + $0x8] sm:$0xff] %v2558
      %2567 = vst [vmem:[%s331 + $0x10] sm:$0xff] %v2559
      %2568 = vst [vmem:[%s331 + $0x18] sm:$0xff] %v2560
      %2569 = vst [vmem:[%s331 + $0x20] sm:$0xff] %v2561
      %2570 = vst [vmem:[%s331 + $0x28] sm:$0xff] %v2562
      %2571 = vst [vmem:[%s331 + $0x30] sm:$0xff] %v2563
      %2572 = vst [vmem:[%s331 + $0x38] sm:$0xff] %v2564
      %s2573 = smul.u32 8, %s17
      %p2574 = scmp.lt.s32.totalorder %s2573, 15
      %s2575 = scalar_select %p2574, %s2573, 15
      %s2576 = smul.addr %s2575, 8
      %s2577 = scalar_lea.vmem %s6, %s2576
      // Predicated region
      $region45: #{cifar10_forward.5} parent=43 // pred_check
        %p2578 = pneg %p181
      $region46: #{cifar10_forward.5} parent=43 // pred_check_branch
        %2580 = sbr.rel (%p2578) target = $region48
      $region47: #{cifar10_forward.5} parent=43 // pred_region
        %s2581 = smul.u32 8, %s17
      $region48: #{cifar10_forward.5} parent=43 // pred_fallthru
        _
    $region44: #{cifar10_forward.5} parent=5 // pred_fallthru
      _
    %p2582 = scmp.le.s32.totalorder 2, %s12
    // Predicated region
    $region49: #{cifar10_forward.5} parent=5 // pred_check
      %p2583 = pneg %p2582
    $region50: #{cifar10_forward.5} parent=5 // pred_check_branch
      %2585 = sbr.rel (%p2583) target = $region52
    $region51: #{cifar10_forward.5} parent=5 // pred_region
      %s2586 = ssub.s32 %s12, 2
      // Predicated region
      $region53: #{cifar10_forward.5} parent=51 // pred_check
        %p2587 = pneg %p187
      $region54: #{cifar10_forward.5} parent=51 // pred_check_branch
        %2589 = sbr.rel (%p2587) target = $region56
      $region55: #{cifar10_forward.5} parent=51 // pred_region
        %s2590 = smul.u32 8, %s18
        %p2591 = scmp.lt.s32.totalorder %s2590, 15
        %s2592 = scalar_select %p2591, %s2590, 15
        %s2593 = smul.addr %s2592, 8
        %s2594 = scalar_lea.vmem %s6, %s2593
      $region56: #{cifar10_forward.5} parent=51 // pred_fallthru
        _
    $region52: #{cifar10_forward.5} parent=5 // pred_fallthru
      _
  $region6: #{cifar10_forward.5} parent=0 // loop_footer
    %s16 = sadd.s32 1, %s12
  $region7: #{cifar10_forward.5} parent=0 // loop_footer_branch
    %11 = sbr.rel target = $region3
  $region8: #{cifar10_forward.5} parent=0 // loop_exit
    _

// kernel: cifar10_forward.6
$region0: #{cifar10_forward.6}
  #allocation0 [shape = 'u32[]', space=smem, size = 0x4, offset = 0x4, fixed_abs, tag = 'smem constant byte address 0x4 - core index']
  #allocation1 [shape = 'u32[144,128]{1,0:T(1,128)}', space=vmem, size = 0x12000, scoped, tag = 'internal scratch']
  %s0 = inlined_call_operand.vmem [shape: bf16[32,896], index: 0, kind: input, shape index: {}]
  %s1 = inlined_call_operand.vmem [shape: bf16[32,896], index: 1, kind: input, shape index: {}]
  %s2 = inlined_call_operand.vmem [shape: bf16[32,896], index: 2, kind: input, shape index: {}]
  %s3 = inlined_call_operand.vmem [shape: bf16[32,896], index: 3, kind: input, shape index: {}]
  %s4 = inlined_call_operand.vmem [shape: bf16[896,128], index: 4, kind: input, shape index: {}]
  %s5 = inlined_call_operand.vmem [shape: f32[1,128], index: 5, kind: input, shape index: {}]
  %s6 = inlined_call_operand.vmem [shape: f32[32,128], index: 6, kind: output, shape index: {}]
  %s7 = sld [smem:[#allocation0]]
  $region57: #{cifar10_forward.6} parent=0
    _
  %s9 = ssub.s32 1, %s7
  %s10 = scalar_select 0, %s9, %s7
  loop: start=0, step=1, limit=4
  $region2: #{cifar10_forward.6} parent=0 // loop_pre_header
    _
  $region3: #{cifar10_forward.6} parent=0 // loop_header
    %s12 = sphi 0, %s16
    %p13 = scmp.ge.s32.totalorder %s12, 4
    %s22 = sphi 0, %s24
    %s25 = sphi 0, %s22
    %s26 = sphi 0, %s25
    %s42 = sphi 0, %s26
    %s48 = sphi 0, %s50
    %s51 = sphi 0, %s48
    %s52 = sphi 0, %s51
    %s68 = sphi 0, %s52
    %s74 = sphi 0, %s76
    %s77 = sphi 0, %s74
    %s78 = sphi 0, %s77
    %s94 = sphi 0, %s78
    %s100 = sphi 0, %s102
    %s103 = sphi 0, %s100
    %s104 = sphi 0, %s103
    %s120 = sphi 0, %s104
    %s124 = sphi 0, %s124
    %s126 = sphi 0, %s124
    %s127 = sphi 0, %s126
    %s141 = sphi 0, %s127
    %s145 = sphi 0, %s145
    %s147 = sphi 0, %s145
    %s148 = sphi 0, %s147
    %s162 = sphi 0, %s148
    %s168 = sphi 0, %s170
    %s171 = sphi 0, %s168
    %s172 = sphi 0, %s171
    %s188 = sphi 0, %s172
  $region4: #{cifar10_forward.6} parent=0 // loop_header_branch
    %15 = sbr.rel (%p13) target = $region8
  $region5: #{cifar10_forward.6} parent=0 // loop_body
    %s17 = ssub.s32 %s12, 1
    %s18 = ssub.s32 %s12, 2
    %s19 = sadd.s32 %s12, 1
    %s20 = ssub.s32 %s12, %s19
    %p21 = scmp.eq.s32.totalorder %s20, 0
    %s23 = sadd.s32 %s22, 1
    %s24 = scalar_select %p21, %s22, %s23
    %p27 = pneg %p21
    %p28 = scmp.eq.s32.totalorder %s12, 1
    %p29 = por %p27, %p28
    %p30 = scmp.ne.s32.totalorder %s22, %s25
    %p31 = scmp.eq.s32.totalorder %s12, 0
    %p32 = por %p30, %p31
    %p33 = scmp.ne.s32.totalorder %s22, %s25
    %p34 = scmp.eq.s32.totalorder %s17, 1
    %p35 = por %p33, %p34
    %p36 = scmp.ne.s32.totalorder %s25, %s26
    %p37 = scmp.eq.s32.totalorder %s17, 0
    %p38 = por %p36, %p37
    %p39 = scmp.ne.s32.totalorder %s25, %s26
    %p40 = scmp.eq.s32.totalorder %s18, 1
    %p41 = por %p39, %p40
    %p43 = scmp.ne.s32.totalorder %s26, %s42
    %p44 = scmp.eq.s32.totalorder %s18, 0
    %p45 = por %p43, %p44
    %s46 = ssub.s32 %s12, %s19
    %p47 = scmp.eq.s32.totalorder %s46, 0
    %s49 = sadd.s32 %s48, 1
    %s50 = scalar_select %p47, %s48, %s49
    %p53 = pneg %p47
    %p54 = scmp.eq.s32.totalorder %s12, 1
    %p55 = por %p53, %p54
    %p56 = scmp.ne.s32.totalorder %s48, %s51
    %p57 = scmp.eq.s32.totalorder %s12, 0
    %p58 = por %p56, %p57
    %p59 = scmp.ne.s32.totalorder %s48, %s51
    %p60 = scmp.eq.s32.totalorder %s17, 1
    %p61 = por %p59, %p60
    %p62 = scmp.ne.s32.totalorder %s51, %s52
    %p63 = scmp.eq.s32.totalorder %s17, 0
    %p64 = por %p62, %p63
    %p65 = scmp.ne.s32.totalorder %s51, %s52
    %p66 = scmp.eq.s32.totalorder %s18, 1
    %p67 = por %p65, %p66
    %p69 = scmp.ne.s32.totalorder %s52, %s68
    %p70 = scmp.eq.s32.totalorder %s18, 0
    %p71 = por %p69, %p70
    %s72 = ssub.s32 %s12, %s19
    %p73 = scmp.eq.s32.totalorder %s72, 0
    %s75 = sadd.s32 %s74, 1
    %s76 = scalar_select %p73, %s74, %s75
    %p79 = pneg %p73
    %p80 = scmp.eq.s32.totalorder %s12, 1
    %p81 = por %p79, %p80
    %p82 = scmp.ne.s32.totalorder %s74, %s77
    %p83 = scmp.eq.s32.totalorder %s12, 0
    %p84 = por %p82, %p83
    %p85 = scmp.ne.s32.totalorder %s74, %s77
    %p86 = scmp.eq.s32.totalorder %s17, 1
    %p87 = por %p85, %p86
    %p88 = scmp.ne.s32.totalorder %s77, %s78
    %p89 = scmp.eq.s32.totalorder %s17, 0
    %p90 = por %p88, %p89
    %p91 = scmp.ne.s32.totalorder %s77, %s78
    %p92 = scmp.eq.s32.totalorder %s18, 1
    %p93 = por %p91, %p92
    %p95 = scmp.ne.s32.totalorder %s78, %s94
    %p96 = scmp.eq.s32.totalorder %s18, 0
    %p97 = por %p95, %p96
    %s98 = ssub.s32 %s12, %s19
    %p99 = scmp.eq.s32.totalorder %s98, 0
    %s101 = sadd.s32 %s100, 1
    %s102 = scalar_select %p99, %s100, %s101
    %p105 = pneg %p99
    %p106 = scmp.eq.s32.totalorder %s12, 1
    %p107 = por %p105, %p106
    %p108 = scmp.ne.s32.totalorder %s100, %s103
    %p109 = scmp.eq.s32.totalorder %s12, 0
    %p110 = por %p108, %p109
    %p111 = scmp.ne.s32.totalorder %s100, %s103
    %p112 = scmp.eq.s32.totalorder %s17, 1
    %p113 = por %p111, %p112
    %p114 = scmp.ne.s32.totalorder %s103, %s104
    %p115 = scmp.eq.s32.totalorder %s17, 0
    %p116 = por %p114, %p115
    %p117 = scmp.ne.s32.totalorder %s103, %s104
    %p118 = scmp.eq.s32.totalorder %s18, 1
    %p119 = por %p117, %p118
    %p121 = scmp.ne.s32.totalorder %s104, %s120
    %p122 = scmp.eq.s32.totalorder %s18, 0
    %p123 = por %p121, %p122
    %s125 = sadd.s32 %s124, 1
    %p128 = scmp.eq.s32.totalorder %s12, 1
    %p129 = scmp.ne.s32.totalorder %s124, %s126
    %p130 = scmp.eq.s32.totalorder %s12, 0
    %p131 = por %p129, %p130
    %p132 = scmp.ne.s32.totalorder %s124, %s126
    %p133 = scmp.eq.s32.totalorder %s17, 1
    %p134 = por %p132, %p133
    %p135 = scmp.ne.s32.totalorder %s126, %s127
    %p136 = scmp.eq.s32.totalorder %s17, 0
    %p137 = por %p135, %p136
    %p138 = scmp.ne.s32.totalorder %s126, %s127
    %p139 = scmp.eq.s32.totalorder %s18, 1
    %p140 = por %p138, %p139
    %p142 = scmp.ne.s32.totalorder %s127, %s141
    %p143 = scmp.eq.s32.totalorder %s18, 0
    %p144 = por %p142, %p143
    %s146 = sadd.s32 %s145, 1
    %p149 = scmp.eq.s32.totalorder %s12, 1
    %p150 = scmp.ne.s32.totalorder %s145, %s147
    %p151 = scmp.eq.s32.totalorder %s12, 0
    %p152 = por %p150, %p151
    %p153 = scmp.ne.s32.totalorder %s145, %s147
    %p154 = scmp.eq.s32.totalorder %s17, 1
    %p155 = por %p153, %p154
    %p156 = scmp.ne.s32.totalorder %s147, %s148
    %p157 = scmp.eq.s32.totalorder %s17, 0
    %p158 = por %p156, %p157
    %p159 = scmp.ne.s32.totalorder %s147, %s148
    %p160 = scmp.eq.s32.totalorder %s18, 1
    %p161 = por %p159, %p160
    %p163 = scmp.ne.s32.totalorder %s148, %s162
    %p164 = scmp.eq.s32.totalorder %s18, 0
    %p165 = por %p163, %p164
    %s166 = ssub.s32 %s12, %s19
    %p167 = scmp.eq.s32.totalorder %s166, 0
    %s169 = sadd.s32 %s168, 1
    %s170 = scalar_select %p167, %s168, %s169
    %p173 = pneg %p167
    %p174 = scmp.eq.s32.totalorder %s12, 1
    %p175 = por %p173, %p174
    %p176 = scmp.ne.s32.totalorder %s168, %s171
    %p177 = scmp.eq.s32.totalorder %s12, 0
    %p178 = por %p176, %p177
    %p179 = scmp.ne.s32.totalorder %s168, %s171
    %p180 = scmp.eq.s32.totalorder %s17, 1
    %p181 = por %p179, %p180
    %p182 = scmp.ne.s32.totalorder %s171, %s172
    %p183 = scmp.eq.s32.totalorder %s17, 0
    %p184 = por %p182, %p183
    %p185 = scmp.ne.s32.totalorder %s171, %s172
    %p186 = scmp.eq.s32.totalorder %s18, 1
    %p187 = por %p185, %p186
    %p189 = scmp.ne.s32.totalorder %s172, %s188
    %p190 = scmp.eq.s32.totalorder %s18, 0
    %p191 = por %p189, %p190
    %p192 = scmp.le.s32.totalorder 1, %s12
    %p193 = scmp.lt.s32.totalorder %s12, 3
    %p194 = pnand %p192, %p193
    %p195 = pneg %p194
    // Predicated region
    $region9: #{cifar10_forward.6} parent=5 // pred_check
      _
    $region10: #{cifar10_forward.6} parent=5 // pred_check_branch
      %197 = sbr.rel (%p194) target = $region12
    $region11: #{cifar10_forward.6} parent=5 // pred_region
      %s198 = ssub.s32 %s12, 1
      // Predicated region
      $region13: #{cifar10_forward.6} parent=11 // pred_check
        %p199 = pneg %p137
      $region14: #{cifar10_forward.6} parent=11 // pred_check_branch
        %201 = sbr.rel (%p199) target = $region16
      $region15: #{cifar10_forward.6} parent=11 // pred_region
        _
      $region16: #{cifar10_forward.6} parent=11 // pred_fallthru
        _
      // Predicated region
      $region17: #{cifar10_forward.6} parent=11 // pred_check
        %p202 = pneg %p158
      $region18: #{cifar10_forward.6} parent=11 // pred_check_branch
        %204 = sbr.rel (%p202) target = $region20
      $region19: #{cifar10_forward.6} parent=11 // pred_region
        _
      $region20: #{cifar10_forward.6} parent=11 // pred_fallthru
        _
    $region12: #{cifar10_forward.6} parent=5 // pred_fallthru
      _
    %p205 = scmp.lt.s32.totalorder %s12, 2
    // Predicated region
    $region21: #{cifar10_forward.6} parent=5 // pred_check
      %p206 = pneg %p205
    $region22: #{cifar10_forward.6} parent=5 // pred_check_branch
      %208 = sbr.rel (%p206) target = $region24
    $region23: #{cifar10_forward.6} parent=5 // pred_region
      // Predicated region
      $region25: #{cifar10_forward.6} parent=23 // pred_check
        %p209 = pneg %p32
      $region26: #{cifar10_forward.6} parent=23 // pred_check_branch
        %211 = sbr.rel (%p209) target = $region28
      $region27: #{cifar10_forward.6} parent=23 // pred_region
        %s212 = smul.u32 2, %s12
        %p213 = scmp.lt.s32.totalorder %s212, 3
        %s214 = scalar_select %p213, %s212, 3
        %s215 = smul.addr %s214, 7
        %s216 = smul.addr %s215, 4
        %s217 = scalar_lea.vmem %s0, %s216
        %s218 = smul.u32 2, %s12
      $region28: #{cifar10_forward.6} parent=23 // pred_fallthru
        _
      // Predicated region
      $region29: #{cifar10_forward.6} parent=23 // pred_check
        %p219 = pneg %p58
      $region30: #{cifar10_forward.6} parent=23 // pred_check_branch
        %221 = sbr.rel (%p219) target = $region32
      $region31: #{cifar10_forward.6} parent=23 // pred_region
        %s222 = smul.u32 2, %s12
        %p223 = scmp.lt.s32.totalorder %s222, 3
        %s224 = scalar_select %p223, %s222, 3
        %s225 = smul.addr %s224, 7
        %s226 = smul.addr %s225, 4
        %s227 = scalar_lea.vmem %s1, %s226
        %s228 = smul.u32 2, %s12
      $region32: #{cifar10_forward.6} parent=23 // pred_fallthru
        _
      // Predicated region
      $region33: #{cifar10_forward.6} parent=23 // pred_check
        %p229 = pneg %p84
      $region34: #{cifar10_forward.6} parent=23 // pred_check_branch
        %231 = sbr.rel (%p229) target = $region36
      $region35: #{cifar10_forward.6} parent=23 // pred_region
        %s232 = smul.u32 2, %s12
        %p233 = scmp.lt.s32.totalorder %s232, 3
        %s234 = scalar_select %p233, %s232, 3
        %s235 = smul.addr %s234, 7
        %s236 = smul.addr %s235, 4
        %s237 = scalar_lea.vmem %s2, %s236
        %s238 = smul.u32 2, %s12
      $region36: #{cifar10_forward.6} parent=23 // pred_fallthru
        _
      // Predicated region
      $region37: #{cifar10_forward.6} parent=23 // pred_check
        %p239 = pneg %p110
      $region38: #{cifar10_forward.6} parent=23 // pred_check_branch
        %241 = sbr.rel (%p239) target = $region40
      $region39: #{cifar10_forward.6} parent=23 // pred_region
        %s242 = smul.u32 2, %s12
        %p243 = scmp.lt.s32.totalorder %s242, 3
        %s244 = scalar_select %p243, %s242, 3
        %s245 = smul.addr %s244, 7
        %s246 = smul.addr %s245, 4
        %s247 = scalar_lea.vmem %s3, %s246
        %s248 = smul.u32 2, %s12
      $region40: #{cifar10_forward.6} parent=23 // pred_fallthru
        _
    $region24: #{cifar10_forward.6} parent=5 // pred_fallthru
      _
    %p249 = scmp.le.s32.totalorder 1, %s12
    %p250 = scmp.lt.s32.totalorder %s12, 3
    %p251 = pnand %p249, %p250
    %p252 = pneg %p251
    // Predicated region
    $region41: #{cifar10_forward.6} parent=5 // pred_check
      _
    $region42: #{cifar10_forward.6} parent=5 // pred_check_branch
      %254 = sbr.rel (%p251) target = $region44
    $region43: #{cifar10_forward.6} parent=5 // pred_region
      %s255 = ssub.s32 %s12, 1
      %s256 = smul.u32 2, %s17
      %p257 = scmp.lt.s32.totalorder %s256, 3
      %s258 = scalar_select %p257, %s256, 3
      %s259 = smul.addr %s258, 7
      %s260 = smul.addr %s259, 4
      %s261 = scalar_lea.vmem %s0, %s260
      %p262 = pneg %p38
      %p263 = pneg %p35
      %s264 = smul.u32 2, %s17
      %p265 = scmp.lt.s32.totalorder %s264, 3
      %s266 = scalar_select %p265, %s264, 3
      %s267 = smul.addr %s266, 7
      %s268 = smul.addr %s267, 4
      %s269 = scalar_lea.vmem %s1, %s268
      %p270 = pneg %p64
      %p271 = pneg %p61
      %s272 = smul.u32 2, %s17
      %p273 = scmp.lt.s32.totalorder %s272, 3
      %s274 = scalar_select %p273, %s272, 3
      %s275 = smul.addr %s274, 7
      %s276 = smul.addr %s275, 4
      %s277 = scalar_lea.vmem %s2, %s276
      %p278 = pneg %p90
      %p279 = pneg %p87
      %s280 = smul.u32 2, %s17
      %p281 = scmp.lt.s32.totalorder %s280, 3
      %s282 = scalar_select %p281, %s280, 3
      %s283 = smul.addr %s282, 7
      %s284 = smul.addr %s283, 4
      %s285 = scalar_lea.vmem %s3, %s284
      %p286 = pneg %p116
      %p287 = pneg %p113
      %p288 = pneg %p137
      %p289 = pneg %p134
      %p290 = pneg %p158
      %p291 = pneg %p155
      %p292 = pneg %p184
      %p293 = pneg %p181
      %s294 = smul.u32 2, %s17
      %p295 = scmp.lt.s32.totalorder %s294, 3
      %s296 = scalar_select %p295, %s294, 3
      %s297 = smul.addr %s296, 8
      %s298 = scalar_lea.vmem %s6, %s297
      %s299 = smul.u32 2, %s17
      %p300 = scmp.lt.s32.totalorder %s299, 3
      %s301 = scalar_select %p300, %s299, 3
      %s302 = smul.addr %s301, 7
      %s303 = smul.addr %s302, 4
      %s304 = scalar_lea.vmem %s0, %s303
      %s305 = smul.u32 2, %s17
      %s306 = smul.u32 2, %s17
      %p307 = scmp.lt.s32.totalorder %s306, 3
      %s308 = scalar_select %p307, %s306, 3
      %s309 = smul.addr %s308, 7
      %s310 = smul.addr %s309, 4
      %s311 = scalar_lea.vmem %s1, %s310
      %s312 = smul.u32 2, %s17
      %s313 = smul.u32 2, %s17
      %p314 = scmp.lt.s32.totalorder %s313, 3
      %s315 = scalar_select %p314, %s313, 3
      %s316 = smul.addr %s315, 7
      %s317 = smul.addr %s316, 4
      %s318 = scalar_lea.vmem %s2, %s317
      %s319 = smul.u32 2, %s17
      %s320 = smul.u32 2, %s17
      %p321 = scmp.lt.s32.totalorder %s320, 3
      %s322 = scalar_select %p321, %s320, 3
      %s323 = smul.addr %s322, 7
      %s324 = smul.addr %s323, 4
      %s325 = scalar_lea.vmem %s3, %s324
      %s326 = smul.u32 2, %s17
      %s327 = smul.u32 2, %s17
      %p328 = scmp.lt.s32.totalorder %s327, 3
      %s329 = scalar_select %p328, %s327, 3
      %s330 = smul.addr %s329, 8
      %s331 = scalar_lea.vmem %s6, %s330
      %s332 = smul.u32 2, %s17
      %v334 = vld [vmem:[%s4] sm:$0xf]
      %v335 = vld [vmem:[%s4 + $0x4] sm:$0xf]
      %v336 = vld [vmem:[%s4 + $0x8] sm:$0xf]
      %v337 = vld [vmem:[%s4 + $0xc] sm:$0xf]
      %v338 = vld [vmem:[%s4 + $0x10] sm:$0xf]
      %v339 = vld [vmem:[%s4 + $0x14] sm:$0xf]
      %v340 = vld [vmem:[%s4 + $0x18] sm:$0xf]
      %v341 = vld [vmem:[%s4 + $0x1c] sm:$0xf]
      %v342 = vld [vmem:[%s4 + $0x20] sm:$0xf]
      %v343 = vld [vmem:[%s4 + $0x24] sm:$0xf]
      %v344 = vld [vmem:[%s4 + $0x28] sm:$0xf]
      %v345 = vld [vmem:[%s4 + $0x2c] sm:$0xf]
      %v346 = vld [vmem:[%s4 + $0x30] sm:$0xf]
      %v347 = vld [vmem:[%s4 + $0x34] sm:$0xf]
      %v348 = vld [vmem:[%s4 + $0x38] sm:$0xf]
      %v349 = vld [vmem:[%s4 + $0x3c] sm:$0xf]
      %v350 = vld [vmem:[%s4 + $0x40] sm:$0xf]
      %v351 = vld [vmem:[%s4 + $0x44] sm:$0xf]
      %v352 = vld [vmem:[%s4 + $0x48] sm:$0xf]
      %v353 = vld [vmem:[%s4 + $0x4c] sm:$0xf]
      %v354 = vld [vmem:[%s4 + $0x50] sm:$0xf]
      %v355 = vld [vmem:[%s4 + $0x54] sm:$0xf]
      %v356 = vld [vmem:[%s4 + $0x58] sm:$0xf]
      %v357 = vld [vmem:[%s4 + $0x5c] sm:$0xf]
      %v358 = vld [vmem:[%s4 + $0x60] sm:$0xf]
      %v359 = vld [vmem:[%s4 + $0x64] sm:$0xf]
      %v360 = vld [vmem:[%s4 + $0x68] sm:$0xf]
      %v361 = vld [vmem:[%s4 + $0x6c] sm:$0xf]
      %v362 = vld [vmem:[%s4 + $0x70] sm:$0xf]
      %v363 = vld [vmem:[%s4 + $0x74] sm:$0xf]
      %v364 = vld [vmem:[%s4 + $0x78] sm:$0xf]
      %v365 = vld [vmem:[%s4 + $0x7c] sm:$0xf]
      %v366 = vld [vmem:[%s4 + $0x80] sm:$0xf]
      %v367 = vld [vmem:[%s4 + $0x84] sm:$0xf]
      %v368 = vld [vmem:[%s4 + $0x88] sm:$0xf]
      %v369 = vld [vmem:[%s4 + $0x8c] sm:$0xf]
      %v370 = vld [vmem:[%s4 + $0x90] sm:$0xf]
      %v371 = vld [vmem:[%s4 + $0x94] sm:$0xf]
      %v372 = vld [vmem:[%s4 + $0x98] sm:$0xf]
      %v373 = vld [vmem:[%s4 + $0x9c] sm:$0xf]
      %v374 = vld [vmem:[%s4 + $0xa0] sm:$0xf]
      %v375 = vld [vmem:[%s4 + $0xa4] sm:$0xf]
      %v376 = vld [vmem:[%s4 + $0xa8] sm:$0xf]
      %v377 = vld [vmem:[%s4 + $0xac] sm:$0xf]
      %v378 = vld [vmem:[%s4 + $0xb0] sm:$0xf]
      %v379 = vld [vmem:[%s4 + $0xb4] sm:$0xf]
      %v380 = vld [vmem:[%s4 + $0xb8] sm:$0xf]
      %v381 = vld [vmem:[%s4 + $0xbc] sm:$0xf]
      %v382 = vld [vmem:[%s4 + $0xc0] sm:$0xf]
      %v383 = vld [vmem:[%s4 + $0xc4] sm:$0xf]
      %v384 = vld [vmem:[%s4 + $0xc8] sm:$0xf]
      %v385 = vld [vmem:[%s4 + $0xcc] sm:$0xf]
      %v386 = vld [vmem:[%s4 + $0xd0] sm:$0xf]
      %v387 = vld [vmem:[%s4 + $0xd4] sm:$0xf]
      %v388 = vld [vmem:[%s4 + $0xd8] sm:$0xf]
      %v389 = vld [vmem:[%s4 + $0xdc] sm:$0xf]
      %v390 = vld [vmem:[%s4 + $0xe0] sm:$0xf]
      %v391 = vld [vmem:[%s4 + $0xe4] sm:$0xf]
      %v392 = vld [vmem:[%s4 + $0xe8] sm:$0xf]
      %v393 = vld [vmem:[%s4 + $0xec] sm:$0xf]
      %v394 = vld [vmem:[%s4 + $0xf0] sm:$0xf]
      %v395 = vld [vmem:[%s4 + $0xf4] sm:$0xf]
      %v396 = vld [vmem:[%s4 + $0xf8] sm:$0xf]
      %v397 = vld [vmem:[%s4 + $0xfc] sm:$0xf]
      %v398 = vld [vmem:[%s4 + $0x100] sm:$0xf]
      %v399 = vld [vmem:[%s4 + $0x104] sm:$0xf]
      %v400 = vld [vmem:[%s4 + $0x108] sm:$0xf]
      %v401 = vld [vmem:[%s4 + $0x10c] sm:$0xf]
      %v402 = vld [vmem:[%s4 + $0x110] sm:$0xf]
      %v403 = vld [vmem:[%s4 + $0x114] sm:$0xf]
      %v404 = vld [vmem:[%s4 + $0x118] sm:$0xf]
      %v405 = vld [vmem:[%s4 + $0x11c] sm:$0xf]
      %v406 = vld [vmem:[%s4 + $0x120] sm:$0xf]
      %v407 = vld [vmem:[%s4 + $0x124] sm:$0xf]
      %v408 = vld [vmem:[%s4 + $0x128] sm:$0xf]
      %v409 = vld [vmem:[%s4 + $0x12c] sm:$0xf]
      %v410 = vld [vmem:[%s4 + $0x130] sm:$0xf]
      %v411 = vld [vmem:[%s4 + $0x134] sm:$0xf]
      %v412 = vld [vmem:[%s4 + $0x138] sm:$0xf]
      %v413 = vld [vmem:[%s4 + $0x13c] sm:$0xf]
      %v414 = vld [vmem:[%s4 + $0x140] sm:$0xf]
      %v415 = vld [vmem:[%s4 + $0x144] sm:$0xf]
      %v416 = vld [vmem:[%s4 + $0x148] sm:$0xf]
      %v417 = vld [vmem:[%s4 + $0x14c] sm:$0xf]
      %v418 = vld [vmem:[%s4 + $0x150] sm:$0xf]
      %v419 = vld [vmem:[%s4 + $0x154] sm:$0xf]
      %v420 = vld [vmem:[%s4 + $0x158] sm:$0xf]
      %v421 = vld [vmem:[%s4 + $0x15c] sm:$0xf]
      %v422 = vld [vmem:[%s4 + $0x160] sm:$0xf]
      %v423 = vld [vmem:[%s4 + $0x164] sm:$0xf]
      %v424 = vld [vmem:[%s4 + $0x168] sm:$0xf]
      %v425 = vld [vmem:[%s4 + $0x16c] sm:$0xf]
      %v426 = vld [vmem:[%s4 + $0x170] sm:$0xf]
      %v427 = vld [vmem:[%s4 + $0x174] sm:$0xf]
      %v428 = vld [vmem:[%s4 + $0x178] sm:$0xf]
      %v429 = vld [vmem:[%s4 + $0x17c] sm:$0xf]
      %v430 = vld [vmem:[%s4 + $0x180] sm:$0xf]
      %v431 = vld [vmem:[%s4 + $0x184] sm:$0xf]
      %v432 = vld [vmem:[%s4 + $0x188] sm:$0xf]
      %v433 = vld [vmem:[%s4 + $0x18c] sm:$0xf]
      %v434 = vld [vmem:[%s4 + $0x190] sm:$0xf]
      %v435 = vld [vmem:[%s4 + $0x194] sm:$0xf]
      %v436 = vld [vmem:[%s4 + $0x198] sm:$0xf]
      %v437 = vld [vmem:[%s4 + $0x19c] sm:$0xf]
      %v438 = vld [vmem:[%s4 + $0x1a0] sm:$0xf]
      %v439 = vld [vmem:[%s4 + $0x1a4] sm:$0xf]
      %v440 = vld [vmem:[%s4 + $0x1a8] sm:$0xf]
      %v441 = vld [vmem:[%s4 + $0x1ac] sm:$0xf]
      %v442 = vld [vmem:[%s4 + $0x1b0] sm:$0xf]
      %v443 = vld [vmem:[%s4 + $0x1b4] sm:$0xf]
      %v444 = vld [vmem:[%s4 + $0x1b8] sm:$0xf]
      %v445 = vld [vmem:[%s4 + $0x1bc] sm:$0xf]
      %v446 = vld [vmem:[%s304] sm:$0xff]
      %v447 = vld [vmem:[%s304 + $0x8] sm:$0xff]
      %v448 = vld [vmem:[%s304 + $0x10] sm:$0xff]
      %v449 = vld [vmem:[%s304 + $0x18] sm:$0xf]
      %v450 = vld [vmem:[%s304 + $0x1c] sm:$0xff]
      %v451 = vld [vmem:[%s304 + $0x24] sm:$0xff]
      %v452 = vld [vmem:[%s304 + $0x2c] sm:$0xff]
      %v453 = vld [vmem:[%s304 + $0x34] sm:$0xf]
      %v462 = vunpack.c.l.b16 %v446
      %v463 = vunpack.c.h.b16 %v446
      %v464 = vunpack.c.l.b16 %v447
      %v465 = vunpack.c.h.b16 %v447
      %v466 = vunpack.c.l.b16 %v448
      %v467 = vunpack.c.h.b16 %v448
      %v468 = vunpack.c.l.b16 %v449
      %v469 = vunpack.c.l.b16 %v450
      %v470 = vunpack.c.h.b16 %v450
      %v471 = vunpack.c.l.b16 %v451
      %v472 = vunpack.c.h.b16 %v451
      %v473 = vunpack.c.l.b16 %v452
      %v474 = vunpack.c.h.b16 %v452
      %v475 = vunpack.c.l.b16 %v453
      %v476 = vpack.c.b16 %v469, %v462
      %v477 = vpack.c.b16 %v470, %v463
      %v478 = vpack.c.b16 %v471, %v464
      %v479 = vpack.c.b16 %v472, %v465
      %v480 = vpack.c.b16 %v473, %v466
      %v481 = vpack.c.b16 %v474, %v467
      %v482 = vpack.c.b16 %v475, %v468
      %v602 = vunpack.c.l.b16 %v334
      %v603 = vunpack.c.l.b16 %v335
      %v604 = vunpack.c.l.b16 %v336
      %v605 = vunpack.c.l.b16 %v337
      %v606 = vunpack.c.l.b16 %v338
      %v607 = vunpack.c.l.b16 %v339
      %v608 = vunpack.c.l.b16 %v340
      %v609 = vunpack.c.l.b16 %v341
      %v610 = vunpack.c.l.b16 %v342
      %v611 = vunpack.c.l.b16 %v343
      %v612 = vunpack.c.l.b16 %v344
      %v613 = vunpack.c.l.b16 %v345
      %v614 = vunpack.c.l.b16 %v346
      %v615 = vunpack.c.l.b16 %v347
      %v616 = vunpack.c.l.b16 %v348
      %v617 = vunpack.c.l.b16 %v349
      %v618 = vunpack.c.l.b16 %v350
      %v619 = vunpack.c.l.b16 %v351
      %v620 = vunpack.c.l.b16 %v352
      %v621 = vunpack.c.l.b16 %v353
      %v622 = vunpack.c.l.b16 %v354
      %v623 = vunpack.c.l.b16 %v355
      %v624 = vunpack.c.l.b16 %v356
      %v625 = vunpack.c.l.b16 %v357
      %v626 = vunpack.c.l.b16 %v358
      %v627 = vunpack.c.l.b16 %v359
      %v628 = vunpack.c.l.b16 %v360
      %v629 = vunpack.c.l.b16 %v361
      %v630 = vunpack.c.l.b16 %v362
      %v631 = vunpack.c.l.b16 %v363
      %v632 = vunpack.c.l.b16 %v364
      %v633 = vunpack.c.l.b16 %v365
      %v634 = vunpack.c.l.b16 %v366
      %v635 = vunpack.c.l.b16 %v367
      %v636 = vunpack.c.l.b16 %v368
      %v637 = vunpack.c.l.b16 %v369
      %v638 = vunpack.c.l.b16 %v370
      %v639 = vunpack.c.l.b16 %v371
      %v640 = vunpack.c.l.b16 %v372
      %v641 = vunpack.c.l.b16 %v373
      %v642 = vunpack.c.l.b16 %v374
      %v643 = vunpack.c.l.b16 %v375
      %v644 = vunpack.c.l.b16 %v376
      %v645 = vunpack.c.l.b16 %v377
      %v646 = vunpack.c.l.b16 %v378
      %v647 = vunpack.c.l.b16 %v379
      %v648 = vunpack.c.l.b16 %v380
      %v649 = vunpack.c.l.b16 %v381
      %v650 = vunpack.c.l.b16 %v382
      %v651 = vunpack.c.l.b16 %v383
      %v652 = vunpack.c.l.b16 %v384
      %v653 = vunpack.c.l.b16 %v385
      %v654 = vunpack.c.l.b16 %v386
      %v655 = vunpack.c.l.b16 %v387
      %v656 = vunpack.c.l.b16 %v388
      %v657 = vunpack.c.l.b16 %v389
      %v658 = vunpack.c.l.b16 %v390
      %v659 = vunpack.c.l.b16 %v391
      %v660 = vunpack.c.l.b16 %v392
      %v661 = vunpack.c.l.b16 %v393
      %v662 = vunpack.c.l.b16 %v394
      %v663 = vunpack.c.l.b16 %v395
      %v664 = vunpack.c.l.b16 %v396
      %v665 = vunpack.c.l.b16 %v397
      %v666 = vunpack.c.l.b16 %v398
      %v667 = vunpack.c.l.b16 %v399
      %v668 = vunpack.c.l.b16 %v400
      %v669 = vunpack.c.l.b16 %v401
      %v670 = vunpack.c.l.b16 %v402
      %v671 = vunpack.c.l.b16 %v403
      %v672 = vunpack.c.l.b16 %v404
      %v673 = vunpack.c.l.b16 %v405
      %v674 = vunpack.c.l.b16 %v406
      %v675 = vunpack.c.l.b16 %v407
      %v676 = vunpack.c.l.b16 %v408
      %v677 = vunpack.c.l.b16 %v409
      %v678 = vunpack.c.l.b16 %v410
      %v679 = vunpack.c.l.b16 %v411
      %v680 = vunpack.c.l.b16 %v412
      %v681 = vunpack.c.l.b16 %v413
      %v682 = vunpack.c.l.b16 %v414
      %v683 = vunpack.c.l.b16 %v415
      %v684 = vunpack.c.l.b16 %v416
      %v685 = vunpack.c.l.b16 %v417
      %v686 = vunpack.c.l.b16 %v418
      %v687 = vunpack.c.l.b16 %v419
      %v688 = vunpack.c.l.b16 %v420
      %v689 = vunpack.c.l.b16 %v421
      %v690 = vunpack.c.l.b16 %v422
      %v691 = vunpack.c.l.b16 %v423
      %v692 = vunpack.c.l.b16 %v424
      %v693 = vunpack.c.l.b16 %v425
      %v694 = vunpack.c.l.b16 %v426
      %v695 = vunpack.c.l.b16 %v427
      %v696 = vunpack.c.l.b16 %v428
      %v697 = vunpack.c.l.b16 %v429
      %v698 = vunpack.c.l.b16 %v430
      %v699 = vunpack.c.l.b16 %v431
      %v700 = vunpack.c.l.b16 %v432
      %v701 = vunpack.c.l.b16 %v433
      %v702 = vunpack.c.l.b16 %v434
      %v703 = vunpack.c.l.b16 %v435
      %v704 = vunpack.c.l.b16 %v436
      %v705 = vunpack.c.l.b16 %v437
      %v706 = vunpack.c.l.b16 %v438
      %v707 = vunpack.c.l.b16 %v439
      %v708 = vunpack.c.l.b16 %v440
      %v709 = vunpack.c.l.b16 %v441
      %v710 = vunpack.c.l.b16 %v442
      %v711 = vunpack.c.l.b16 %v443
      %v712 = vunpack.c.l.b16 %v444
      %v713 = vunpack.c.l.b16 %v445
      %v714 = vpack.c.b16 %v603, %v602
      %v715 = vpack.c.b16 %v605, %v604
      %v716 = vpack.c.b16 %v607, %v606
      %v717 = vpack.c.b16 %v609, %v608
      %v718 = vpack.c.b16 %v611, %v610
      %v719 = vpack.c.b16 %v613, %v612
      %v720 = vpack.c.b16 %v615, %v614
      %v721 = vpack.c.b16 %v617, %v616
      %v722 = vpack.c.b16 %v619, %v618
      %v723 = vpack.c.b16 %v621, %v620
      %v724 = vpack.c.b16 %v623, %v622
      %v725 = vpack.c.b16 %v625, %v624
      %v726 = vpack.c.b16 %v627, %v626
      %v727 = vpack.c.b16 %v629, %v628
      %v728 = vpack.c.b16 %v631, %v630
      %v729 = vpack.c.b16 %v633, %v632
      %v730 = vpack.c.b16 %v635, %v634
      %v731 = vpack.c.b16 %v637, %v636
      %v732 = vpack.c.b16 %v639, %v638
      %v733 = vpack.c.b16 %v641, %v640
      %v734 = vpack.c.b16 %v643, %v642
      %v735 = vpack.c.b16 %v645, %v644
      %v736 = vpack.c.b16 %v647, %v646
      %v737 = vpack.c.b16 %v649, %v648
      %v738 = vpack.c.b16 %v651, %v650
      %v739 = vpack.c.b16 %v653, %v652
      %v740 = vpack.c.b16 %v655, %v654
      %v741 = vpack.c.b16 %v657, %v656
      %v742 = vpack.c.b16 %v659, %v658
      %v743 = vpack.c.b16 %v661, %v660
      %v744 = vpack.c.b16 %v663, %v662
      %v745 = vpack.c.b16 %v665, %v664
      %v746 = vpack.c.b16 %v667, %v666
      %v747 = vpack.c.b16 %v669, %v668
      %v748 = vpack.c.b16 %v671, %v670
      %v749 = vpack.c.b16 %v673, %v672
      %v750 = vpack.c.b16 %v675, %v674
      %v751 = vpack.c.b16 %v677, %v676
      %v752 = vpack.c.b16 %v679, %v678
      %v753 = vpack.c.b16 %v681, %v680
      %v754 = vpack.c.b16 %v683, %v682
      %v755 = vpack.c.b16 %v685, %v684
      %v756 = vpack.c.b16 %v687, %v686
      %v757 = vpack.c.b16 %v689, %v688
      %v758 = vpack.c.b16 %v691, %v690
      %v759 = vpack.c.b16 %v693, %v692
      %v760 = vpack.c.b16 %v695, %v694
      %v761 = vpack.c.b16 %v697, %v696
      %v762 = vpack.c.b16 %v699, %v698
      %v763 = vpack.c.b16 %v701, %v700
      %v764 = vpack.c.b16 %v703, %v702
      %v765 = vpack.c.b16 %v705, %v704
      %v766 = vpack.c.b16 %v707, %v706
      %v767 = vpack.c.b16 %v709, %v708
      %v768 = vpack.c.b16 %v711, %v710
      %v769 = vpack.c.b16 %v713, %v712
      %826 = vmatprep.subr.bf16.mxu0 0
      %827 = vmatpush1.bf16.msra.mxu0 %v721
      %828 = vmatprep.subr.bf16.mxu0 0
      %829 = vmatpush1.bf16.msra.mxu0 %v720
      %830 = vmatprep.subr.bf16.mxu0 0
      %831 = vmatpush1.bf16.msra.mxu0 %v719
      %832 = vmatprep.subr.bf16.mxu0 0
      %833 = vmatpush1.bf16.msra.mxu0 %v718
      %834 = vmatprep.subr.bf16.mxu0 0
      %835 = vmatpush1.bf16.msra.mxu0 %v717
      %836 = vmatprep.subr.bf16.mxu0 0
      %837 = vmatpush1.bf16.msra.mxu0 %v716
      %838 = vmatprep.subr.bf16.mxu0 0
      %839 = vmatpush1.bf16.msra.mxu0 %v715
      %840 = vmatprep.subr.bf16.mxu0 0
      %841 = vmatpush1.bf16.msra.mxu0 %v714
      %842 = vmatprep.subr.bf16.mxu0 0
      %843 = vmatpush2.bf16.msra.mxu0 %v729
      %844 = vmatprep.subr.bf16.mxu0 0
      %845 = vmatpush2.bf16.msra.mxu0 %v728
      %846 = vmatprep.subr.bf16.mxu0 0
      %847 = vmatpush2.bf16.msra.mxu0 %v727
      %848 = vmatprep.subr.bf16.mxu0 0
      %849 = vmatpush2.bf16.msra.mxu0 %v726
      %850 = vmatprep.subr.bf16.mxu0 0
      %851 = vmatpush2.bf16.msra.mxu0 %v725
      %852 = vmatprep.subr.bf16.mxu0 0
      %853 = vmatpush2.bf16.msra.mxu0 %v724
      %854 = vmatprep.subr.bf16.mxu0 0
      %855 = vmatpush2.bf16.msra.mxu0 %v723
      %856 = vmatprep.subr.bf16.mxu0 0
      %857 = vmatpush2.bf16.msra.mxu0 %v722
      %858 = vmatprep.mubr.bf16.mxu0 %v477
      %859 = vmatmul.mubr.bf16.gmra.mxu0 %v476
      %v860 = vpop.f32.mrf.mxu0
      %v861 = vadd.f32 0.0, %v860
      %v862 = vpop.f32.mrf.mxu0
      %v863 = vpop.f32.mrf.mxu0
      %v864 = vadd.f32 0.0, %v863
      %v865 = vpop.f32.mrf.mxu0
      %866 = vdwg.mxu0
      %867 = vmatprep.subr.bf16.mxu0 0
      %868 = vmatpush1.bf16.msra.mxu0 %v737
      %869 = vmatprep.subr.bf16.mxu0 0
      %870 = vmatpush1.bf16.msra.mxu0 %v736
      %871 = vmatprep.subr.bf16.mxu0 0
      %872 = vmatpush1.bf16.msra.mxu0 %v735
      %873 = vmatprep.subr.bf16.mxu0 0
      %874 = vmatpush1.bf16.msra.mxu0 %v734
      %875 = vmatprep.subr.bf16.mxu0 0
      %876 = vmatpush1.bf16.msra.mxu0 %v733
      %877 = vmatprep.subr.bf16.mxu0 0
      %878 = vmatpush1.bf16.msra.mxu0 %v732
      %879 = vmatprep.subr.bf16.mxu0 0
      %880 = vmatpush1.bf16.msra.mxu0 %v731
      %881 = vmatprep.subr.bf16.mxu0 0
      %882 = vmatpush1.bf16.msra.mxu0 %v730
      %883 = vmatprep.subr.bf16.mxu0 0
      %884 = vmatpush2.bf16.msra.mxu0 %v745
      %885 = vmatprep.subr.bf16.mxu0 0
      %886 = vmatpush2.bf16.msra.mxu0 %v744
      %887 = vmatprep.subr.bf16.mxu0 0
      %888 = vmatpush2.bf16.msra.mxu0 %v743
      %889 = vmatprep.subr.bf16.mxu0 0
      %890 = vmatpush2.bf16.msra.mxu0 %v742
      %891 = vmatprep.subr.bf16.mxu0 0
      %892 = vmatpush2.bf16.msra.mxu0 %v741
      %893 = vmatprep.subr.bf16.mxu0 0
      %894 = vmatpush2.bf16.msra.mxu0 %v740
      %895 = vmatprep.subr.bf16.mxu0 0
      %896 = vmatpush2.bf16.msra.mxu0 %v739
      %897 = vmatprep.subr.bf16.mxu0 0
      %898 = vmatpush2.bf16.msra.mxu0 %v738
      %899 = vmatprep.mubr.bf16.mxu0 %v479
      %900 = vmatmul.mubr.bf16.gmra.mxu0 %v478
      %v901 = vpop.f32.mrf.mxu0
      %v902 = vadd.f32 %v861, %v901
      %v903 = vpop.f32.mrf.mxu0
      %v904 = vpop.f32.mrf.mxu0
      %v905 = vadd.f32 %v864, %v904
      %v906 = vpop.f32.mrf.mxu0
      %907 = vdwg.mxu0
      %908 = vmatprep.subr.bf16.mxu0 0
      %909 = vmatpush1.bf16.msra.mxu0 %v753
      %910 = vmatprep.subr.bf16.mxu0 0
      %911 = vmatpush1.bf16.msra.mxu0 %v752
      %912 = vmatprep.subr.bf16.mxu0 0
      %913 = vmatpush1.bf16.msra.mxu0 %v751
      %914 = vmatprep.subr.bf16.mxu0 0
      %915 = vmatpush1.bf16.msra.mxu0 %v750
      %916 = vmatprep.subr.bf16.mxu0 0
      %917 = vmatpush1.bf16.msra.mxu0 %v749
      %918 = vmatprep.subr.bf16.mxu0 0
      %919 = vmatpush1.bf16.msra.mxu0 %v748
      %920 = vmatprep.subr.bf16.mxu0 0
      %921 = vmatpush1.bf16.msra.mxu0 %v747
      %922 = vmatprep.subr.bf16.mxu0 0
      %923 = vmatpush1.bf16.msra.mxu0 %v746
      %924 = vmatprep.subr.bf16.mxu0 0
      %925 = vmatpush2.bf16.msra.mxu0 %v761
      %926 = vmatprep.subr.bf16.mxu0 0
      %927 = vmatpush2.bf16.msra.mxu0 %v760
      %928 = vmatprep.subr.bf16.mxu0 0
      %929 = vmatpush2.bf16.msra.mxu0 %v759
      %930 = vmatprep.subr.bf16.mxu0 0
      %931 = vmatpush2.bf16.msra.mxu0 %v758
      %932 = vmatprep.subr.bf16.mxu0 0
      %933 = vmatpush2.bf16.msra.mxu0 %v757
      %934 = vmatprep.subr.bf16.mxu0 0
      %935 = vmatpush2.bf16.msra.mxu0 %v756
      %936 = vmatprep.subr.bf16.mxu0 0
      %937 = vmatpush2.bf16.msra.mxu0 %v755
      %938 = vmatprep.subr.bf16.mxu0 0
      %939 = vmatpush2.bf16.msra.mxu0 %v754
      %940 = vmatprep.mubr.bf16.mxu0 %v481
      %941 = vmatmul.mubr.bf16.gmra.mxu0 %v480
      %v942 = vpop.f32.mrf.mxu0
      %v943 = vadd.f32 %v902, %v942
      %v944 = vpop.f32.mrf.mxu0
      %v945 = vpop.f32.mrf.mxu0
      %v946 = vadd.f32 %v905, %v945
      %v947 = vpop.f32.mrf.mxu0
      %948 = vdwg.mxu0
      %949 = vmatprep.subr.bf16.mxu0 0
      %950 = vmatpush1.bf16.msra.mxu0 %v769
      %951 = vmatprep.subr.bf16.mxu0 0
      %952 = vmatpush1.bf16.msra.mxu0 %v768
      %953 = vmatprep.subr.bf16.mxu0 0
      %954 = vmatpush1.bf16.msra.mxu0 %v767
      %955 = vmatprep.subr.bf16.mxu0 0
      %956 = vmatpush1.bf16.msra.mxu0 %v766
      %957 = vmatprep.subr.bf16.mxu0 0
      %958 = vmatpush1.bf16.msra.mxu0 %v765
      %959 = vmatprep.subr.bf16.mxu0 0
      %960 = vmatpush1.bf16.msra.mxu0 %v764
      %961 = vmatprep.subr.bf16.mxu0 0
      %962 = vmatpush1.bf16.msra.mxu0 %v763
      %963 = vmatprep.subr.bf16.mxu0 0
      %964 = vmatpush1.bf16.msra.mxu0 %v762
      %965 = vmatprep.subr.bf16.mxu0 0
      %966 = vmatpush2.bf16.msra.mxu0 0
      %967 = vmatprep.subr.bf16.mxu0 0
      %968 = vmatpush2.bf16.msra.mxu0 0
      %969 = vmatprep.subr.bf16.mxu0 0
      %970 = vmatpush2.bf16.msra.mxu0 0
      %971 = vmatprep.subr.bf16.mxu0 0
      %972 = vmatpush2.bf16.msra.mxu0 0
      %973 = vmatprep.subr.bf16.mxu0 0
      %974 = vmatpush2.bf16.msra.mxu0 0
      %975 = vmatprep.subr.bf16.mxu0 0
      %976 = vmatpush2.bf16.msra.mxu0 0
      %977 = vmatprep.subr.bf16.mxu0 0
      %978 = vmatpush2.bf16.msra.mxu0 0
      %979 = vmatprep.subr.bf16.mxu0 0
      %980 = vmatpush2.bf16.msra.mxu0 0
      %981 = vmatprep.mubr.bf16.mxu0 0
      %982 = vmatmul.mubr.bf16.gmra.mxu0 %v482
      %v983 = vpop.f32.mrf.mxu0
      %v984 = vadd.f32 %v943, %v983
      %v985 = vpop.f32.mrf.mxu0
      %v986 = vpop.f32.mrf.mxu0
      %v987 = vadd.f32 %v946, %v986
      %v988 = vpop.f32.mrf.mxu0
      %989 = vdwg.mxu0
      %v990 = vld [vmem:[%s311] sm:$0xff]
      %v991 = vld [vmem:[%s311 + $0x8] sm:$0xff]
      %v992 = vld [vmem:[%s311 + $0x10] sm:$0xff]
      %v993 = vld [vmem:[%s311 + $0x18] sm:$0xf]
      %v994 = vld [vmem:[%s311 + $0x1c] sm:$0xff]
      %v995 = vld [vmem:[%s311 + $0x24] sm:$0xff]
      %v996 = vld [vmem:[%s311 + $0x2c] sm:$0xff]
      %v997 = vld [vmem:[%s311 + $0x34] sm:$0xf]
      %v1006 = vunpack.c.l.b16 %v990
      %v1007 = vunpack.c.h.b16 %v990
      %v1008 = vunpack.c.l.b16 %v991
      %v1009 = vunpack.c.h.b16 %v991
      %v1010 = vunpack.c.l.b16 %v992
      %v1011 = vunpack.c.h.b16 %v992
      %v1012 = vunpack.c.l.b16 %v993
      %v1013 = vunpack.c.l.b16 %v994
      %v1014 = vunpack.c.h.b16 %v994
      %v1015 = vunpack.c.l.b16 %v995
      %v1016 = vunpack.c.h.b16 %v995
      %v1017 = vunpack.c.l.b16 %v996
      %v1018 = vunpack.c.h.b16 %v996
      %v1019 = vunpack.c.l.b16 %v997
      %v1020 = vpack.c.b16 %v1013, %v1006
      %v1021 = vpack.c.b16 %v1014, %v1007
      %v1022 = vpack.c.b16 %v1015, %v1008
      %v1023 = vpack.c.b16 %v1016, %v1009
      %v1024 = vpack.c.b16 %v1017, %v1010
      %v1025 = vpack.c.b16 %v1018, %v1011
      %v1026 = vpack.c.b16 %v1019, %v1012
      %1034 = vmatprep.subr.bf16.mxu0 0
      %1035 = vmatpush1.bf16.msra.mxu0 %v721
      %1036 = vmatprep.subr.bf16.mxu0 0
      %1037 = vmatpush1.bf16.msra.mxu0 %v720
      %1038 = vmatprep.subr.bf16.mxu0 0
      %1039 = vmatpush1.bf16.msra.mxu0 %v719
      %1040 = vmatprep.subr.bf16.mxu0 0
      %1041 = vmatpush1.bf16.msra.mxu0 %v718
      %1042 = vmatprep.subr.bf16.mxu0 0
      %1043 = vmatpush1.bf16.msra.mxu0 %v717
      %1044 = vmatprep.subr.bf16.mxu0 0
      %1045 = vmatpush1.bf16.msra.mxu0 %v716
      %1046 = vmatprep.subr.bf16.mxu0 0
      %1047 = vmatpush1.bf16.msra.mxu0 %v715
      %1048 = vmatprep.subr.bf16.mxu0 0
      %1049 = vmatpush1.bf16.msra.mxu0 %v714
      %1050 = vmatprep.subr.bf16.mxu0 0
      %1051 = vmatpush2.bf16.msra.mxu0 %v729
      %1052 = vmatprep.subr.bf16.mxu0 0
      %1053 = vmatpush2.bf16.msra.mxu0 %v728
      %1054 = vmatprep.subr.bf16.mxu0 0
      %1055 = vmatpush2.bf16.msra.mxu0 %v727
      %1056 = vmatprep.subr.bf16.mxu0 0
      %1057 = vmatpush2.bf16.msra.mxu0 %v726
      %1058 = vmatprep.subr.bf16.mxu0 0
      %1059 = vmatpush2.bf16.msra.mxu0 %v725
      %1060 = vmatprep.subr.bf16.mxu0 0
      %1061 = vmatpush2.bf16.msra.mxu0 %v724
      %1062 = vmatprep.subr.bf16.mxu0 0
      %1063 = vmatpush2.bf16.msra.mxu0 %v723
      %1064 = vmatprep.subr.bf16.mxu0 0
      %1065 = vmatpush2.bf16.msra.mxu0 %v722
      %1066 = vmatprep.mubr.bf16.mxu0 %v1021
      %1067 = vmatmul.mubr.bf16.gmra.mxu0 %v1020
      %v1068 = vpop.f32.mrf.mxu0
      %v1069 = vadd.f32 0.0, %v1068
      %v1070 = vpop.f32.mrf.mxu0
      %v1071 = vpop.f32.mrf.mxu0
      %v1072 = vadd.f32 0.0, %v1071
      %v1073 = vpop.f32.mrf.mxu0
      %1074 = vdwg.mxu0
      %1075 = vmatprep.subr.bf16.mxu0 0
      %1076 = vmatpush1.bf16.msra.mxu0 %v737
      %1077 = vmatprep.subr.bf16.mxu0 0
      %1078 = vmatpush1.bf16.msra.mxu0 %v736
      %1079 = vmatprep.subr.bf16.mxu0 0
      %1080 = vmatpush1.bf16.msra.mxu0 %v735
      %1081 = vmatprep.subr.bf16.mxu0 0
      %1082 = vmatpush1.bf16.msra.mxu0 %v734
      %1083 = vmatprep.subr.bf16.mxu0 0
      %1084 = vmatpush1.bf16.msra.mxu0 %v733
      %1085 = vmatprep.subr.bf16.mxu0 0
      %1086 = vmatpush1.bf16.msra.mxu0 %v732
      %1087 = vmatprep.subr.bf16.mxu0 0
      %1088 = vmatpush1.bf16.msra.mxu0 %v731
      %1089 = vmatprep.subr.bf16.mxu0 0
      %1090 = vmatpush1.bf16.msra.mxu0 %v730
      %1091 = vmatprep.subr.bf16.mxu0 0
      %1092 = vmatpush2.bf16.msra.mxu0 %v745
      %1093 = vmatprep.subr.bf16.mxu0 0
      %1094 = vmatpush2.bf16.msra.mxu0 %v744
      %1095 = vmatprep.subr.bf16.mxu0 0
      %1096 = vmatpush2.bf16.msra.mxu0 %v743
      %1097 = vmatprep.subr.bf16.mxu0 0
      %1098 = vmatpush2.bf16.msra.mxu0 %v742
      %1099 = vmatprep.subr.bf16.mxu0 0
      %1100 = vmatpush2.bf16.msra.mxu0 %v741
      %1101 = vmatprep.subr.bf16.mxu0 0
      %1102 = vmatpush2.bf16.msra.mxu0 %v740
      %1103 = vmatprep.subr.bf16.mxu0 0
      %1104 = vmatpush2.bf16.msra.mxu0 %v739
      %1105 = vmatprep.subr.bf16.mxu0 0
      %1106 = vmatpush2.bf16.msra.mxu0 %v738
      %1107 = vmatprep.mubr.bf16.mxu0 %v1023
      %1108 = vmatmul.mubr.bf16.gmra.mxu0 %v1022
      %v1109 = vpop.f32.mrf.mxu0
      %v1110 = vadd.f32 %v1069, %v1109
      %v1111 = vpop.f32.mrf.mxu0
      %v1112 = vpop.f32.mrf.mxu0
      %v1113 = vadd.f32 %v1072, %v1112
      %v1114 = vpop.f32.mrf.mxu0
      %1115 = vdwg.mxu0
      %1116 = vmatprep.subr.bf16.mxu0 0
      %1117 = vmatpush1.bf16.msra.mxu0 %v753
      %1118 = vmatprep.subr.bf16.mxu0 0
      %1119 = vmatpush1.bf16.msra.mxu0 %v752
      %1120 = vmatprep.subr.bf16.mxu0 0
      %1121 = vmatpush1.bf16.msra.mxu0 %v751
      %1122 = vmatprep.subr.bf16.mxu0 0
      %1123 = vmatpush1.bf16.msra.mxu0 %v750
      %1124 = vmatprep.subr.bf16.mxu0 0
      %1125 = vmatpush1.bf16.msra.mxu0 %v749
      %1126 = vmatprep.subr.bf16.mxu0 0
      %1127 = vmatpush1.bf16.msra.mxu0 %v748
      %1128 = vmatprep.subr.bf16.mxu0 0
      %1129 = vmatpush1.bf16.msra.mxu0 %v747
      %1130 = vmatprep.subr.bf16.mxu0 0
      %1131 = vmatpush1.bf16.msra.mxu0 %v746
      %1132 = vmatprep.subr.bf16.mxu0 0
      %1133 = vmatpush2.bf16.msra.mxu0 %v761
      %1134 = vmatprep.subr.bf16.mxu0 0
      %1135 = vmatpush2.bf16.msra.mxu0 %v760
      %1136 = vmatprep.subr.bf16.mxu0 0
      %1137 = vmatpush2.bf16.msra.mxu0 %v759
      %1138 = vmatprep.subr.bf16.mxu0 0
      %1139 = vmatpush2.bf16.msra.mxu0 %v758
      %1140 = vmatprep.subr.bf16.mxu0 0
      %1141 = vmatpush2.bf16.msra.mxu0 %v757
      %1142 = vmatprep.subr.bf16.mxu0 0
      %1143 = vmatpush2.bf16.msra.mxu0 %v756
      %1144 = vmatprep.subr.bf16.mxu0 0
      %1145 = vmatpush2.bf16.msra.mxu0 %v755
      %1146 = vmatprep.subr.bf16.mxu0 0
      %1147 = vmatpush2.bf16.msra.mxu0 %v754
      %1148 = vmatprep.mubr.bf16.mxu0 %v1025
      %1149 = vmatmul.mubr.bf16.gmra.mxu0 %v1024
      %v1150 = vpop.f32.mrf.mxu0
      %v1151 = vadd.f32 %v1110, %v1150
      %v1152 = vpop.f32.mrf.mxu0
      %v1153 = vpop.f32.mrf.mxu0
      %v1154 = vadd.f32 %v1113, %v1153
      %v1155 = vpop.f32.mrf.mxu0
      %1156 = vdwg.mxu0
      %1157 = vmatprep.subr.bf16.mxu0 0
      %1158 = vmatpush1.bf16.msra.mxu0 %v769
      %1159 = vmatprep.subr.bf16.mxu0 0
      %1160 = vmatpush1.bf16.msra.mxu0 %v768
      %1161 = vmatprep.subr.bf16.mxu0 0
      %1162 = vmatpush1.bf16.msra.mxu0 %v767
      %1163 = vmatprep.subr.bf16.mxu0 0
      %1164 = vmatpush1.bf16.msra.mxu0 %v766
      %1165 = vmatprep.subr.bf16.mxu0 0
      %1166 = vmatpush1.bf16.msra.mxu0 %v765
      %1167 = vmatprep.subr.bf16.mxu0 0
      %1168 = vmatpush1.bf16.msra.mxu0 %v764
      %1169 = vmatprep.subr.bf16.mxu0 0
      %1170 = vmatpush1.bf16.msra.mxu0 %v763
      %1171 = vmatprep.subr.bf16.mxu0 0
      %1172 = vmatpush1.bf16.msra.mxu0 %v762
      %1173 = vmatprep.subr.bf16.mxu0 0
      %1174 = vmatpush2.bf16.msra.mxu0 0
      %1175 = vmatprep.subr.bf16.mxu0 0
      %1176 = vmatpush2.bf16.msra.mxu0 0
      %1177 = vmatprep.subr.bf16.mxu0 0
      %1178 = vmatpush2.bf16.msra.mxu0 0
      %1179 = vmatprep.subr.bf16.mxu0 0
      %1180 = vmatpush2.bf16.msra.mxu0 0
      %1181 = vmatprep.subr.bf16.mxu0 0
      %1182 = vmatpush2.bf16.msra.mxu0 0
      %1183 = vmatprep.subr.bf16.mxu0 0
      %1184 = vmatpush2.bf16.msra.mxu0 0
      %1185 = vmatprep.subr.bf16.mxu0 0
      %1186 = vmatpush2.bf16.msra.mxu0 0
      %1187 = vmatprep.subr.bf16.mxu0 0
      %1188 = vmatpush2.bf16.msra.mxu0 0
      %1189 = vmatprep.mubr.bf16.mxu0 0
      %1190 = vmatmul.mubr.bf16.gmra.mxu0 %v1026
      %v1191 = vpop.f32.mrf.mxu0
      %v1192 = vadd.f32 %v1151, %v1191
      %v1193 = vpop.f32.mrf.mxu0
      %v1194 = vpop.f32.mrf.mxu0
      %v1195 = vadd.f32 %v1154, %v1194
      %v1196 = vpop.f32.mrf.mxu0
      %1197 = vdwg.mxu0
      %v1198 = vld [vmem:[%s318] sm:$0xff]
      %v1199 = vld [vmem:[%s318 + $0x8] sm:$0xff]
      %v1200 = vld [vmem:[%s318 + $0x10] sm:$0xff]
      %v1201 = vld [vmem:[%s318 + $0x18] sm:$0xf]
      %v1202 = vld [vmem:[%s318 + $0x1c] sm:$0xff]
      %v1203 = vld [vmem:[%s318 + $0x24] sm:$0xff]
      %v1204 = vld [vmem:[%s318 + $0x2c] sm:$0xff]
      %v1205 = vld [vmem:[%s318 + $0x34] sm:$0xf]
      %v1214 = vunpack.c.l.b16 %v1198
      %v1215 = vunpack.c.h.b16 %v1198
      %v1216 = vunpack.c.l.b16 %v1199
      %v1217 = vunpack.c.h.b16 %v1199
      %v1218 = vunpack.c.l.b16 %v1200
      %v1219 = vunpack.c.h.b16 %v1200
      %v1220 = vunpack.c.l.b16 %v1201
      %v1221 = vunpack.c.l.b16 %v1202
      %v1222 = vunpack.c.h.b16 %v1202
      %v1223 = vunpack.c.l.b16 %v1203
      %v1224 = vunpack.c.h.b16 %v1203
      %v1225 = vunpack.c.l.b16 %v1204
      %v1226 = vunpack.c.h.b16 %v1204
      %v1227 = vunpack.c.l.b16 %v1205
      %v1228 = vpack.c.b16 %v1221, %v1214
      %v1229 = vpack.c.b16 %v1222, %v1215
      %v1230 = vpack.c.b16 %v1223, %v1216
      %v1231 = vpack.c.b16 %v1224, %v1217
      %v1232 = vpack.c.b16 %v1225, %v1218
      %v1233 = vpack.c.b16 %v1226, %v1219
      %v1234 = vpack.c.b16 %v1227, %v1220
      %1242 = vmatprep.subr.bf16.mxu0 0
      %1243 = vmatpush1.bf16.msra.mxu0 %v721
      %1244 = vmatprep.subr.bf16.mxu0 0
      %1245 = vmatpush1.bf16.msra.mxu0 %v720
      %1246 = vmatprep.subr.bf16.mxu0 0
      %1247 = vmatpush1.bf16.msra.mxu0 %v719
      %1248 = vmatprep.subr.bf16.mxu0 0
      %1249 = vmatpush1.bf16.msra.mxu0 %v718
      %1250 = vmatprep.subr.bf16.mxu0 0
      %1251 = vmatpush1.bf16.msra.mxu0 %v717
      %1252 = vmatprep.subr.bf16.mxu0 0
      %1253 = vmatpush1.bf16.msra.mxu0 %v716
      %1254 = vmatprep.subr.bf16.mxu0 0
      %1255 = vmatpush1.bf16.msra.mxu0 %v715
      %1256 = vmatprep.subr.bf16.mxu0 0
      %1257 = vmatpush1.bf16.msra.mxu0 %v714
      %1258 = vmatprep.subr.bf16.mxu0 0
      %1259 = vmatpush2.bf16.msra.mxu0 %v729
      %1260 = vmatprep.subr.bf16.mxu0 0
      %1261 = vmatpush2.bf16.msra.mxu0 %v728
      %1262 = vmatprep.subr.bf16.mxu0 0
      %1263 = vmatpush2.bf16.msra.mxu0 %v727
      %1264 = vmatprep.subr.bf16.mxu0 0
      %1265 = vmatpush2.bf16.msra.mxu0 %v726
      %1266 = vmatprep.subr.bf16.mxu0 0
      %1267 = vmatpush2.bf16.msra.mxu0 %v725
      %1268 = vmatprep.subr.bf16.mxu0 0
      %1269 = vmatpush2.bf16.msra.mxu0 %v724
      %1270 = vmatprep.subr.bf16.mxu0 0
      %1271 = vmatpush2.bf16.msra.mxu0 %v723
      %1272 = vmatprep.subr.bf16.mxu0 0
      %1273 = vmatpush2.bf16.msra.mxu0 %v722
      %1274 = vmatprep.mubr.bf16.mxu0 %v1229
      %1275 = vmatmul.mubr.bf16.gmra.mxu0 %v1228
      %v1276 = vpop.f32.mrf.mxu0
      %v1277 = vadd.f32 0.0, %v1276
      %v1278 = vpop.f32.mrf.mxu0
      %v1279 = vpop.f32.mrf.mxu0
      %v1280 = vadd.f32 0.0, %v1279
      %v1281 = vpop.f32.mrf.mxu0
      %1282 = vdwg.mxu0
      %1283 = vmatprep.subr.bf16.mxu0 0
      %1284 = vmatpush1.bf16.msra.mxu0 %v737
      %1285 = vmatprep.subr.bf16.mxu0 0
      %1286 = vmatpush1.bf16.msra.mxu0 %v736
      %1287 = vmatprep.subr.bf16.mxu0 0
      %1288 = vmatpush1.bf16.msra.mxu0 %v735
      %1289 = vmatprep.subr.bf16.mxu0 0
      %1290 = vmatpush1.bf16.msra.mxu0 %v734
      %1291 = vmatprep.subr.bf16.mxu0 0
      %1292 = vmatpush1.bf16.msra.mxu0 %v733
      %1293 = vmatprep.subr.bf16.mxu0 0
      %1294 = vmatpush1.bf16.msra.mxu0 %v732
      %1295 = vmatprep.subr.bf16.mxu0 0
      %1296 = vmatpush1.bf16.msra.mxu0 %v731
      %1297 = vmatprep.subr.bf16.mxu0 0
      %1298 = vmatpush1.bf16.msra.mxu0 %v730
      %1299 = vmatprep.subr.bf16.mxu0 0
      %1300 = vmatpush2.bf16.msra.mxu0 %v745
      %1301 = vmatprep.subr.bf16.mxu0 0
      %1302 = vmatpush2.bf16.msra.mxu0 %v744
      %1303 = vmatprep.subr.bf16.mxu0 0
      %1304 = vmatpush2.bf16.msra.mxu0 %v743
      %1305 = vmatprep.subr.bf16.mxu0 0
      %1306 = vmatpush2.bf16.msra.mxu0 %v742
      %1307 = vmatprep.subr.bf16.mxu0 0
      %1308 = vmatpush2.bf16.msra.mxu0 %v741
      %1309 = vmatprep.subr.bf16.mxu0 0
      %1310 = vmatpush2.bf16.msra.mxu0 %v740
      %1311 = vmatprep.subr.bf16.mxu0 0
      %1312 = vmatpush2.bf16.msra.mxu0 %v739
      %1313 = vmatprep.subr.bf16.mxu0 0
      %1314 = vmatpush2.bf16.msra.mxu0 %v738
      %1315 = vmatprep.mubr.bf16.mxu0 %v1231
      %1316 = vmatmul.mubr.bf16.gmra.mxu0 %v1230
      %v1317 = vpop.f32.mrf.mxu0
      %v1318 = vadd.f32 %v1277, %v1317
      %v1319 = vpop.f32.mrf.mxu0
      %v1320 = vpop.f32.mrf.mxu0
      %v1321 = vadd.f32 %v1280, %v1320
      %v1322 = vpop.f32.mrf.mxu0
      %1323 = vdwg.mxu0
      %1324 = vmatprep.subr.bf16.mxu0 0
      %1325 = vmatpush1.bf16.msra.mxu0 %v753
      %1326 = vmatprep.subr.bf16.mxu0 0
      %1327 = vmatpush1.bf16.msra.mxu0 %v752
      %1328 = vmatprep.subr.bf16.mxu0 0
      %1329 = vmatpush1.bf16.msra.mxu0 %v751
      %1330 = vmatprep.subr.bf16.mxu0 0
      %1331 = vmatpush1.bf16.msra.mxu0 %v750
      %1332 = vmatprep.subr.bf16.mxu0 0
      %1333 = vmatpush1.bf16.msra.mxu0 %v749
      %1334 = vmatprep.subr.bf16.mxu0 0
      %1335 = vmatpush1.bf16.msra.mxu0 %v748
      %1336 = vmatprep.subr.bf16.mxu0 0
      %1337 = vmatpush1.bf16.msra.mxu0 %v747
      %1338 = vmatprep.subr.bf16.mxu0 0
      %1339 = vmatpush1.bf16.msra.mxu0 %v746
      %1340 = vmatprep.subr.bf16.mxu0 0
      %1341 = vmatpush2.bf16.msra.mxu0 %v761
      %1342 = vmatprep.subr.bf16.mxu0 0
      %1343 = vmatpush2.bf16.msra.mxu0 %v760
      %1344 = vmatprep.subr.bf16.mxu0 0
      %1345 = vmatpush2.bf16.msra.mxu0 %v759
      %1346 = vmatprep.subr.bf16.mxu0 0
      %1347 = vmatpush2.bf16.msra.mxu0 %v758
      %1348 = vmatprep.subr.bf16.mxu0 0
      %1349 = vmatpush2.bf16.msra.mxu0 %v757
      %1350 = vmatprep.subr.bf16.mxu0 0
      %1351 = vmatpush2.bf16.msra.mxu0 %v756
      %1352 = vmatprep.subr.bf16.mxu0 0
      %1353 = vmatpush2.bf16.msra.mxu0 %v755
      %1354 = vmatprep.subr.bf16.mxu0 0
      %1355 = vmatpush2.bf16.msra.mxu0 %v754
      %1356 = vmatprep.mubr.bf16.mxu0 %v1233
      %1357 = vmatmul.mubr.bf16.gmra.mxu0 %v1232
      %v1358 = vpop.f32.mrf.mxu0
      %v1359 = vadd.f32 %v1318, %v1358
      %v1360 = vpop.f32.mrf.mxu0
      %v1361 = vpop.f32.mrf.mxu0
      %v1362 = vadd.f32 %v1321, %v1361
      %v1363 = vpop.f32.mrf.mxu0
      %1364 = vdwg.mxu0
      %1365 = vmatprep.subr.bf16.mxu0 0
      %1366 = vmatpush1.bf16.msra.mxu0 %v769
      %1367 = vmatprep.subr.bf16.mxu0 0
      %1368 = vmatpush1.bf16.msra.mxu0 %v768
      %1369 = vmatprep.subr.bf16.mxu0 0
      %1370 = vmatpush1.bf16.msra.mxu0 %v767
      %1371 = vmatprep.subr.bf16.mxu0 0
      %1372 = vmatpush1.bf16.msra.mxu0 %v766
      %1373 = vmatprep.subr.bf16.mxu0 0
      %1374 = vmatpush1.bf16.msra.mxu0 %v765
      %1375 = vmatprep.subr.bf16.mxu0 0
      %1376 = vmatpush1.bf16.msra.mxu0 %v764
      %1377 = vmatprep.subr.bf16.mxu0 0
      %1378 = vmatpush1.bf16.msra.mxu0 %v763
      %1379 = vmatprep.subr.bf16.mxu0 0
      %1380 = vmatpush1.bf16.msra.mxu0 %v762
      %1381 = vmatprep.subr.bf16.mxu0 0
      %1382 = vmatpush2.bf16.msra.mxu0 0
      %1383 = vmatprep.subr.bf16.mxu0 0
      %1384 = vmatpush2.bf16.msra.mxu0 0
      %1385 = vmatprep.subr.bf16.mxu0 0
      %1386 = vmatpush2.bf16.msra.mxu0 0
      %1387 = vmatprep.subr.bf16.mxu0 0
      %1388 = vmatpush2.bf16.msra.mxu0 0
      %1389 = vmatprep.subr.bf16.mxu0 0
      %1390 = vmatpush2.bf16.msra.mxu0 0
      %1391 = vmatprep.subr.bf16.mxu0 0
      %1392 = vmatpush2.bf16.msra.mxu0 0
      %1393 = vmatprep.subr.bf16.mxu0 0
      %1394 = vmatpush2.bf16.msra.mxu0 0
      %1395 = vmatprep.subr.bf16.mxu0 0
      %1396 = vmatpush2.bf16.msra.mxu0 0
      %1397 = vmatprep.mubr.bf16.mxu0 0
      %1398 = vmatmul.mubr.bf16.gmra.mxu0 %v1234
      %v1399 = vpop.f32.mrf.mxu0
      %v1400 = vadd.f32 %v1359, %v1399
      %v1401 = vpop.f32.mrf.mxu0
      %v1402 = vpop.f32.mrf.mxu0
      %v1403 = vadd.f32 %v1362, %v1402
      %v1404 = vpop.f32.mrf.mxu0
      %1405 = vdwg.mxu0
      %v1406 = vld [vmem:[%s325] sm:$0xff]
      %v1407 = vld [vmem:[%s325 + $0x8] sm:$0xff]
      %v1408 = vld [vmem:[%s325 + $0x10] sm:$0xff]
      %v1409 = vld [vmem:[%s325 + $0x18] sm:$0xf]
      %v1410 = vld [vmem:[%s325 + $0x1c] sm:$0xff]
      %v1411 = vld [vmem:[%s325 + $0x24] sm:$0xff]
      %v1412 = vld [vmem:[%s325 + $0x2c] sm:$0xff]
      %v1413 = vld [vmem:[%s325 + $0x34] sm:$0xf]
      %v1422 = vunpack.c.l.b16 %v1406
      %v1423 = vunpack.c.h.b16 %v1406
      %v1424 = vunpack.c.l.b16 %v1407
      %v1425 = vunpack.c.h.b16 %v1407
      %v1426 = vunpack.c.l.b16 %v1408
      %v1427 = vunpack.c.h.b16 %v1408
      %v1428 = vunpack.c.l.b16 %v1409
      %v1429 = vunpack.c.l.b16 %v1410
      %v1430 = vunpack.c.h.b16 %v1410
      %v1431 = vunpack.c.l.b16 %v1411
      %v1432 = vunpack.c.h.b16 %v1411
      %v1433 = vunpack.c.l.b16 %v1412
      %v1434 = vunpack.c.h.b16 %v1412
      %v1435 = vunpack.c.l.b16 %v1413
      %v1436 = vpack.c.b16 %v1429, %v1422
      %v1437 = vpack.c.b16 %v1430, %v1423
      %v1438 = vpack.c.b16 %v1431, %v1424
      %v1439 = vpack.c.b16 %v1432, %v1425
      %v1440 = vpack.c.b16 %v1433, %v1426
      %v1441 = vpack.c.b16 %v1434, %v1427
      %v1442 = vpack.c.b16 %v1435, %v1428
      %1450 = vmatprep.subr.bf16.mxu0 0
      %1451 = vmatpush1.bf16.msra.mxu0 %v721
      %1452 = vmatprep.subr.bf16.mxu0 0
      %1453 = vmatpush1.bf16.msra.mxu0 %v720
      %1454 = vmatprep.subr.bf16.mxu0 0
      %1455 = vmatpush1.bf16.msra.mxu0 %v719
      %1456 = vmatprep.subr.bf16.mxu0 0
      %1457 = vmatpush1.bf16.msra.mxu0 %v718
      %1458 = vmatprep.subr.bf16.mxu0 0
      %1459 = vmatpush1.bf16.msra.mxu0 %v717
      %1460 = vmatprep.subr.bf16.mxu0 0
      %1461 = vmatpush1.bf16.msra.mxu0 %v716
      %1462 = vmatprep.subr.bf16.mxu0 0
      %1463 = vmatpush1.bf16.msra.mxu0 %v715
      %1464 = vmatprep.subr.bf16.mxu0 0
      %1465 = vmatpush1.bf16.msra.mxu0 %v714
      %1466 = vmatprep.subr.bf16.mxu0 0
      %1467 = vmatpush2.bf16.msra.mxu0 %v729
      %1468 = vmatprep.subr.bf16.mxu0 0
      %1469 = vmatpush2.bf16.msra.mxu0 %v728
      %1470 = vmatprep.subr.bf16.mxu0 0
      %1471 = vmatpush2.bf16.msra.mxu0 %v727
      %1472 = vmatprep.subr.bf16.mxu0 0
      %1473 = vmatpush2.bf16.msra.mxu0 %v726
      %1474 = vmatprep.subr.bf16.mxu0 0
      %1475 = vmatpush2.bf16.msra.mxu0 %v725
      %1476 = vmatprep.subr.bf16.mxu0 0
      %1477 = vmatpush2.bf16.msra.mxu0 %v724
      %1478 = vmatprep.subr.bf16.mxu0 0
      %1479 = vmatpush2.bf16.msra.mxu0 %v723
      %1480 = vmatprep.subr.bf16.mxu0 0
      %1481 = vmatpush2.bf16.msra.mxu0 %v722
      %1482 = vmatprep.mubr.bf16.mxu0 %v1437
      %1483 = vmatmul.mubr.bf16.gmra.mxu0 %v1436
      %v1484 = vpop.f32.mrf.mxu0
      %v1485 = vadd.f32 0.0, %v1484
      %v1486 = vpop.f32.mrf.mxu0
      %v1487 = vpop.f32.mrf.mxu0
      %v1488 = vadd.f32 0.0, %v1487
      %v1489 = vpop.f32.mrf.mxu0
      %1490 = vdwg.mxu0
      %1491 = vmatprep.subr.bf16.mxu0 0
      %1492 = vmatpush1.bf16.msra.mxu0 %v737
      %1493 = vmatprep.subr.bf16.mxu0 0
      %1494 = vmatpush1.bf16.msra.mxu0 %v736
      %1495 = vmatprep.subr.bf16.mxu0 0
      %1496 = vmatpush1.bf16.msra.mxu0 %v735
      %1497 = vmatprep.subr.bf16.mxu0 0
      %1498 = vmatpush1.bf16.msra.mxu0 %v734
      %1499 = vmatprep.subr.bf16.mxu0 0
      %1500 = vmatpush1.bf16.msra.mxu0 %v733
      %1501 = vmatprep.subr.bf16.mxu0 0
      %1502 = vmatpush1.bf16.msra.mxu0 %v732
      %1503 = vmatprep.subr.bf16.mxu0 0
      %1504 = vmatpush1.bf16.msra.mxu0 %v731
      %1505 = vmatprep.subr.bf16.mxu0 0
      %1506 = vmatpush1.bf16.msra.mxu0 %v730
      %1507 = vmatprep.subr.bf16.mxu0 0
      %1508 = vmatpush2.bf16.msra.mxu0 %v745
      %1509 = vmatprep.subr.bf16.mxu0 0
      %1510 = vmatpush2.bf16.msra.mxu0 %v744
      %1511 = vmatprep.subr.bf16.mxu0 0
      %1512 = vmatpush2.bf16.msra.mxu0 %v743
      %1513 = vmatprep.subr.bf16.mxu0 0
      %1514 = vmatpush2.bf16.msra.mxu0 %v742
      %1515 = vmatprep.subr.bf16.mxu0 0
      %1516 = vmatpush2.bf16.msra.mxu0 %v741
      %1517 = vmatprep.subr.bf16.mxu0 0
      %1518 = vmatpush2.bf16.msra.mxu0 %v740
      %1519 = vmatprep.subr.bf16.mxu0 0
      %1520 = vmatpush2.bf16.msra.mxu0 %v739
      %1521 = vmatprep.subr.bf16.mxu0 0
      %1522 = vmatpush2.bf16.msra.mxu0 %v738
      %1523 = vmatprep.mubr.bf16.mxu0 %v1439
      %1524 = vmatmul.mubr.bf16.gmra.mxu0 %v1438
      %v1525 = vpop.f32.mrf.mxu0
      %v1526 = vadd.f32 %v1485, %v1525
      %v1527 = vpop.f32.mrf.mxu0
      %v1528 = vpop.f32.mrf.mxu0
      %v1529 = vadd.f32 %v1488, %v1528
      %v1530 = vpop.f32.mrf.mxu0
      %1531 = vdwg.mxu0
      %1532 = vmatprep.subr.bf16.mxu0 0
      %1533 = vmatpush1.bf16.msra.mxu0 %v753
      %1534 = vmatprep.subr.bf16.mxu0 0
      %1535 = vmatpush1.bf16.msra.mxu0 %v752
      %1536 = vmatprep.subr.bf16.mxu0 0
      %1537 = vmatpush1.bf16.msra.mxu0 %v751
      %1538 = vmatprep.subr.bf16.mxu0 0
      %1539 = vmatpush1.bf16.msra.mxu0 %v750
      %1540 = vmatprep.subr.bf16.mxu0 0
      %1541 = vmatpush1.bf16.msra.mxu0 %v749
      %1542 = vmatprep.subr.bf16.mxu0 0
      %1543 = vmatpush1.bf16.msra.mxu0 %v748
      %1544 = vmatprep.subr.bf16.mxu0 0
      %1545 = vmatpush1.bf16.msra.mxu0 %v747
      %1546 = vmatprep.subr.bf16.mxu0 0
      %1547 = vmatpush1.bf16.msra.mxu0 %v746
      %1548 = vmatprep.subr.bf16.mxu0 0
      %1549 = vmatpush2.bf16.msra.mxu0 %v761
      %1550 = vmatprep.subr.bf16.mxu0 0
      %1551 = vmatpush2.bf16.msra.mxu0 %v760
      %1552 = vmatprep.subr.bf16.mxu0 0
      %1553 = vmatpush2.bf16.msra.mxu0 %v759
      %1554 = vmatprep.subr.bf16.mxu0 0
      %1555 = vmatpush2.bf16.msra.mxu0 %v758
      %1556 = vmatprep.subr.bf16.mxu0 0
      %1557 = vmatpush2.bf16.msra.mxu0 %v757
      %1558 = vmatprep.subr.bf16.mxu0 0
      %1559 = vmatpush2.bf16.msra.mxu0 %v756
      %1560 = vmatprep.subr.bf16.mxu0 0
      %1561 = vmatpush2.bf16.msra.mxu0 %v755
      %1562 = vmatprep.subr.bf16.mxu0 0
      %1563 = vmatpush2.bf16.msra.mxu0 %v754
      %1564 = vmatprep.mubr.bf16.mxu0 %v1441
      %1565 = vmatmul.mubr.bf16.gmra.mxu0 %v1440
      %v1566 = vpop.f32.mrf.mxu0
      %v1567 = vadd.f32 %v1526, %v1566
      %v1568 = vpop.f32.mrf.mxu0
      %v1569 = vpop.f32.mrf.mxu0
      %v1570 = vadd.f32 %v1529, %v1569
      %v1571 = vpop.f32.mrf.mxu0
      %1572 = vdwg.mxu0
      %1573 = vmatprep.subr.bf16.mxu0 0
      %1574 = vmatpush1.bf16.msra.mxu0 %v769
      %1575 = vmatprep.subr.bf16.mxu0 0
      %1576 = vmatpush1.bf16.msra.mxu0 %v768
      %1577 = vmatprep.subr.bf16.mxu0 0
      %1578 = vmatpush1.bf16.msra.mxu0 %v767
      %1579 = vmatprep.subr.bf16.mxu0 0
      %1580 = vmatpush1.bf16.msra.mxu0 %v766
      %1581 = vmatprep.subr.bf16.mxu0 0
      %1582 = vmatpush1.bf16.msra.mxu0 %v765
      %1583 = vmatprep.subr.bf16.mxu0 0
      %1584 = vmatpush1.bf16.msra.mxu0 %v764
      %1585 = vmatprep.subr.bf16.mxu0 0
      %1586 = vmatpush1.bf16.msra.mxu0 %v763
      %1587 = vmatprep.subr.bf16.mxu0 0
      %1588 = vmatpush1.bf16.msra.mxu0 %v762
      %1589 = vmatprep.subr.bf16.mxu0 0
      %1590 = vmatpush2.bf16.msra.mxu0 0
      %1591 = vmatprep.subr.bf16.mxu0 0
      %1592 = vmatpush2.bf16.msra.mxu0 0
      %1593 = vmatprep.subr.bf16.mxu0 0
      %1594 = vmatpush2.bf16.msra.mxu0 0
      %1595 = vmatprep.subr.bf16.mxu0 0
      %1596 = vmatpush2.bf16.msra.mxu0 0
      %1597 = vmatprep.subr.bf16.mxu0 0
      %1598 = vmatpush2.bf16.msra.mxu0 0
      %1599 = vmatprep.subr.bf16.mxu0 0
      %1600 = vmatpush2.bf16.msra.mxu0 0
      %1601 = vmatprep.subr.bf16.mxu0 0
      %1602 = vmatpush2.bf16.msra.mxu0 0
      %1603 = vmatprep.subr.bf16.mxu0 0
      %1604 = vmatpush2.bf16.msra.mxu0 0
      %1605 = vmatprep.mubr.bf16.mxu0 0
      %1606 = vmatmul.mubr.bf16.gmra.mxu0 %v1442
      %v1607 = vpop.f32.mrf.mxu0
      %v1608 = vadd.f32 %v1567, %v1607
      %v1609 = vpop.f32.mrf.mxu0
      %v1610 = vpop.f32.mrf.mxu0
      %v1611 = vadd.f32 %v1570, %v1610
      %v1612 = vpop.f32.mrf.mxu0
      %1613 = vdwg.mxu0
      %v1614 = vmax.f32 %v984, %v1192
      %v1615 = vmax.f32 %v987, %v1195
      %v1616 = vmax.f32 %v1400, %v1608
      %v1617 = vmax.f32 %v1403, %v1611
      %v1618 = vmax.f32 %v1614, %v1616
      %v1619 = vmax.f32 %v1615, %v1617
      %v1620 = vld [vmem:[%s5] sm:$0x1]
      %v1622 = vlaneseq
      %v1623 = vshrl.u32 %v1622, 7
      %v1624 = vsub.s32 0, %v1623
      %v1625 = vrot.slane %v1620, %v1624
      %v1627 = vadd.f32 %v1618, %v1625
      %v1628 = vadd.f32 %v1619, %v1625
      %1629 = vst [vmem:[%s331] sm:$0xff] %v1627
      %1630 = vst [vmem:[%s331 + $0x8] sm:$0xff] %v1628
      %s1631 = smul.u32 2, %s17
      %p1632 = scmp.lt.s32.totalorder %s1631, 3
      %s1633 = scalar_select %p1632, %s1631, 3
      %s1634 = smul.addr %s1633, 8
      %s1635 = scalar_lea.vmem %s6, %s1634
      // Predicated region
      $region45: #{cifar10_forward.6} parent=43 // pred_check
        %p1636 = pneg %p181
      $region46: #{cifar10_forward.6} parent=43 // pred_check_branch
        %1638 = sbr.rel (%p1636) target = $region48
      $region47: #{cifar10_forward.6} parent=43 // pred_region
        %s1639 = smul.u32 2, %s17
      $region48: #{cifar10_forward.6} parent=43 // pred_fallthru
        _
    $region44: #{cifar10_forward.6} parent=5 // pred_fallthru
      _
    %p1640 = scmp.le.s32.totalorder 2, %s12
    // Predicated region
    $region49: #{cifar10_forward.6} parent=5 // pred_check
      %p1641 = pneg %p1640
    $region50: #{cifar10_forward.6} parent=5 // pred_check_branch
      %1643 = sbr.rel (%p1641) target = $region52
    $region51: #{cifar10_forward.6} parent=5 // pred_region
      %s1644 = ssub.s32 %s12, 2
      // Predicated region
      $region53: #{cifar10_forward.6} parent=51 // pred_check
        %p1645 = pneg %p187
      $region54: #{cifar10_forward.6} parent=51 // pred_check_branch
        %1647 = sbr.rel (%p1645) target = $region56
      $region55: #{cifar10_forward.6} parent=51 // pred_region
        %s1648 = smul.u32 2, %s18
        %p1649 = scmp.lt.s32.totalorder %s1648, 3
        %s1650 = scalar_select %p1649, %s1648, 3
        %s1651 = smul.addr %s1650, 8
        %s1652 = scalar_lea.vmem %s6, %s1651
      $region56: #{cifar10_forward.6} parent=51 // pred_fallthru
        _
    $region52: #{cifar10_forward.6} parent=5 // pred_fallthru
      _
  $region6: #{cifar10_forward.6} parent=0 // loop_footer
    %s16 = sadd.s32 1, %s12
  $region7: #{cifar10_forward.6} parent=0 // loop_footer_branch
    %11 = sbr.rel target = $region3
  $region8: #{cifar10_forward.6} parent=0 // loop_exit
    _

// kernel: cifar10_forward.7
$region0: #{cifar10_forward.7}
  #allocation0 [shape = 'u32[]', space=smem, size = 0x4, offset = 0x4, fixed_abs, tag = 'smem constant byte address 0x4 - core index']
  #allocation1 [shape = 'u32[144,128]{1,0:T(1,128)}', space=vmem, size = 0x12000, scoped, tag = 'internal scratch']
  %s0 = inlined_call_operand.vmem [shape: bf16[2,1024], index: 0, kind: input, shape index: {}]
  %s1 = inlined_call_operand.vmem [shape: bf16[1024,128], index: 1, kind: input, shape index: {}]
  %s2 = inlined_call_operand.vmem [shape: f32[1,128], index: 2, kind: input, shape index: {}]
  %s3 = inlined_call_operand.vmem [shape: bf16[128,128], index: 3, kind: input, shape index: {}]
  %s4 = inlined_call_operand.vmem [shape: f32[1,128], index: 4, kind: input, shape index: {}]
  %s5 = inlined_call_operand.hbm [shape: f32[2,128], index: 5, kind: output, shape index: {}]
  %s6 = sld [smem:[#allocation0]]
  $region30: #{cifar10_forward.7} parent=0
    _
  %s8 = ssub.s32 1, %s6
  %s9 = scalar_select 0, %s8, %s6
  $region1: #{cifar10_forward.7} parent=0
    #allocation2 [shape = 'u8[1024]{0}', space=vmem, size = 0x400, scoped, tag = 'output window, operand 0, single buffered']
    #allocation3 [shape = 's32[1]{0}', space=sflag, size = 0x4, scoped, tag = 'scoped memory for cifar10_forward.7']
    %10 = vsyncpa [#allocation3], 0
    // Predicated region
    $region2: #{cifar10_forward.7} parent=1 // pred_check
      _
    $region3: #{cifar10_forward.7} parent=1 // pred_check_branch
      %12 = sbr.rel (0) target = $region5
    $region4: #{cifar10_forward.7} parent=1 // pred_region
      _
    $region5: #{cifar10_forward.7} parent=1 // pred_fallthru
      _
    // Predicated region
    $region6: #{cifar10_forward.7} parent=1 // pred_check
      _
    $region7: #{cifar10_forward.7} parent=1 // pred_check_branch
      %14 = sbr.rel (0) target = $region9
    $region8: #{cifar10_forward.7} parent=1 // pred_region
      _
    $region9: #{cifar10_forward.7} parent=1 // pred_fallthru
      _
    // Predicated region
    $region10: #{cifar10_forward.7} parent=1 // pred_check
      _
    $region11: #{cifar10_forward.7} parent=1 // pred_check_branch
      %16 = sbr.rel (0) target = $region13
    $region12: #{cifar10_forward.7} parent=1 // pred_region
      _
    $region13: #{cifar10_forward.7} parent=1 // pred_fallthru
      _
    // Predicated region
    $region14: #{cifar10_forward.7} parent=1 // pred_check
      _
    $region15: #{cifar10_forward.7} parent=1 // pred_check_branch
      %18 = sbr.rel (0) target = $region17
    $region16: #{cifar10_forward.7} parent=1 // pred_region
      _
    $region17: #{cifar10_forward.7} parent=1 // pred_fallthru
      _
    // Predicated region
    $region18: #{cifar10_forward.7} parent=1 // pred_check
      _
    $region19: #{cifar10_forward.7} parent=1 // pred_check_branch
      %20 = sbr.rel (0) target = $region21
    $region20: #{cifar10_forward.7} parent=1 // pred_region
      _
    $region21: #{cifar10_forward.7} parent=1 // pred_fallthru
      _
    %v22 = vld [vmem:[%s0] sm:$0xff]
    %v23 = vld [vmem:[%s1] sm:$0xf]
    %v24 = vld [vmem:[%s1 + $0x4] sm:$0xf]
    %v25 = vld [vmem:[%s1 + $0x8] sm:$0xf]
    %v26 = vld [vmem:[%s1 + $0xc] sm:$0xf]
    %v27 = vld [vmem:[%s1 + $0x10] sm:$0xf]
    %v28 = vld [vmem:[%s1 + $0x14] sm:$0xf]
    %v29 = vld [vmem:[%s1 + $0x18] sm:$0xf]
    %v30 = vld [vmem:[%s1 + $0x1c] sm:$0xf]
    %v31 = vld [vmem:[%s1 + $0x20] sm:$0xf]
    %v32 = vld [vmem:[%s1 + $0x24] sm:$0xf]
    %v33 = vld [vmem:[%s1 + $0x28] sm:$0xf]
    %v34 = vld [vmem:[%s1 + $0x2c] sm:$0xf]
    %v35 = vld [vmem:[%s1 + $0x30] sm:$0xf]
    %v36 = vld [vmem:[%s1 + $0x34] sm:$0xf]
    %v37 = vld [vmem:[%s1 + $0x38] sm:$0xf]
    %v38 = vld [vmem:[%s1 + $0x3c] sm:$0xf]
    %v39 = vld [vmem:[%s1 + $0x40] sm:$0xf]
    %v40 = vld [vmem:[%s1 + $0x44] sm:$0xf]
    %v41 = vld [vmem:[%s1 + $0x48] sm:$0xf]
    %v42 = vld [vmem:[%s1 + $0x4c] sm:$0xf]
    %v43 = vld [vmem:[%s1 + $0x50] sm:$0xf]
    %v44 = vld [vmem:[%s1 + $0x54] sm:$0xf]
    %v45 = vld [vmem:[%s1 + $0x58] sm:$0xf]
    %v46 = vld [vmem:[%s1 + $0x5c] sm:$0xf]
    %v47 = vld [vmem:[%s1 + $0x60] sm:$0xf]
    %v48 = vld [vmem:[%s1 + $0x64] sm:$0xf]
    %v49 = vld [vmem:[%s1 + $0x68] sm:$0xf]
    %v50 = vld [vmem:[%s1 + $0x6c] sm:$0xf]
    %v51 = vld [vmem:[%s1 + $0x70] sm:$0xf]
    %v52 = vld [vmem:[%s1 + $0x74] sm:$0xf]
    %v53 = vld [vmem:[%s1 + $0x78] sm:$0xf]
    %v54 = vld [vmem:[%s1 + $0x7c] sm:$0xf]
    %v55 = vld [vmem:[%s1 + $0x80] sm:$0xf]
    %v56 = vld [vmem:[%s1 + $0x84] sm:$0xf]
    %v57 = vld [vmem:[%s1 + $0x88] sm:$0xf]
    %v58 = vld [vmem:[%s1 + $0x8c] sm:$0xf]
    %v59 = vld [vmem:[%s1 + $0x90] sm:$0xf]
    %v60 = vld [vmem:[%s1 + $0x94] sm:$0xf]
    %v61 = vld [vmem:[%s1 + $0x98] sm:$0xf]
    %v62 = vld [vmem:[%s1 + $0x9c] sm:$0xf]
    %v63 = vld [vmem:[%s1 + $0xa0] sm:$0xf]
    %v64 = vld [vmem:[%s1 + $0xa4] sm:$0xf]
    %v65 = vld [vmem:[%s1 + $0xa8] sm:$0xf]
    %v66 = vld [vmem:[%s1 + $0xac] sm:$0xf]
    %v67 = vld [vmem:[%s1 + $0xb0] sm:$0xf]
    %v68 = vld [vmem:[%s1 + $0xb4] sm:$0xf]
    %v69 = vld [vmem:[%s1 + $0xb8] sm:$0xf]
    %v70 = vld [vmem:[%s1 + $0xbc] sm:$0xf]
    %v71 = vld [vmem:[%s1 + $0xc0] sm:$0xf]
    %v72 = vld [vmem:[%s1 + $0xc4] sm:$0xf]
    %v73 = vld [vmem:[%s1 + $0xc8] sm:$0xf]
    %v74 = vld [vmem:[%s1 + $0xcc] sm:$0xf]
    %v75 = vld [vmem:[%s1 + $0xd0] sm:$0xf]
    %v76 = vld [vmem:[%s1 + $0xd4] sm:$0xf]
    %v77 = vld [vmem:[%s1 + $0xd8] sm:$0xf]
    %v78 = vld [vmem:[%s1 + $0xdc] sm:$0xf]
    %v79 = vld [vmem:[%s1 + $0xe0] sm:$0xf]
    %v80 = vld [vmem:[%s1 + $0xe4] sm:$0xf]
    %v81 = vld [vmem:[%s1 + $0xe8] sm:$0xf]
    %v82 = vld [vmem:[%s1 + $0xec] sm:$0xf]
    %v83 = vld [vmem:[%s1 + $0xf0] sm:$0xf]
    %v84 = vld [vmem:[%s1 + $0xf4] sm:$0xf]
    %v85 = vld [vmem:[%s1 + $0xf8] sm:$0xf]
    %v86 = vld [vmem:[%s1 + $0xfc] sm:$0xf]
    %v87 = vld [vmem:[%s1 + $0x100] sm:$0xf]
    %v88 = vld [vmem:[%s1 + $0x104] sm:$0xf]
    %v89 = vld [vmem:[%s1 + $0x108] sm:$0xf]
    %v90 = vld [vmem:[%s1 + $0x10c] sm:$0xf]
    %v91 = vld [vmem:[%s1 + $0x110] sm:$0xf]
    %v92 = vld [vmem:[%s1 + $0x114] sm:$0xf]
    %v93 = vld [vmem:[%s1 + $0x118] sm:$0xf]
    %v94 = vld [vmem:[%s1 + $0x11c] sm:$0xf]
    %v95 = vld [vmem:[%s1 + $0x120] sm:$0xf]
    %v96 = vld [vmem:[%s1 + $0x124] sm:$0xf]
    %v97 = vld [vmem:[%s1 + $0x128] sm:$0xf]
    %v98 = vld [vmem:[%s1 + $0x12c] sm:$0xf]
    %v99 = vld [vmem:[%s1 + $0x130] sm:$0xf]
    %v100 = vld [vmem:[%s1 + $0x134] sm:$0xf]
    %v101 = vld [vmem:[%s1 + $0x138] sm:$0xf]
    %v102 = vld [vmem:[%s1 + $0x13c] sm:$0xf]
    %v103 = vld [vmem:[%s1 + $0x140] sm:$0xf]
    %v104 = vld [vmem:[%s1 + $0x144] sm:$0xf]
    %v105 = vld [vmem:[%s1 + $0x148] sm:$0xf]
    %v106 = vld [vmem:[%s1 + $0x14c] sm:$0xf]
    %v107 = vld [vmem:[%s1 + $0x150] sm:$0xf]
    %v108 = vld [vmem:[%s1 + $0x154] sm:$0xf]
    %v109 = vld [vmem:[%s1 + $0x158] sm:$0xf]
    %v110 = vld [vmem:[%s1 + $0x15c] sm:$0xf]
    %v111 = vld [vmem:[%s1 + $0x160] sm:$0xf]
    %v112 = vld [vmem:[%s1 + $0x164] sm:$0xf]
    %v113 = vld [vmem:[%s1 + $0x168] sm:$0xf]
    %v114 = vld [vmem:[%s1 + $0x16c] sm:$0xf]
    %v115 = vld [vmem:[%s1 + $0x170] sm:$0xf]
    %v116 = vld [vmem:[%s1 + $0x174] sm:$0xf]
    %v117 = vld [vmem:[%s1 + $0x178] sm:$0xf]
    %v118 = vld [vmem:[%s1 + $0x17c] sm:$0xf]
    %v119 = vld [vmem:[%s1 + $0x180] sm:$0xf]
    %v120 = vld [vmem:[%s1 + $0x184] sm:$0xf]
    %v121 = vld [vmem:[%s1 + $0x188] sm:$0xf]
    %v122 = vld [vmem:[%s1 + $0x18c] sm:$0xf]
    %v123 = vld [vmem:[%s1 + $0x190] sm:$0xf]
    %v124 = vld [vmem:[%s1 + $0x194] sm:$0xf]
    %v125 = vld [vmem:[%s1 + $0x198] sm:$0xf]
    %v126 = vld [vmem:[%s1 + $0x19c] sm:$0xf]
    %v127 = vld [vmem:[%s1 + $0x1a0] sm:$0xf]
    %v128 = vld [vmem:[%s1 + $0x1a4] sm:$0xf]
    %v129 = vld [vmem:[%s1 + $0x1a8] sm:$0xf]
    %v130 = vld [vmem:[%s1 + $0x1ac] sm:$0xf]
    %v131 = vld [vmem:[%s1 + $0x1b0] sm:$0xf]
    %v132 = vld [vmem:[%s1 + $0x1b4] sm:$0xf]
    %v133 = vld [vmem:[%s1 + $0x1b8] sm:$0xf]
    %v134 = vld [vmem:[%s1 + $0x1bc] sm:$0xf]
    %v135 = vld [vmem:[%s1 + $0x1c0] sm:$0xf]
    %v136 = vld [vmem:[%s1 + $0x1c4] sm:$0xf]
    %v137 = vld [vmem:[%s1 + $0x1c8] sm:$0xf]
    %v138 = vld [vmem:[%s1 + $0x1cc] sm:$0xf]
    %v139 = vld [vmem:[%s1 + $0x1d0] sm:$0xf]
    %v140 = vld [vmem:[%s1 + $0x1d4] sm:$0xf]
    %v141 = vld [vmem:[%s1 + $0x1d8] sm:$0xf]
    %v142 = vld [vmem:[%s1 + $0x1dc] sm:$0xf]
    %v143 = vld [vmem:[%s1 + $0x1e0] sm:$0xf]
    %v144 = vld [vmem:[%s1 + $0x1e4] sm:$0xf]
    %v145 = vld [vmem:[%s1 + $0x1e8] sm:$0xf]
    %v146 = vld [vmem:[%s1 + $0x1ec] sm:$0xf]
    %v147 = vld [vmem:[%s1 + $0x1f0] sm:$0xf]
    %v148 = vld [vmem:[%s1 + $0x1f4] sm:$0xf]
    %v149 = vld [vmem:[%s1 + $0x1f8] sm:$0xf]
    %v150 = vld [vmem:[%s1 + $0x1fc] sm:$0xf]
    %v151 = vld [vmem:[%s2] sm:$0x1]
    %v153 = vlaneseq
    %v154 = vshrl.u32 %v153, 7
    %v155 = vsub.s32 0, %v154
    %v156 = vrot.slane %v151, %v155
    %v159 = vcombine.high %v22, %v22
    %v161 = vunpack.c.l.s4 1966171168
    %v162 = vunpack.c.0.s8 %v161
    %v163 = vlaneseq
    %v164 = vshrl.u32 %v163, 7
    %v165 = vsub.s32 %v162, %v164
    %v166 = vrot.slane %v22, %v165
    %v168 = vunpack.c.l.s4 1966171168
    %v169 = vunpack.c.0.s8 %v168
    %v170 = vlaneseq
    %v171 = vshrl.u32 %v170, 7
    %v172 = vsub.s32 %v169, %v171
    %v173 = vrot.slane %v159, %v172
    %v174 = vcombine.high %v166, %v166
    %v175 = vcombine.high %v173, %v173
    %v177 = vunpack.c.l.s4 1966171168
    %v178 = vunpack.c.0.s8 %v177
    %v179 = vlaneseq
    %v180 = vshrl.u32 %v179, 7
    %v181 = vsub.s32 %v178, %v180
    %v182 = vrot.slane %v166, %v181
    %v184 = vunpack.c.l.s4 1966171168
    %v185 = vunpack.c.0.s8 %v184
    %v186 = vlaneseq
    %v187 = vshrl.u32 %v186, 7
    %v188 = vsub.s32 %v185, %v187
    %v189 = vrot.slane %v173, %v188
    %v191 = vunpack.c.l.s4 1966171168
    %v192 = vunpack.c.0.s8 %v191
    %v193 = vlaneseq
    %v194 = vshrl.u32 %v193, 7
    %v195 = vsub.s32 %v192, %v194
    %v196 = vrot.slane %v174, %v195
    %v198 = vunpack.c.l.s4 1966171168
    %v199 = vunpack.c.0.s8 %v198
    %v200 = vlaneseq
    %v201 = vshrl.u32 %v200, 7
    %v202 = vsub.s32 %v199, %v201
    %v203 = vrot.slane %v175, %v202
    %v204 = vcombine.high %v182, %v182
    %v205 = vcombine.high %v189, %v189
    %v206 = vcombine.high %v196, %v196
    %v207 = vcombine.high %v203, %v203
    %v344 = vunpack.c.l.b16 %v23
    %v345 = vunpack.c.l.b16 %v24
    %v346 = vunpack.c.l.b16 %v25
    %v347 = vunpack.c.l.b16 %v26
    %v348 = vunpack.c.l.b16 %v27
    %v349 = vunpack.c.l.b16 %v28
    %v350 = vunpack.c.l.b16 %v29
    %v351 = vunpack.c.l.b16 %v30
    %v352 = vunpack.c.l.b16 %v31
    %v353 = vunpack.c.l.b16 %v32
    %v354 = vunpack.c.l.b16 %v33
    %v355 = vunpack.c.l.b16 %v34
    %v356 = vunpack.c.l.b16 %v35
    %v357 = vunpack.c.l.b16 %v36
    %v358 = vunpack.c.l.b16 %v37
    %v359 = vunpack.c.l.b16 %v38
    %v360 = vunpack.c.l.b16 %v39
    %v361 = vunpack.c.l.b16 %v40
    %v362 = vunpack.c.l.b16 %v41
    %v363 = vunpack.c.l.b16 %v42
    %v364 = vunpack.c.l.b16 %v43
    %v365 = vunpack.c.l.b16 %v44
    %v366 = vunpack.c.l.b16 %v45
    %v367 = vunpack.c.l.b16 %v46
    %v368 = vunpack.c.l.b16 %v47
    %v369 = vunpack.c.l.b16 %v48
    %v370 = vunpack.c.l.b16 %v49
    %v371 = vunpack.c.l.b16 %v50
    %v372 = vunpack.c.l.b16 %v51
    %v373 = vunpack.c.l.b16 %v52
    %v374 = vunpack.c.l.b16 %v53
    %v375 = vunpack.c.l.b16 %v54
    %v376 = vunpack.c.l.b16 %v55
    %v377 = vunpack.c.l.b16 %v56
    %v378 = vunpack.c.l.b16 %v57
    %v379 = vunpack.c.l.b16 %v58
    %v380 = vunpack.c.l.b16 %v59
    %v381 = vunpack.c.l.b16 %v60
    %v382 = vunpack.c.l.b16 %v61
    %v383 = vunpack.c.l.b16 %v62
    %v384 = vunpack.c.l.b16 %v63
    %v385 = vunpack.c.l.b16 %v64
    %v386 = vunpack.c.l.b16 %v65
    %v387 = vunpack.c.l.b16 %v66
    %v388 = vunpack.c.l.b16 %v67
    %v389 = vunpack.c.l.b16 %v68
    %v390 = vunpack.c.l.b16 %v69
    %v391 = vunpack.c.l.b16 %v70
    %v392 = vunpack.c.l.b16 %v71
    %v393 = vunpack.c.l.b16 %v72
    %v394 = vunpack.c.l.b16 %v73
    %v395 = vunpack.c.l.b16 %v74
    %v396 = vunpack.c.l.b16 %v75
    %v397 = vunpack.c.l.b16 %v76
    %v398 = vunpack.c.l.b16 %v77
    %v399 = vunpack.c.l.b16 %v78
    %v400 = vunpack.c.l.b16 %v79
    %v401 = vunpack.c.l.b16 %v80
    %v402 = vunpack.c.l.b16 %v81
    %v403 = vunpack.c.l.b16 %v82
    %v404 = vunpack.c.l.b16 %v83
    %v405 = vunpack.c.l.b16 %v84
    %v406 = vunpack.c.l.b16 %v85
    %v407 = vunpack.c.l.b16 %v86
    %v408 = vunpack.c.l.b16 %v87
    %v409 = vunpack.c.l.b16 %v88
    %v410 = vunpack.c.l.b16 %v89
    %v411 = vunpack.c.l.b16 %v90
    %v412 = vunpack.c.l.b16 %v91
    %v413 = vunpack.c.l.b16 %v92
    %v414 = vunpack.c.l.b16 %v93
    %v415 = vunpack.c.l.b16 %v94
    %v416 = vunpack.c.l.b16 %v95
    %v417 = vunpack.c.l.b16 %v96
    %v418 = vunpack.c.l.b16 %v97
    %v419 = vunpack.c.l.b16 %v98
    %v420 = vunpack.c.l.b16 %v99
    %v421 = vunpack.c.l.b16 %v100
    %v422 = vunpack.c.l.b16 %v101
    %v423 = vunpack.c.l.b16 %v102
    %v424 = vunpack.c.l.b16 %v103
    %v425 = vunpack.c.l.b16 %v104
    %v426 = vunpack.c.l.b16 %v105
    %v427 = vunpack.c.l.b16 %v106
    %v428 = vunpack.c.l.b16 %v107
    %v429 = vunpack.c.l.b16 %v108
    %v430 = vunpack.c.l.b16 %v109
    %v431 = vunpack.c.l.b16 %v110
    %v432 = vunpack.c.l.b16 %v111
    %v433 = vunpack.c.l.b16 %v112
    %v434 = vunpack.c.l.b16 %v113
    %v435 = vunpack.c.l.b16 %v114
    %v436 = vunpack.c.l.b16 %v115
    %v437 = vunpack.c.l.b16 %v116
    %v438 = vunpack.c.l.b16 %v117
    %v439 = vunpack.c.l.b16 %v118
    %v440 = vunpack.c.l.b16 %v119
    %v441 = vunpack.c.l.b16 %v120
    %v442 = vunpack.c.l.b16 %v121
    %v443 = vunpack.c.l.b16 %v122
    %v444 = vunpack.c.l.b16 %v123
    %v445 = vunpack.c.l.b16 %v124
    %v446 = vunpack.c.l.b16 %v125
    %v447 = vunpack.c.l.b16 %v126
    %v448 = vunpack.c.l.b16 %v127
    %v449 = vunpack.c.l.b16 %v128
    %v450 = vunpack.c.l.b16 %v129
    %v451 = vunpack.c.l.b16 %v130
    %v452 = vunpack.c.l.b16 %v131
    %v453 = vunpack.c.l.b16 %v132
    %v454 = vunpack.c.l.b16 %v133
    %v455 = vunpack.c.l.b16 %v134
    %v456 = vunpack.c.l.b16 %v135
    %v457 = vunpack.c.l.b16 %v136
    %v458 = vunpack.c.l.b16 %v137
    %v459 = vunpack.c.l.b16 %v138
    %v460 = vunpack.c.l.b16 %v139
    %v461 = vunpack.c.l.b16 %v140
    %v462 = vunpack.c.l.b16 %v141
    %v463 = vunpack.c.l.b16 %v142
    %v464 = vunpack.c.l.b16 %v143
    %v465 = vunpack.c.l.b16 %v144
    %v466 = vunpack.c.l.b16 %v145
    %v467 = vunpack.c.l.b16 %v146
    %v468 = vunpack.c.l.b16 %v147
    %v469 = vunpack.c.l.b16 %v148
    %v470 = vunpack.c.l.b16 %v149
    %v471 = vunpack.c.l.b16 %v150
    %v472 = vpack.c.b16 %v345, %v344
    %v473 = vpack.c.b16 %v347, %v346
    %v474 = vpack.c.b16 %v349, %v348
    %v475 = vpack.c.b16 %v351, %v350
    %v476 = vpack.c.b16 %v353, %v352
    %v477 = vpack.c.b16 %v355, %v354
    %v478 = vpack.c.b16 %v357, %v356
    %v479 = vpack.c.b16 %v359, %v358
    %v480 = vpack.c.b16 %v361, %v360
    %v481 = vpack.c.b16 %v363, %v362
    %v482 = vpack.c.b16 %v365, %v364
    %v483 = vpack.c.b16 %v367, %v366
    %v484 = vpack.c.b16 %v369, %v368
    %v485 = vpack.c.b16 %v371, %v370
    %v486 = vpack.c.b16 %v373, %v372
    %v487 = vpack.c.b16 %v375, %v374
    %v488 = vpack.c.b16 %v377, %v376
    %v489 = vpack.c.b16 %v379, %v378
    %v490 = vpack.c.b16 %v381, %v380
    %v491 = vpack.c.b16 %v383, %v382
    %v492 = vpack.c.b16 %v385, %v384
    %v493 = vpack.c.b16 %v387, %v386
    %v494 = vpack.c.b16 %v389, %v388
    %v495 = vpack.c.b16 %v391, %v390
    %v496 = vpack.c.b16 %v393, %v392
    %v497 = vpack.c.b16 %v395, %v394
    %v498 = vpack.c.b16 %v397, %v396
    %v499 = vpack.c.b16 %v399, %v398
    %v500 = vpack.c.b16 %v401, %v400
    %v501 = vpack.c.b16 %v403, %v402
    %v502 = vpack.c.b16 %v405, %v404
    %v503 = vpack.c.b16 %v407, %v406
    %v504 = vpack.c.b16 %v409, %v408
    %v505 = vpack.c.b16 %v411, %v410
    %v506 = vpack.c.b16 %v413, %v412
    %v507 = vpack.c.b16 %v415, %v414
    %v508 = vpack.c.b16 %v417, %v416
    %v509 = vpack.c.b16 %v419, %v418
    %v510 = vpack.c.b16 %v421, %v420
    %v511 = vpack.c.b16 %v423, %v422
    %v512 = vpack.c.b16 %v425, %v424
    %v513 = vpack.c.b16 %v427, %v426
    %v514 = vpack.c.b16 %v429, %v428
    %v515 = vpack.c.b16 %v431, %v430
    %v516 = vpack.c.b16 %v433, %v432
    %v517 = vpack.c.b16 %v435, %v434
    %v518 = vpack.c.b16 %v437, %v436
    %v519 = vpack.c.b16 %v439, %v438
    %v520 = vpack.c.b16 %v441, %v440
    %v521 = vpack.c.b16 %v443, %v442
    %v522 = vpack.c.b16 %v445, %v444
    %v523 = vpack.c.b16 %v447, %v446
    %v524 = vpack.c.b16 %v449, %v448
    %v525 = vpack.c.b16 %v451, %v450
    %v526 = vpack.c.b16 %v453, %v452
    %v527 = vpack.c.b16 %v455, %v454
    %v528 = vpack.c.b16 %v457, %v456
    %v529 = vpack.c.b16 %v459, %v458
    %v530 = vpack.c.b16 %v461, %v460
    %v531 = vpack.c.b16 %v463, %v462
    %v532 = vpack.c.b16 %v465, %v464
    %v533 = vpack.c.b16 %v467, %v466
    %v534 = vpack.c.b16 %v469, %v468
    %v535 = vpack.c.b16 %v471, %v470
    %600 = vmatprep.subr.bf16.mxu0 0
    %601 = vmatpush1.bf16.msra.mxu0 %v479
    %602 = vmatprep.subr.bf16.mxu0 0
    %603 = vmatpush1.bf16.msra.mxu0 %v478
    %604 = vmatprep.subr.bf16.mxu0 0
    %605 = vmatpush1.bf16.msra.mxu0 %v477
    %606 = vmatprep.subr.bf16.mxu0 0
    %607 = vmatpush1.bf16.msra.mxu0 %v476
    %608 = vmatprep.subr.bf16.mxu0 0
    %609 = vmatpush1.bf16.msra.mxu0 %v475
    %610 = vmatprep.subr.bf16.mxu0 0
    %611 = vmatpush1.bf16.msra.mxu0 %v474
    %612 = vmatprep.subr.bf16.mxu0 0
    %613 = vmatpush1.bf16.msra.mxu0 %v473
    %614 = vmatprep.subr.bf16.mxu0 0
    %615 = vmatpush1.bf16.msra.mxu0 %v472
    %616 = vmatprep.subr.bf16.mxu0 0
    %617 = vmatpush2.bf16.msra.mxu0 %v487
    %618 = vmatprep.subr.bf16.mxu0 0
    %619 = vmatpush2.bf16.msra.mxu0 %v486
    %620 = vmatprep.subr.bf16.mxu0 0
    %621 = vmatpush2.bf16.msra.mxu0 %v485
    %622 = vmatprep.subr.bf16.mxu0 0
    %623 = vmatpush2.bf16.msra.mxu0 %v484
    %624 = vmatprep.subr.bf16.mxu0 0
    %625 = vmatpush2.bf16.msra.mxu0 %v483
    %626 = vmatprep.subr.bf16.mxu0 0
    %627 = vmatpush2.bf16.msra.mxu0 %v482
    %628 = vmatprep.subr.bf16.mxu0 0
    %629 = vmatpush2.bf16.msra.mxu0 %v481
    %630 = vmatprep.subr.bf16.mxu0 0
    %631 = vmatpush2.bf16.msra.mxu0 %v480
    %632 = vmatprep.mubr.bf16.mxu0 %v196
    %633 = vmatmul.mubr.bf16.gmra.mxu0 %v182
    %v634 = vpop.f32.mrf.mxu0
    %v635 = vadd.f32 %v156, %v634
    %v636 = vpop.f32.mrf.mxu0
    %v637 = vpop.f32.mrf.mxu0
    %v638 = vpop.f32.mrf.mxu0
    %639 = vdwg.mxu0
    %640 = vmatprep.subr.bf16.mxu0 0
    %641 = vmatpush1.bf16.msra.mxu0 %v495
    %642 = vmatprep.subr.bf16.mxu0 0
    %643 = vmatpush1.bf16.msra.mxu0 %v494
    %644 = vmatprep.subr.bf16.mxu0 0
    %645 = vmatpush1.bf16.msra.mxu0 %v493
    %646 = vmatprep.subr.bf16.mxu0 0
    %647 = vmatpush1.bf16.msra.mxu0 %v492
    %648 = vmatprep.subr.bf16.mxu0 0
    %649 = vmatpush1.bf16.msra.mxu0 %v491
    %650 = vmatprep.subr.bf16.mxu0 0
    %651 = vmatpush1.bf16.msra.mxu0 %v490
    %652 = vmatprep.subr.bf16.mxu0 0
    %653 = vmatpush1.bf16.msra.mxu0 %v489
    %654 = vmatprep.subr.bf16.mxu0 0
    %655 = vmatpush1.bf16.msra.mxu0 %v488
    %656 = vmatprep.subr.bf16.mxu0 0
    %657 = vmatpush2.bf16.msra.mxu0 %v503
    %658 = vmatprep.subr.bf16.mxu0 0
    %659 = vmatpush2.bf16.msra.mxu0 %v502
    %660 = vmatprep.subr.bf16.mxu0 0
    %661 = vmatpush2.bf16.msra.mxu0 %v501
    %662 = vmatprep.subr.bf16.mxu0 0
    %663 = vmatpush2.bf16.msra.mxu0 %v500
    %664 = vmatprep.subr.bf16.mxu0 0
    %665 = vmatpush2.bf16.msra.mxu0 %v499
    %666 = vmatprep.subr.bf16.mxu0 0
    %667 = vmatpush2.bf16.msra.mxu0 %v498
    %668 = vmatprep.subr.bf16.mxu0 0
    %669 = vmatpush2.bf16.msra.mxu0 %v497
    %670 = vmatprep.subr.bf16.mxu0 0
    %671 = vmatpush2.bf16.msra.mxu0 %v496
    %672 = vmatprep.mubr.bf16.mxu0 %v206
    %673 = vmatmul.mubr.bf16.gmra.mxu0 %v204
    %v674 = vpop.f32.mrf.mxu0
    %v675 = vadd.f32 %v635, %v674
    %v676 = vpop.f32.mrf.mxu0
    %v677 = vpop.f32.mrf.mxu0
    %v678 = vpop.f32.mrf.mxu0
    %679 = vdwg.mxu0
    %680 = vmatprep.subr.bf16.mxu0 0
    %681 = vmatpush1.bf16.msra.mxu0 %v511
    %682 = vmatprep.subr.bf16.mxu0 0
    %683 = vmatpush1.bf16.msra.mxu0 %v510
    %684 = vmatprep.subr.bf16.mxu0 0
    %685 = vmatpush1.bf16.msra.mxu0 %v509
    %686 = vmatprep.subr.bf16.mxu0 0
    %687 = vmatpush1.bf16.msra.mxu0 %v508
    %688 = vmatprep.subr.bf16.mxu0 0
    %689 = vmatpush1.bf16.msra.mxu0 %v507
    %690 = vmatprep.subr.bf16.mxu0 0
    %691 = vmatpush1.bf16.msra.mxu0 %v506
    %692 = vmatprep.subr.bf16.mxu0 0
    %693 = vmatpush1.bf16.msra.mxu0 %v505
    %694 = vmatprep.subr.bf16.mxu0 0
    %695 = vmatpush1.bf16.msra.mxu0 %v504
    %696 = vmatprep.subr.bf16.mxu0 0
    %697 = vmatpush2.bf16.msra.mxu0 %v519
    %698 = vmatprep.subr.bf16.mxu0 0
    %699 = vmatpush2.bf16.msra.mxu0 %v518
    %700 = vmatprep.subr.bf16.mxu0 0
    %701 = vmatpush2.bf16.msra.mxu0 %v517
    %702 = vmatprep.subr.bf16.mxu0 0
    %703 = vmatpush2.bf16.msra.mxu0 %v516
    %704 = vmatprep.subr.bf16.mxu0 0
    %705 = vmatpush2.bf16.msra.mxu0 %v515
    %706 = vmatprep.subr.bf16.mxu0 0
    %707 = vmatpush2.bf16.msra.mxu0 %v514
    %708 = vmatprep.subr.bf16.mxu0 0
    %709 = vmatpush2.bf16.msra.mxu0 %v513
    %710 = vmatprep.subr.bf16.mxu0 0
    %711 = vmatpush2.bf16.msra.mxu0 %v512
    %712 = vmatprep.mubr.bf16.mxu0 %v203
    %713 = vmatmul.mubr.bf16.gmra.mxu0 %v189
    %v714 = vpop.f32.mrf.mxu0
    %v715 = vadd.f32 %v675, %v714
    %v716 = vpop.f32.mrf.mxu0
    %v717 = vpop.f32.mrf.mxu0
    %v718 = vpop.f32.mrf.mxu0
    %719 = vdwg.mxu0
    %720 = vmatprep.subr.bf16.mxu0 0
    %721 = vmatpush1.bf16.msra.mxu0 %v527
    %722 = vmatprep.subr.bf16.mxu0 0
    %723 = vmatpush1.bf16.msra.mxu0 %v526
    %724 = vmatprep.subr.bf16.mxu0 0
    %725 = vmatpush1.bf16.msra.mxu0 %v525
    %726 = vmatprep.subr.bf16.mxu0 0
    %727 = vmatpush1.bf16.msra.mxu0 %v524
    %728 = vmatprep.subr.bf16.mxu0 0
    %729 = vmatpush1.bf16.msra.mxu0 %v523
    %730 = vmatprep.subr.bf16.mxu0 0
    %731 = vmatpush1.bf16.msra.mxu0 %v522
    %732 = vmatprep.subr.bf16.mxu0 0
    %733 = vmatpush1.bf16.msra.mxu0 %v521
    %734 = vmatprep.subr.bf16.mxu0 0
    %735 = vmatpush1.bf16.msra.mxu0 %v520
    %736 = vmatprep.subr.bf16.mxu0 0
    %737 = vmatpush2.bf16.msra.mxu0 %v535
    %738 = vmatprep.subr.bf16.mxu0 0
    %739 = vmatpush2.bf16.msra.mxu0 %v534
    %740 = vmatprep.subr.bf16.mxu0 0
    %741 = vmatpush2.bf16.msra.mxu0 %v533
    %742 = vmatprep.subr.bf16.mxu0 0
    %743 = vmatpush2.bf16.msra.mxu0 %v532
    %744 = vmatprep.subr.bf16.mxu0 0
    %745 = vmatpush2.bf16.msra.mxu0 %v531
    %746 = vmatprep.subr.bf16.mxu0 0
    %747 = vmatpush2.bf16.msra.mxu0 %v530
    %748 = vmatprep.subr.bf16.mxu0 0
    %749 = vmatpush2.bf16.msra.mxu0 %v529
    %750 = vmatprep.subr.bf16.mxu0 0
    %751 = vmatpush2.bf16.msra.mxu0 %v528
    %752 = vmatprep.mubr.bf16.mxu0 %v207
    %753 = vmatmul.mubr.bf16.gmra.mxu0 %v205
    %v754 = vpop.f32.mrf.mxu0
    %v755 = vadd.f32 %v715, %v754
    %v756 = vpop.f32.mrf.mxu0
    %v757 = vpop.f32.mrf.mxu0
    %v758 = vpop.f32.mrf.mxu0
    %759 = vdwg.mxu0
    %v760 = vpack.c.bf16 %v755, %v755
    %v761 = vld [vmem:[%s3] sm:$0xf]
    %v762 = vld [vmem:[%s3 + $0x4] sm:$0xf]
    %v763 = vld [vmem:[%s3 + $0x8] sm:$0xf]
    %v764 = vld [vmem:[%s3 + $0xc] sm:$0xf]
    %v765 = vld [vmem:[%s3 + $0x10] sm:$0xf]
    %v766 = vld [vmem:[%s3 + $0x14] sm:$0xf]
    %v767 = vld [vmem:[%s3 + $0x18] sm:$0xf]
    %v768 = vld [vmem:[%s3 + $0x1c] sm:$0xf]
    %v769 = vld [vmem:[%s3 + $0x20] sm:$0xf]
    %v770 = vld [vmem:[%s3 + $0x24] sm:$0xf]
    %v771 = vld [vmem:[%s3 + $0x28] sm:$0xf]
    %v772 = vld [vmem:[%s3 + $0x2c] sm:$0xf]
    %v773 = vld [vmem:[%s3 + $0x30] sm:$0xf]
    %v774 = vld [vmem:[%s3 + $0x34] sm:$0xf]
    %v775 = vld [vmem:[%s3 + $0x38] sm:$0xf]
    %v776 = vld [vmem:[%s3 + $0x3c] sm:$0xf]
    %v777 = vld [vmem:[%s4] sm:$0x1]
    %v779 = vlaneseq
    %v780 = vshrl.u32 %v779, 7
    %v781 = vsub.s32 0, %v780
    %v782 = vrot.slane %v777, %v781
    %v800 = vunpack.c.l.b16 %v761
    %v801 = vunpack.c.l.b16 %v762
    %v802 = vunpack.c.l.b16 %v763
    %v803 = vunpack.c.l.b16 %v764
    %v804 = vunpack.c.l.b16 %v765
    %v805 = vunpack.c.l.b16 %v766
    %v806 = vunpack.c.l.b16 %v767
    %v807 = vunpack.c.l.b16 %v768
    %v808 = vunpack.c.l.b16 %v769
    %v809 = vunpack.c.l.b16 %v770
    %v810 = vunpack.c.l.b16 %v771
    %v811 = vunpack.c.l.b16 %v772
    %v812 = vunpack.c.l.b16 %v773
    %v813 = vunpack.c.l.b16 %v774
    %v814 = vunpack.c.l.b16 %v775
    %v815 = vunpack.c.l.b16 %v776
    %v816 = vpack.c.b16 %v801, %v800
    %v817 = vpack.c.b16 %v803, %v802
    %v818 = vpack.c.b16 %v805, %v804
    %v819 = vpack.c.b16 %v807, %v806
    %v820 = vpack.c.b16 %v809, %v808
    %v821 = vpack.c.b16 %v811, %v810
    %v822 = vpack.c.b16 %v813, %v812
    %v823 = vpack.c.b16 %v815, %v814
    %832 = vmatprep.subr.bf16.mxu0 0
    %833 = vmatpush1.bf16.msra.mxu0 %v823
    %834 = vmatprep.subr.bf16.mxu0 0
    %835 = vmatpush1.bf16.msra.mxu0 %v822
    %836 = vmatprep.subr.bf16.mxu0 0
    %837 = vmatpush1.bf16.msra.mxu0 %v821
    %838 = vmatprep.subr.bf16.mxu0 0
    %839 = vmatpush1.bf16.msra.mxu0 %v820
    %840 = vmatprep.subr.bf16.mxu0 0
    %841 = vmatpush1.bf16.msra.mxu0 %v819
    %842 = vmatprep.subr.bf16.mxu0 0
    %843 = vmatpush1.bf16.msra.mxu0 %v818
    %844 = vmatprep.subr.bf16.mxu0 0
    %845 = vmatpush1.bf16.msra.mxu0 %v817
    %846 = vmatprep.subr.bf16.mxu0 0
    %847 = vmatpush1.bf16.msra.mxu0 %v816
    %848 = vmatprep.subr.bf16.mxu0 0
    %849 = vmatpush2.bf16.msra.mxu0 0
    %850 = vmatprep.subr.bf16.mxu0 0
    %851 = vmatpush2.bf16.msra.mxu0 0
    %852 = vmatprep.subr.bf16.mxu0 0
    %853 = vmatpush2.bf16.msra.mxu0 0
    %854 = vmatprep.subr.bf16.mxu0 0
    %855 = vmatpush2.bf16.msra.mxu0 0
    %856 = vmatprep.subr.bf16.mxu0 0
    %857 = vmatpush2.bf16.msra.mxu0 0
    %858 = vmatprep.subr.bf16.mxu0 0
    %859 = vmatpush2.bf16.msra.mxu0 0
    %860 = vmatprep.subr.bf16.mxu0 0
    %861 = vmatpush2.bf16.msra.mxu0 0
    %862 = vmatprep.subr.bf16.mxu0 0
    %863 = vmatpush2.bf16.msra.mxu0 0
    %864 = vmatprep.mubr.bf16.mxu0 0
    %865 = vmatmul.mubr.bf16.gmra.mxu0 %v760
    %v866 = vpop.f32.mrf.mxu0
    %v867 = vadd.f32 %v782, %v866
    %v868 = vpop.f32.mrf.mxu0
    %v869 = vpop.f32.mrf.mxu0
    %v870 = vpop.f32.mrf.mxu0
    %871 = vdwg.mxu0
    %872 = vst [vmem:[#allocation2] sm:$0x3] %v867
    // Predicated region
    $region22: #{cifar10_forward.7} parent=1 // pred_check
      _
    $region23: #{cifar10_forward.7} parent=1 // pred_check_branch
      %874 = sbr.rel (0) target = $region25
    $region24: #{cifar10_forward.7} parent=1 // pred_region
      %s876 = ssub.s32 32, 32
      %877 = vsyncadd [#allocation3], %s876
      %s879 = sshll.u32 [#allocation2], 4
      %s880 = int_to_ptr.vmem [resolvable:$true] %s879
      %882 = dma.vmem_to_hbm [thread:$0]  %s880, 32, %s5, [#allocation3]
    $region25: #{cifar10_forward.7} parent=1 // pred_fallthru
      _
    // Predicated region
    $region26: #{cifar10_forward.7} parent=1 // pred_check
      _
    $region27: #{cifar10_forward.7} parent=1 // pred_check_branch
      %884 = sbr.rel (0) target = $region29
    $region28: #{cifar10_forward.7} parent=1 // pred_region
      %885 = dma.done [#allocation3], 32
    $region29: #{cifar10_forward.7} parent=1 // pred_fallthru
      _
    %886 = vsyncpa [#allocation3], 1

</llo_original>
